<compile_context>
chip_gen: v5e
topology: v5e:2x2
jax: 0.10.0
libtpu: 0.0.40
codegen_flags: <defaults>
</compile_context>

<pallas_src>
import jax
import jax.numpy as jnp
from jax.experimental import pallas as pl
from jax.experimental.pallas import tpu as pltpu

VOCAB = 2000
EMB = 32
SEQ = 50                       # dense1 in_features 1600 / 32 -> seq length 50
HID = 256
OUT = 10

K = SEQ * EMB                  # 1600
K_PAD = 1664                   # 13 * 128 : lane-dense K for the first matmul
OUT_PAD = 128                  # lane-dense output columns (pad cols masked to -1e30)
TB = 128                       # batch tile (rows per grid step)


def mlp_softmax_kernel(x_ref, w1_ref, b1_ref, w2_ref, b2_ref, o_ref):
    # x_ref : (TB, K_PAD)   bf16     w1_ref: (K_PAD, HID)   bf16    b1_ref: (1, HID)     f32
    # w2_ref: (HID, OUT_PAD) bf16    b2_ref: (1, OUT_PAD)   f32     o_ref : (TB, OUT_PAD) f32
    x = x_ref[...]
    h = jnp.dot(x, w1_ref[...], preferred_element_type=jnp.float32) + b1_ref[...]
    h = jnp.maximum(h, 0.0)                                          # ReLU in f32
    logits = jnp.dot(h.astype(jnp.bfloat16), w2_ref[...],
                     preferred_element_type=jnp.float32) + b2_ref[...]
    # Padded logit columns carry a -1e30 bias, so exp(pad - m) == 0 and the
    # softmax over 128 columns equals the softmax over the real 10 columns.
    m = jnp.max(logits, axis=-1, keepdims=True)
    e = jnp.exp(logits - m)
    denom = jnp.sum(e, axis=-1, keepdims=True)
    o_ref[...] = e * pl.reciprocal(denom, approx=False)


def prepare_params(params):
    """Pad / cast the PyTorch-layout f32 params into kernel-friendly buffers."""
    emb_table, w1, b1, w2, b2 = params
    emb_bf = emb_table.astype(jnp.bfloat16)                                   # (2000, 32)
    w1_p = jnp.zeros((K_PAD, HID), jnp.bfloat16).at[:K, :].set(
        w1.astype(jnp.bfloat16))                                              # (1664, 256)
    b1_p = b1.reshape(1, HID).astype(jnp.float32)                             # (1, 256)
    w2_p = jnp.zeros((HID, OUT_PAD), jnp.bfloat16).at[:, :OUT].set(
        w2.astype(jnp.bfloat16))                                              # (256, 128)
    b2_p = jnp.full((1, OUT_PAD), -1e30, jnp.float32).at[0, :OUT].set(
        b2.astype(jnp.float32))                                               # (1, 128)
    return emb_bf, w1_p, b1_p, w2_p, b2_p


def class_model_forward(token_ids, prepared):
    """token_ids: (B, SEQ) int32.  Returns (B, 10) float32 softmax probs."""
    emb_bf, w1_p, b1_p, w2_p, b2_p = prepared
    B = token_ids.shape[0]
    B_pad = pl.cdiv(B, TB) * TB

    # Embedding lookup + flatten (glue, outside the kernel). Dropout: identity.
    # TODO(synk): fuse this gather into the kernel once arbitrary-row VMEM
    # gather (jnp.take on a (2000,32) table) lowers robustly in Mosaic.
    emb = jnp.take(emb_bf, token_ids, axis=0)                 # (B, SEQ, EMB) bf16
    x_flat = emb.reshape(B, K)                                # (B, 1600) bf16
    # Zero-pad batch -> B_pad and K -> K_PAD (numerically inert: w1 pad rows are 0).
    x_pad = jnp.pad(x_flat, ((0, B_pad - B), (0, K_PAD - K)))  # (B_pad, 1664)

    out = pl.pallas_call(
        mlp_softmax_kernel,
        out_shape=jax.ShapeDtypeStruct((B_pad, OUT_PAD), jnp.float32),
        grid_spec=pltpu.PrefetchScalarGridSpec(
            num_scalar_prefetch=0,
            grid=(B_pad // TB,),
            in_specs=[
                pl.BlockSpec((TB, K_PAD), lambda i: (i, 0)),     # activations: tiled
                pl.BlockSpec((K_PAD, HID), lambda i: (0, 0)),    # w1: resident
                pl.BlockSpec((1, HID), lambda i: (0, 0)),        # b1: resident
                pl.BlockSpec((HID, OUT_PAD), lambda i: (0, 0)),  # w2: resident
                pl.BlockSpec((1, OUT_PAD), lambda i: (0, 0)),    # b2: resident
            ],
            out_specs=pl.BlockSpec((TB, OUT_PAD), lambda i: (i, 0)),
        ),
        compiler_params=pltpu.CompilerParams(
            dimension_semantics=("parallel",),
        ),
    )(x_pad, w1_p, b1_p, w2_p, b2_p)

    return out[:B, :OUT]


def init_params(key):
    k0, k1, k2, k3, k4 = jax.random.split(key, 5)
    emb_table = jax.random.normal(k0, (VOCAB, EMB), jnp.float32) * 0.02
    w1 = jax.random.normal(k1, (K, HID), jnp.float32) * 0.02
    b1 = jax.random.normal(k2, (HID,), jnp.float32) * 0.01
    w2 = jax.random.normal(k3, (HID, OUT), jnp.float32) * 0.02
    b2 = jax.random.normal(k4, (OUT,), jnp.float32) * 0.01
    return emb_table, w1, b1, w2, b2


def reference_forward(token_ids, params):
    """Pure-JAX f32 reference of the PyTorch forward (inference mode)."""
    emb_table, w1, b1, w2, b2 = params
    x = jnp.take(emb_table, token_ids, axis=0).reshape(token_ids.shape[0], K)
    h = jnp.maximum(x @ w1 + b1, 0.0)
    logits = h @ w2 + b2
    return jax.nn.softmax(logits, axis=-1)


if __name__ == "__main__":
    key = jax.random.PRNGKey(0)
    params = init_params(key)
    prepared = prepare_params(params)

    # Small deterministic input: batch=2, seq=50 token ids in [0, 2000).
    tok_key = jax.random.fold_in(key, 123)
    token_ids = jax.random.randint(tok_key, (2, SEQ), 0, VOCAB, dtype=jnp.int32)

    probs = class_model_forward(token_ids, prepared)
    probs = jax.block_until_ready(probs)

    # Sanity: correct shape, rows sum to 1, matches the f32 reference closely
    # (bf16 matmul inputs, f32 accumulation -> loose tolerance).
    assert probs.shape == (2, OUT)
    assert jnp.allclose(jnp.sum(probs, axis=-1), 1.0, atol=1e-5)
    ref = reference_forward(token_ids, params)
    assert jnp.allclose(probs, ref, atol=3e-2)
    print("KERNEL_OK")
</pallas_src>

<mosaic_0001>
module attributes {stable_mosaic.version = 11 : i64} {
  func.func @mlp_softmax_kernel(%arg0: i32, %arg1: memref<128x1664xbf16, #tpu.memory_space<vmem>>, %arg2: memref<1664x256xbf16, #tpu.memory_space<vmem>>, %arg3: memref<1x256xf32, #tpu.memory_space<vmem>>, %arg4: memref<256x128xbf16, #tpu.memory_space<vmem>>, %arg5: memref<1x128xf32, #tpu.memory_space<vmem>>, %arg6: memref<128x128xf32, #tpu.memory_space<vmem>>) attributes {dimension_semantics = [#tpu.dimension_semantics<parallel>], iteration_bounds = array<i64: 1>, scalar_prefetch = 0 : i64, scratch_operands = 0 : i64, tpu.core_type = #tpu.core_type<tc>, window_params = [{transform_indices = @transform_0, window_bounds = array<i64: 128, 1664>}, {pipeline_mode = #tpu.pipeline_mode<synchronous>, transform_indices = @transform_1, window_bounds = array<i64: 1664, 256>}, {pipeline_mode = #tpu.pipeline_mode<synchronous>, transform_indices = @transform_2, window_bounds = array<i64: 1, 256>}, {pipeline_mode = #tpu.pipeline_mode<synchronous>, transform_indices = @transform_3, window_bounds = array<i64: 256, 128>}, {pipeline_mode = #tpu.pipeline_mode<synchronous>, transform_indices = @transform_4, window_bounds = array<i64: 1, 128>}, {transform_indices = @transform_5, window_bounds = array<i64: 128, 128>}]} {
    %c0 = arith.constant 0 : index
    %c0_0 = arith.constant 0 : index
    %0 = vector.load %arg1[%c0, %c0_0] : memref<128x1664xbf16, #tpu.memory_space<vmem>>, vector<128x1664xbf16>
    %c0_1 = arith.constant 0 : index
    %c0_2 = arith.constant 0 : index
    %1 = vector.load %arg2[%c0_1, %c0_2] : memref<1664x256xbf16, #tpu.memory_space<vmem>>, vector<1664x256xbf16>
    %cst = arith.constant dense<0.000000e+00> : vector<128x256xf32>
    %2 = tpu.matmul %0, %1, %cst {dimension_numbers = #tpu.dot_dimension_numbers<[1], [0], [0], [1], [0, 0, 1, 1], [], []>} : vector<128x1664xbf16>, vector<1664x256xbf16>, vector<128x256xf32> -> vector<128x256xf32>
    %c0_3 = arith.constant 0 : index
    %c0_4 = arith.constant 0 : index
    %3 = vector.load %arg3[%c0_3, %c0_4] : memref<1x256xf32, #tpu.memory_space<vmem>>, vector<1x256xf32>
    %4 = vector.broadcast %3 : vector<1x256xf32> to vector<128x256xf32>
    %5 = arith.addf %2, %4 : vector<128x256xf32>
    %cst_5 = arith.constant 0.000000e+00 : f32
    %6 = vector.broadcast %cst_5 : f32 to vector<128x256xf32>
    %7 = arith.maximumf %5, %6 : vector<128x256xf32>
    %8 = arith.truncf %7 : vector<128x256xf32> to vector<128x256xbf16>
    %c0_6 = arith.constant 0 : index
    %c0_7 = arith.constant 0 : index
    %9 = vector.load %arg4[%c0_6, %c0_7] : memref<256x128xbf16, #tpu.memory_space<vmem>>, vector<256x128xbf16>
    %cst_8 = arith.constant dense<0.000000e+00> : vector<128x128xf32>
    %10 = tpu.matmul %8, %9, %cst_8 {dimension_numbers = #tpu.dot_dimension_numbers<[1], [0], [0], [1], [0, 0, 1, 1], [], []>} : vector<128x256xbf16>, vector<256x128xbf16>, vector<128x128xf32> -> vector<128x128xf32>
    %c0_9 = arith.constant 0 : index
    %c0_10 = arith.constant 0 : index
    %11 = vector.load %arg5[%c0_9, %c0_10] : memref<1x128xf32, #tpu.memory_space<vmem>>, vector<1x128xf32>
    %12 = vector.broadcast %11 : vector<1x128xf32> to vector<128x128xf32>
    %13 = arith.addf %10, %12 : vector<128x128xf32>
    %cst_11 = arith.constant dense<0xFF800000> : vector<128xf32>
    %14 = vector.multi_reduction <maximumf>, %13, %cst_11 [1] : vector<128x128xf32> to vector<128xf32>
    %15 = vector.shape_cast %14 : vector<128xf32> to vector<128x1xf32>
    %16 = vector.broadcast %15 : vector<128x1xf32> to vector<128x128xf32>
    %17 = arith.subf %13, %16 : vector<128x128xf32>
    %18 = math.exp %17 : vector<128x128xf32>
    %cst_12 = arith.constant dense<0.000000e+00> : vector<128xf32>
    %19 = vector.multi_reduction <add>, %18, %cst_12 [1] : vector<128x128xf32> to vector<128xf32>
    %20 = vector.shape_cast %19 : vector<128xf32> to vector<128x1xf32>
    %21 = tpu.reciprocal %20 : vector<128x1xf32> -> vector<128x1xf32>
    %22 = vector.broadcast %21 : vector<128x1xf32> to vector<128x128xf32>
    %23 = arith.mulf %18, %22 : vector<128x128xf32>
    %c0_13 = arith.constant 0 : index
    %c0_14 = arith.constant 0 : index
    %24 = vector.load %arg6[%c0_13, %c0_14] : memref<128x128xf32, #tpu.memory_space<vmem>>, vector<128x128xf32>
    tpu.vector_store %arg6[%c0_13, %c0_14], %23 {strides = array<i32>} : memref<128x128xf32, #tpu.memory_space<vmem>>, vector<128x128xf32>,
    return
  }
  func.func @transform_0(%arg0: i32) -> (i32, i32) {
    %c0_i32 = arith.constant 0 : i32
    %c0_i32_0 = arith.constant 0 : i32
    return %arg0, %c0_i32 : i32, i32
  }
  func.func @transform_1(%arg0: i32) -> (i32, i32) {
    %c0_i32 = arith.constant 0 : i32
    %c0_i32_0 = arith.constant 0 : i32
    %c0_i32_1 = arith.constant 0 : i32
    return %c0_i32, %c0_i32_0 : i32, i32
  }
  func.func @transform_2(%arg0: i32) -> (i32, i32) {
    %c0_i32 = arith.constant 0 : i32
    %c0_i32_0 = arith.constant 0 : i32
    %c0_i32_1 = arith.constant 0 : i32
    return %c0_i32, %c0_i32_0 : i32, i32
  }
  func.func @transform_3(%arg0: i32) -> (i32, i32) {
    %c0_i32 = arith.constant 0 : i32
    %c0_i32_0 = arith.constant 0 : i32
    %c0_i32_1 = arith.constant 0 : i32
    return %c0_i32, %c0_i32_0 : i32, i32
  }
  func.func @transform_4(%arg0: i32) -> (i32, i32) {
    %c0_i32 = arith.constant 0 : i32
    %c0_i32_0 = arith.constant 0 : i32
    %c0_i32_1 = arith.constant 0 : i32
    return %c0_i32, %c0_i32_0 : i32, i32
  }
  func.func @transform_5(%arg0: i32) -> (i32, i32) {
    %c0_i32 = arith.constant 0 : i32
    %c0_i32_0 = arith.constant 0 : i32
    return %arg0, %c0_i32 : i32, i32
  }
}

</mosaic_0001>

<llo_original>
// kernel: tpu_custom_call.1
$region0: #{tpu_custom_call.1}
  #allocation0 [shape = 'u32[]', space=smem, size = 0x4, offset = 0x4, fixed_abs, tag = 'smem constant byte address 0x4 - core index']
  #allocation1 [shape = 'u32[72,128]{1,0:T(1,128)}', space=vmem, size = 0x9000, scoped, tag = 'internal scratch']
  %s0 = inlined_call_operand.hbm [shape: bf16[128,1664], index: 0, kind: input, shape index: {}]
  %s1 = inlined_call_operand.hbm [shape: bf16[1664,256], index: 1, kind: input, shape index: {}]
  %s2 = inlined_call_operand.hbm [shape: f32[1,256], index: 2, kind: input, shape index: {}]
  %s3 = inlined_call_operand.hbm [shape: bf16[256,128], index: 3, kind: input, shape index: {}]
  %s4 = inlined_call_operand.vmem [shape: f32[1,128], index: 4, kind: input, shape index: {}]
  %s5 = inlined_call_operand.hbm [shape: f32[128,128], index: 5, kind: output, shape index: {}]
  %s6 = sld [smem:[#allocation0]]
  $region46: #{tpu_custom_call.1} parent=0
    _
  %s8 = ssub.s32 1, %s6
  %s9 = scalar_select 0, %s8, %s6
  $region1: #{tpu_custom_call.1} parent=0
    #allocation2 [shape = 'u8[425984]{0}', space=vmem, size = 0x68000, scoped, tag = 'input window, operand 0, single buffered']
    #allocation3 [shape = 's32[1]{0}', space=sflag, size = 0x4, scoped, tag = 'scoped memory for tpu_custom_call.1']
    #allocation4 [shape = 's32[1]{0}', space=sflag, size = 0x4, scoped, tag = 'scoped memory for tpu_custom_call.1']
    #allocation5 [shape = 'u8[851968]{0}', space=vmem, size = 0xd0000, scoped, tag = 'input window, operand 1, single buffered']
    #allocation6 [shape = 's32[1]{0}', space=sflag, size = 0x4, scoped, tag = 'scoped memory for tpu_custom_call.1']
    #allocation7 [shape = 'u8[1024]{0}', space=vmem, size = 0x400, scoped, tag = 'input window, operand 2, single buffered']
    #allocation8 [shape = 'u8[65536]{0}', space=vmem, size = 0x10000, scoped, tag = 'input window, operand 3, single buffered']
    #allocation9 [shape = 's32[1]{0}', space=sflag, size = 0x4, scoped, tag = 'scoped memory for tpu_custom_call.1']
    #allocation10 [shape = 'u8[65536]{0}', space=vmem, size = 0x10000, scoped, tag = 'output window, operand 0, single buffered']
    %10 = vsyncpa [#allocation3], 0
    %11 = vsyncpa [#allocation6], 0
    %12 = vsyncpa [#allocation9], 0
    %13 = vsyncpa [#allocation4], 0
    // Predicated region
    $region2: #{tpu_custom_call.1} parent=1 // pred_check
      _
    $region3: #{tpu_custom_call.1} parent=1 // pred_check_branch
      %15 = sbr.rel (0) target = $region5
    $region4: #{tpu_custom_call.1} parent=1 // pred_region
      %17 = vsyncadd [#allocation3], 0
      %s18 = sshll.u32 %s0, 4
      %s19 = int_to_ptr.hbm [resolvable:$true] %s18
      %s20 = sshll.u32 [#allocation2], 4
      %s21 = int_to_ptr.vmem [resolvable:$true] %s20
      %26 = dma.hbm_to_vmem [thread:$0]  %s19, 13312, %s21, [#allocation3], 832, 832, 52
    $region5: #{tpu_custom_call.1} parent=1 // pred_fallthru
      _
    // Predicated region
    $region6: #{tpu_custom_call.1} parent=1 // pred_check
      _
    $region7: #{tpu_custom_call.1} parent=1 // pred_check_branch
      %28 = sbr.rel (0) target = $region9
    $region8: #{tpu_custom_call.1} parent=1 // pred_region
      %30 = vsyncadd [#allocation6], 0
      %s31 = sshll.u32 %s1, 4
      %s32 = int_to_ptr.hbm [resolvable:$true] %s31
      %s33 = sshll.u32 [#allocation5], 4
      %s34 = int_to_ptr.vmem [resolvable:$true] %s33
      %39 = dma.hbm_to_vmem [thread:$0]  %s32, 26624, %s34, [#allocation6], 128, 128, 8
    $region9: #{tpu_custom_call.1} parent=1 // pred_fallthru
      _
    // Predicated region
    $region10: #{tpu_custom_call.1} parent=1 // pred_check
      _
    $region11: #{tpu_custom_call.1} parent=1 // pred_check_branch
      %41 = sbr.rel (0) target = $region13
    $region12: #{tpu_custom_call.1} parent=1 // pred_region
      %43 = vsyncadd [#allocation6], 0
      %s45 = sshll.u32 %s2, 4
      %s46 = int_to_ptr.hbm [resolvable:$true] %s45
      %s47 = sshll.u32 [#allocation7], 4
      %s48 = int_to_ptr.vmem [resolvable:$true] %s47
      %50 = dma.hbm_to_vmem [thread:$0]  %s46, 32, %s48, [#allocation6]
    $region13: #{tpu_custom_call.1} parent=1 // pred_fallthru
      _
    // Predicated region
    $region14: #{tpu_custom_call.1} parent=1 // pred_check
      _
    $region15: #{tpu_custom_call.1} parent=1 // pred_check_branch
      %52 = sbr.rel (0) target = $region17
    $region16: #{tpu_custom_call.1} parent=1 // pred_region
      %54 = vsyncadd [#allocation9], 0
      %s55 = sshll.u32 %s3, 4
      %s56 = int_to_ptr.hbm [resolvable:$true] %s55
      %s57 = sshll.u32 [#allocation8], 4
      %s58 = int_to_ptr.vmem [resolvable:$true] %s57
      %63 = dma.hbm_to_vmem [thread:$0]  %s56, 2048, %s58, [#allocation9], 64, 64, 4
    $region17: #{tpu_custom_call.1} parent=1 // pred_fallthru
      _
    // Predicated region
    $region18: #{tpu_custom_call.1} parent=1 // pred_check
      _
    $region19: #{tpu_custom_call.1} parent=1 // pred_check_branch
      %65 = sbr.rel (0) target = $region21
    $region20: #{tpu_custom_call.1} parent=1 // pred_region
      _
    $region21: #{tpu_custom_call.1} parent=1 // pred_fallthru
      _
    // Predicated region
    $region22: #{tpu_custom_call.1} parent=1 // pred_check
      _
    $region23: #{tpu_custom_call.1} parent=1 // pred_check_branch
      %67 = sbr.rel (0) target = $region25
    $region24: #{tpu_custom_call.1} parent=1 // pred_region
      %69 = dma.done [#allocation3], 13312
    $region25: #{tpu_custom_call.1} parent=1 // pred_fallthru
      _
    // Predicated region
    $region26: #{tpu_custom_call.1} parent=1 // pred_check
      _
    $region27: #{tpu_custom_call.1} parent=1 // pred_check_branch
      %71 = sbr.rel (0) target = $region29
    $region28: #{tpu_custom_call.1} parent=1 // pred_region
      %73 = dma.done [#allocation6], 26624
    $region29: #{tpu_custom_call.1} parent=1 // pred_fallthru
      _
    // Predicated region
    $region30: #{tpu_custom_call.1} parent=1 // pred_check
      _
    $region31: #{tpu_custom_call.1} parent=1 // pred_check_branch
      %75 = sbr.rel (0) target = $region33
    $region32: #{tpu_custom_call.1} parent=1 // pred_region
      %77 = dma.done [#allocation6], 32
    $region33: #{tpu_custom_call.1} parent=1 // pred_fallthru
      _
    // Predicated region
    $region34: #{tpu_custom_call.1} parent=1 // pred_check
      _
    $region35: #{tpu_custom_call.1} parent=1 // pred_check_branch
      %79 = sbr.rel (0) target = $region37
    $region36: #{tpu_custom_call.1} parent=1 // pred_region
      %81 = dma.done [#allocation9], 2048
    $region37: #{tpu_custom_call.1} parent=1 // pred_fallthru
      _
    %v82 = vld [vmem:[#allocation2] sm:$0xff]
    %v83 = vld [vmem:[#allocation2 + $0x8] sm:$0xff]
    %v84 = vld [vmem:[#allocation2 + $0x10] sm:$0xff]
    %v85 = vld [vmem:[#allocation2 + $0x18] sm:$0xff]
    %v86 = vld [vmem:[#allocation2 + $0x20] sm:$0xff]
    %v87 = vld [vmem:[#allocation2 + $0x28] sm:$0xff]
    %v88 = vld [vmem:[#allocation2 + $0x30] sm:$0xf]
    %v89 = vld [vmem:[#allocation2 + $0x34] sm:$0xff]
    %v90 = vld [vmem:[#allocation2 + $0x3c] sm:$0xff]
    %v91 = vld [vmem:[#allocation2 + $0x44] sm:$0xff]
    %v92 = vld [vmem:[#allocation2 + $0x4c] sm:$0xff]
    %v93 = vld [vmem:[#allocation2 + $0x54] sm:$0xff]
    %v94 = vld [vmem:[#allocation2 + $0x5c] sm:$0xff]
    %v95 = vld [vmem:[#allocation2 + $0x64] sm:$0xf]
    %v96 = vld [vmem:[#allocation2 + $0x68] sm:$0xff]
    %v97 = vld [vmem:[#allocation2 + $0x70] sm:$0xff]
    %v98 = vld [vmem:[#allocation2 + $0x78] sm:$0xff]
    %v99 = vld [vmem:[#allocation2 + $0x80] sm:$0xff]
    %v100 = vld [vmem:[#allocation2 + $0x88] sm:$0xff]
    %v101 = vld [vmem:[#allocation2 + $0x90] sm:$0xff]
    %v102 = vld [vmem:[#allocation2 + $0x98] sm:$0xf]
    %v103 = vld [vmem:[#allocation2 + $0x9c] sm:$0xff]
    %v104 = vld [vmem:[#allocation2 + $0xa4] sm:$0xff]
    %v105 = vld [vmem:[#allocation2 + $0xac] sm:$0xff]
    %v106 = vld [vmem:[#allocation2 + $0xb4] sm:$0xff]
    %v107 = vld [vmem:[#allocation2 + $0xbc] sm:$0xff]
    %v108 = vld [vmem:[#allocation2 + $0xc4] sm:$0xff]
    %v109 = vld [vmem:[#allocation2 + $0xcc] sm:$0xf]
    %v110 = vld [vmem:[#allocation2 + $0xd0] sm:$0xff]
    %v111 = vld [vmem:[#allocation2 + $0xd8] sm:$0xff]
    %v112 = vld [vmem:[#allocation2 + $0xe0] sm:$0xff]
    %v113 = vld [vmem:[#allocation2 + $0xe8] sm:$0xff]
    %v114 = vld [vmem:[#allocation2 + $0xf0] sm:$0xff]
    %v115 = vld [vmem:[#allocation2 + $0xf8] sm:$0xff]
    %v116 = vld [vmem:[#allocation2 + $0x100] sm:$0xf]
    %v117 = vld [vmem:[#allocation2 + $0x104] sm:$0xff]
    %v118 = vld [vmem:[#allocation2 + $0x10c] sm:$0xff]
    %v119 = vld [vmem:[#allocation2 + $0x114] sm:$0xff]
    %v120 = vld [vmem:[#allocation2 + $0x11c] sm:$0xff]
    %v121 = vld [vmem:[#allocation2 + $0x124] sm:$0xff]
    %v122 = vld [vmem:[#allocation2 + $0x12c] sm:$0xff]
    %v123 = vld [vmem:[#allocation2 + $0x134] sm:$0xf]
    %v124 = vld [vmem:[#allocation2 + $0x138] sm:$0xff]
    %v125 = vld [vmem:[#allocation2 + $0x140] sm:$0xff]
    %v126 = vld [vmem:[#allocation2 + $0x148] sm:$0xff]
    %v127 = vld [vmem:[#allocation2 + $0x150] sm:$0xff]
    %v128 = vld [vmem:[#allocation2 + $0x158] sm:$0xff]
    %v129 = vld [vmem:[#allocation2 + $0x160] sm:$0xff]
    %v130 = vld [vmem:[#allocation2 + $0x168] sm:$0xf]
    %v131 = vld [vmem:[#allocation2 + $0x16c] sm:$0xff]
    %v132 = vld [vmem:[#allocation2 + $0x174] sm:$0xff]
    %v133 = vld [vmem:[#allocation2 + $0x17c] sm:$0xff]
    %v134 = vld [vmem:[#allocation2 + $0x184] sm:$0xff]
    %v135 = vld [vmem:[#allocation2 + $0x18c] sm:$0xff]
    %v136 = vld [vmem:[#allocation2 + $0x194] sm:$0xff]
    %v137 = vld [vmem:[#allocation2 + $0x19c] sm:$0xf]
    %v138 = vld [vmem:[#allocation2 + $0x1a0] sm:$0xff]
    %v139 = vld [vmem:[#allocation2 + $0x1a8] sm:$0xff]
    %v140 = vld [vmem:[#allocation2 + $0x1b0] sm:$0xff]
    %v141 = vld [vmem:[#allocation2 + $0x1b8] sm:$0xff]
    %v142 = vld [vmem:[#allocation2 + $0x1c0] sm:$0xff]
    %v143 = vld [vmem:[#allocation2 + $0x1c8] sm:$0xff]
    %v144 = vld [vmem:[#allocation2 + $0x1d0] sm:$0xf]
    %v145 = vld [vmem:[#allocation2 + $0x1d4] sm:$0xff]
    %v146 = vld [vmem:[#allocation2 + $0x1dc] sm:$0xff]
    %v147 = vld [vmem:[#allocation2 + $0x1e4] sm:$0xff]
    %v148 = vld [vmem:[#allocation2 + $0x1ec] sm:$0xff]
    %v149 = vld [vmem:[#allocation2 + $0x1f4] sm:$0xff]
    %v150 = vld [vmem:[#allocation2 + $0x1fc] sm:$0xff]
    %v151 = vld [vmem:[#allocation2 + $0x204] sm:$0xf]
    %v152 = vld [vmem:[#allocation2 + $0x208] sm:$0xff]
    %v153 = vld [vmem:[#allocation2 + $0x210] sm:$0xff]
    %v154 = vld [vmem:[#allocation2 + $0x218] sm:$0xff]
    %v155 = vld [vmem:[#allocation2 + $0x220] sm:$0xff]
    %v156 = vld [vmem:[#allocation2 + $0x228] sm:$0xff]
    %v157 = vld [vmem:[#allocation2 + $0x230] sm:$0xff]
    %v158 = vld [vmem:[#allocation2 + $0x238] sm:$0xf]
    %v159 = vld [vmem:[#allocation2 + $0x23c] sm:$0xff]
    %v160 = vld [vmem:[#allocation2 + $0x244] sm:$0xff]
    %v161 = vld [vmem:[#allocation2 + $0x24c] sm:$0xff]
    %v162 = vld [vmem:[#allocation2 + $0x254] sm:$0xff]
    %v163 = vld [vmem:[#allocation2 + $0x25c] sm:$0xff]
    %v164 = vld [vmem:[#allocation2 + $0x264] sm:$0xff]
    %v165 = vld [vmem:[#allocation2 + $0x26c] sm:$0xf]
    %v166 = vld [vmem:[#allocation2 + $0x270] sm:$0xff]
    %v167 = vld [vmem:[#allocation2 + $0x278] sm:$0xff]
    %v168 = vld [vmem:[#allocation2 + $0x280] sm:$0xff]
    %v169 = vld [vmem:[#allocation2 + $0x288] sm:$0xff]
    %v170 = vld [vmem:[#allocation2 + $0x290] sm:$0xff]
    %v171 = vld [vmem:[#allocation2 + $0x298] sm:$0xff]
    %v172 = vld [vmem:[#allocation2 + $0x2a0] sm:$0xf]
    %v173 = vld [vmem:[#allocation2 + $0x2a4] sm:$0xff]
    %v174 = vld [vmem:[#allocation2 + $0x2ac] sm:$0xff]
    %v175 = vld [vmem:[#allocation2 + $0x2b4] sm:$0xff]
    %v176 = vld [vmem:[#allocation2 + $0x2bc] sm:$0xff]
    %v177 = vld [vmem:[#allocation2 + $0x2c4] sm:$0xff]
    %v178 = vld [vmem:[#allocation2 + $0x2cc] sm:$0xff]
    %v179 = vld [vmem:[#allocation2 + $0x2d4] sm:$0xf]
    %v180 = vld [vmem:[#allocation2 + $0x2d8] sm:$0xff]
    %v181 = vld [vmem:[#allocation2 + $0x2e0] sm:$0xff]
    %v182 = vld [vmem:[#allocation2 + $0x2e8] sm:$0xff]
    %v183 = vld [vmem:[#allocation2 + $0x2f0] sm:$0xff]
    %v184 = vld [vmem:[#allocation2 + $0x2f8] sm:$0xff]
    %v185 = vld [vmem:[#allocation2 + $0x300] sm:$0xff]
    %v186 = vld [vmem:[#allocation2 + $0x308] sm:$0xf]
    %v187 = vld [vmem:[#allocation2 + $0x30c] sm:$0xff]
    %v188 = vld [vmem:[#allocation2 + $0x314] sm:$0xff]
    %v189 = vld [vmem:[#allocation2 + $0x31c] sm:$0xff]
    %v190 = vld [vmem:[#allocation2 + $0x324] sm:$0xff]
    %v191 = vld [vmem:[#allocation2 + $0x32c] sm:$0xff]
    %v192 = vld [vmem:[#allocation2 + $0x334] sm:$0xff]
    %v193 = vld [vmem:[#allocation2 + $0x33c] sm:$0xf]
    %v194 = vld [vmem:[#allocation5] sm:$0xff]
    %v195 = vld [vmem:[#allocation5 + $0x8] sm:$0xff]
    %v196 = vld [vmem:[#allocation5 + $0x10] sm:$0xff]
    %v197 = vld [vmem:[#allocation5 + $0x18] sm:$0xff]
    %v198 = vld [vmem:[#allocation5 + $0x20] sm:$0xff]
    %v199 = vld [vmem:[#allocation5 + $0x28] sm:$0xff]
    %v200 = vld [vmem:[#allocation5 + $0x30] sm:$0xff]
    %v201 = vld [vmem:[#allocation5 + $0x38] sm:$0xff]
    %v202 = vld [vmem:[#allocation5 + $0x40] sm:$0xff]
    %v203 = vld [vmem:[#allocation5 + $0x48] sm:$0xff]
    %v204 = vld [vmem:[#allocation5 + $0x50] sm:$0xff]
    %v205 = vld [vmem:[#allocation5 + $0x58] sm:$0xff]
    %v206 = vld [vmem:[#allocation5 + $0x60] sm:$0xff]
    %v207 = vld [vmem:[#allocation5 + $0x68] sm:$0xff]
    %v208 = vld [vmem:[#allocation5 + $0x70] sm:$0xff]
    %v209 = vld [vmem:[#allocation5 + $0x78] sm:$0xff]
    %v210 = vld [vmem:[#allocation5 + $0x80] sm:$0xff]
    %v211 = vld [vmem:[#allocation5 + $0x88] sm:$0xff]
    %v212 = vld [vmem:[#allocation5 + $0x90] sm:$0xff]
    %v213 = vld [vmem:[#allocation5 + $0x98] sm:$0xff]
    %v214 = vld [vmem:[#allocation5 + $0xa0] sm:$0xff]
    %v215 = vld [vmem:[#allocation5 + $0xa8] sm:$0xff]
    %v216 = vld [vmem:[#allocation5 + $0xb0] sm:$0xff]
    %v217 = vld [vmem:[#allocation5 + $0xb8] sm:$0xff]
    %v218 = vld [vmem:[#allocation5 + $0xc0] sm:$0xff]
    %v219 = vld [vmem:[#allocation5 + $0xc8] sm:$0xff]
    %v220 = vld [vmem:[#allocation5 + $0xd0] sm:$0xff]
    %v221 = vld [vmem:[#allocation5 + $0xd8] sm:$0xff]
    %v222 = vld [vmem:[#allocation5 + $0xe0] sm:$0xff]
    %v223 = vld [vmem:[#allocation5 + $0xe8] sm:$0xff]
    %v224 = vld [vmem:[#allocation5 + $0xf0] sm:$0xff]
    %v225 = vld [vmem:[#allocation5 + $0xf8] sm:$0xff]
    %v226 = vld [vmem:[#allocation5 + $0x100] sm:$0xff]
    %v227 = vld [vmem:[#allocation5 + $0x108] sm:$0xff]
    %v228 = vld [vmem:[#allocation5 + $0x110] sm:$0xff]
    %v229 = vld [vmem:[#allocation5 + $0x118] sm:$0xff]
    %v230 = vld [vmem:[#allocation5 + $0x120] sm:$0xff]
    %v231 = vld [vmem:[#allocation5 + $0x128] sm:$0xff]
    %v232 = vld [vmem:[#allocation5 + $0x130] sm:$0xff]
    %v233 = vld [vmem:[#allocation5 + $0x138] sm:$0xff]
    %v234 = vld [vmem:[#allocation5 + $0x140] sm:$0xff]
    %v235 = vld [vmem:[#allocation5 + $0x148] sm:$0xff]
    %v236 = vld [vmem:[#allocation5 + $0x150] sm:$0xff]
    %v237 = vld [vmem:[#allocation5 + $0x158] sm:$0xff]
    %v238 = vld [vmem:[#allocation5 + $0x160] sm:$0xff]
    %v239 = vld [vmem:[#allocation5 + $0x168] sm:$0xff]
    %v240 = vld [vmem:[#allocation5 + $0x170] sm:$0xff]
    %v241 = vld [vmem:[#allocation5 + $0x178] sm:$0xff]
    %v242 = vld [vmem:[#allocation5 + $0x180] sm:$0xff]
    %v243 = vld [vmem:[#allocation5 + $0x188] sm:$0xff]
    %v244 = vld [vmem:[#allocation5 + $0x190] sm:$0xff]
    %v245 = vld [vmem:[#allocation5 + $0x198] sm:$0xff]
    %v246 = vld [vmem:[#allocation5 + $0x1a0] sm:$0xff]
    %v247 = vld [vmem:[#allocation5 + $0x1a8] sm:$0xff]
    %v248 = vld [vmem:[#allocation5 + $0x1b0] sm:$0xff]
    %v249 = vld [vmem:[#allocation5 + $0x1b8] sm:$0xff]
    %v250 = vld [vmem:[#allocation5 + $0x1c0] sm:$0xff]
    %v251 = vld [vmem:[#allocation5 + $0x1c8] sm:$0xff]
    %v252 = vld [vmem:[#allocation5 + $0x1d0] sm:$0xff]
    %v253 = vld [vmem:[#allocation5 + $0x1d8] sm:$0xff]
    %v254 = vld [vmem:[#allocation5 + $0x1e0] sm:$0xff]
    %v255 = vld [vmem:[#allocation5 + $0x1e8] sm:$0xff]
    %v256 = vld [vmem:[#allocation5 + $0x1f0] sm:$0xff]
    %v257 = vld [vmem:[#allocation5 + $0x1f8] sm:$0xff]
    %v258 = vld [vmem:[#allocation5 + $0x200] sm:$0xff]
    %v259 = vld [vmem:[#allocation5 + $0x208] sm:$0xff]
    %v260 = vld [vmem:[#allocation5 + $0x210] sm:$0xff]
    %v261 = vld [vmem:[#allocation5 + $0x218] sm:$0xff]
    %v262 = vld [vmem:[#allocation5 + $0x220] sm:$0xff]
    %v263 = vld [vmem:[#allocation5 + $0x228] sm:$0xff]
    %v264 = vld [vmem:[#allocation5 + $0x230] sm:$0xff]
    %v265 = vld [vmem:[#allocation5 + $0x238] sm:$0xff]
    %v266 = vld [vmem:[#allocation5 + $0x240] sm:$0xff]
    %v267 = vld [vmem:[#allocation5 + $0x248] sm:$0xff]
    %v268 = vld [vmem:[#allocation5 + $0x250] sm:$0xff]
    %v269 = vld [vmem:[#allocation5 + $0x258] sm:$0xff]
    %v270 = vld [vmem:[#allocation5 + $0x260] sm:$0xff]
    %v271 = vld [vmem:[#allocation5 + $0x268] sm:$0xff]
    %v272 = vld [vmem:[#allocation5 + $0x270] sm:$0xff]
    %v273 = vld [vmem:[#allocation5 + $0x278] sm:$0xff]
    %v274 = vld [vmem:[#allocation5 + $0x280] sm:$0xff]
    %v275 = vld [vmem:[#allocation5 + $0x288] sm:$0xff]
    %v276 = vld [vmem:[#allocation5 + $0x290] sm:$0xff]
    %v277 = vld [vmem:[#allocation5 + $0x298] sm:$0xff]
    %v278 = vld [vmem:[#allocation5 + $0x2a0] sm:$0xff]
    %v279 = vld [vmem:[#allocation5 + $0x2a8] sm:$0xff]
    %v280 = vld [vmem:[#allocation5 + $0x2b0] sm:$0xff]
    %v281 = vld [vmem:[#allocation5 + $0x2b8] sm:$0xff]
    %v282 = vld [vmem:[#allocation5 + $0x2c0] sm:$0xff]
    %v283 = vld [vmem:[#allocation5 + $0x2c8] sm:$0xff]
    %v284 = vld [vmem:[#allocation5 + $0x2d0] sm:$0xff]
    %v285 = vld [vmem:[#allocation5 + $0x2d8] sm:$0xff]
    %v286 = vld [vmem:[#allocation5 + $0x2e0] sm:$0xff]
    %v287 = vld [vmem:[#allocation5 + $0x2e8] sm:$0xff]
    %v288 = vld [vmem:[#allocation5 + $0x2f0] sm:$0xff]
    %v289 = vld [vmem:[#allocation5 + $0x2f8] sm:$0xff]
    %v290 = vld [vmem:[#allocation5 + $0x300] sm:$0xff]
    %v291 = vld [vmem:[#allocation5 + $0x308] sm:$0xff]
    %v292 = vld [vmem:[#allocation5 + $0x310] sm:$0xff]
    %v293 = vld [vmem:[#allocation5 + $0x318] sm:$0xff]
    %v294 = vld [vmem:[#allocation5 + $0x320] sm:$0xff]
    %v295 = vld [vmem:[#allocation5 + $0x328] sm:$0xff]
    %v296 = vld [vmem:[#allocation5 + $0x330] sm:$0xff]
    %v297 = vld [vmem:[#allocation5 + $0x338] sm:$0xff]
    %v298 = vld [vmem:[#allocation5 + $0x340] sm:$0xff]
    %v299 = vld [vmem:[#allocation5 + $0x348] sm:$0xff]
    %v300 = vld [vmem:[#allocation5 + $0x350] sm:$0xff]
    %v301 = vld [vmem:[#allocation5 + $0x358] sm:$0xff]
    %v302 = vld [vmem:[#allocation5 + $0x360] sm:$0xff]
    %v303 = vld [vmem:[#allocation5 + $0x368] sm:$0xff]
    %v304 = vld [vmem:[#allocation5 + $0x370] sm:$0xff]
    %v305 = vld [vmem:[#allocation5 + $0x378] sm:$0xff]
    %v306 = vld [vmem:[#allocation5 + $0x380] sm:$0xff]
    %v307 = vld [vmem:[#allocation5 + $0x388] sm:$0xff]
    %v308 = vld [vmem:[#allocation5 + $0x390] sm:$0xff]
    %v309 = vld [vmem:[#allocation5 + $0x398] sm:$0xff]
    %v310 = vld [vmem:[#allocation5 + $0x3a0] sm:$0xff]
    %v311 = vld [vmem:[#allocation5 + $0x3a8] sm:$0xff]
    %v312 = vld [vmem:[#allocation5 + $0x3b0] sm:$0xff]
    %v313 = vld [vmem:[#allocation5 + $0x3b8] sm:$0xff]
    %v314 = vld [vmem:[#allocation5 + $0x3c0] sm:$0xff]
    %v315 = vld [vmem:[#allocation5 + $0x3c8] sm:$0xff]
    %v316 = vld [vmem:[#allocation5 + $0x3d0] sm:$0xff]
    %v317 = vld [vmem:[#allocation5 + $0x3d8] sm:$0xff]
    %v318 = vld [vmem:[#allocation5 + $0x3e0] sm:$0xff]
    %v319 = vld [vmem:[#allocation5 + $0x3e8] sm:$0xff]
    %v320 = vld [vmem:[#allocation5 + $0x3f0] sm:$0xff]
    %v321 = vld [vmem:[#allocation5 + $0x3f8] sm:$0xff]
    %v322 = vld [vmem:[#allocation5 + $0x400] sm:$0xff]
    %v323 = vld [vmem:[#allocation5 + $0x408] sm:$0xff]
    %v324 = vld [vmem:[#allocation5 + $0x410] sm:$0xff]
    %v325 = vld [vmem:[#allocation5 + $0x418] sm:$0xff]
    %v326 = vld [vmem:[#allocation5 + $0x420] sm:$0xff]
    %v327 = vld [vmem:[#allocation5 + $0x428] sm:$0xff]
    %v328 = vld [vmem:[#allocation5 + $0x430] sm:$0xff]
    %v329 = vld [vmem:[#allocation5 + $0x438] sm:$0xff]
    %v330 = vld [vmem:[#allocation5 + $0x440] sm:$0xff]
    %v331 = vld [vmem:[#allocation5 + $0x448] sm:$0xff]
    %v332 = vld [vmem:[#allocation5 + $0x450] sm:$0xff]
    %v333 = vld [vmem:[#allocation5 + $0x458] sm:$0xff]
    %v334 = vld [vmem:[#allocation5 + $0x460] sm:$0xff]
    %v335 = vld [vmem:[#allocation5 + $0x468] sm:$0xff]
    %v336 = vld [vmem:[#allocation5 + $0x470] sm:$0xff]
    %v337 = vld [vmem:[#allocation5 + $0x478] sm:$0xff]
    %v338 = vld [vmem:[#allocation5 + $0x480] sm:$0xff]
    %v339 = vld [vmem:[#allocation5 + $0x488] sm:$0xff]
    %v340 = vld [vmem:[#allocation5 + $0x490] sm:$0xff]
    %v341 = vld [vmem:[#allocation5 + $0x498] sm:$0xff]
    %v342 = vld [vmem:[#allocation5 + $0x4a0] sm:$0xff]
    %v343 = vld [vmem:[#allocation5 + $0x4a8] sm:$0xff]
    %v344 = vld [vmem:[#allocation5 + $0x4b0] sm:$0xff]
    %v345 = vld [vmem:[#allocation5 + $0x4b8] sm:$0xff]
    %v346 = vld [vmem:[#allocation5 + $0x4c0] sm:$0xff]
    %v347 = vld [vmem:[#allocation5 + $0x4c8] sm:$0xff]
    %v348 = vld [vmem:[#allocation5 + $0x4d0] sm:$0xff]
    %v349 = vld [vmem:[#allocation5 + $0x4d8] sm:$0xff]
    %v350 = vld [vmem:[#allocation5 + $0x4e0] sm:$0xff]
    %v351 = vld [vmem:[#allocation5 + $0x4e8] sm:$0xff]
    %v352 = vld [vmem:[#allocation5 + $0x4f0] sm:$0xff]
    %v353 = vld [vmem:[#allocation5 + $0x4f8] sm:$0xff]
    %v354 = vld [vmem:[#allocation5 + $0x500] sm:$0xff]
    %v355 = vld [vmem:[#allocation5 + $0x508] sm:$0xff]
    %v356 = vld [vmem:[#allocation5 + $0x510] sm:$0xff]
    %v357 = vld [vmem:[#allocation5 + $0x518] sm:$0xff]
    %v358 = vld [vmem:[#allocation5 + $0x520] sm:$0xff]
    %v359 = vld [vmem:[#allocation5 + $0x528] sm:$0xff]
    %v360 = vld [vmem:[#allocation5 + $0x530] sm:$0xff]
    %v361 = vld [vmem:[#allocation5 + $0x538] sm:$0xff]
    %v362 = vld [vmem:[#allocation5 + $0x540] sm:$0xff]
    %v363 = vld [vmem:[#allocation5 + $0x548] sm:$0xff]
    %v364 = vld [vmem:[#allocation5 + $0x550] sm:$0xff]
    %v365 = vld [vmem:[#allocation5 + $0x558] sm:$0xff]
    %v366 = vld [vmem:[#allocation5 + $0x560] sm:$0xff]
    %v367 = vld [vmem:[#allocation5 + $0x568] sm:$0xff]
    %v368 = vld [vmem:[#allocation5 + $0x570] sm:$0xff]
    %v369 = vld [vmem:[#allocation5 + $0x578] sm:$0xff]
    %v370 = vld [vmem:[#allocation5 + $0x580] sm:$0xff]
    %v371 = vld [vmem:[#allocation5 + $0x588] sm:$0xff]
    %v372 = vld [vmem:[#allocation5 + $0x590] sm:$0xff]
    %v373 = vld [vmem:[#allocation5 + $0x598] sm:$0xff]
    %v374 = vld [vmem:[#allocation5 + $0x5a0] sm:$0xff]
    %v375 = vld [vmem:[#allocation5 + $0x5a8] sm:$0xff]
    %v376 = vld [vmem:[#allocation5 + $0x5b0] sm:$0xff]
    %v377 = vld [vmem:[#allocation5 + $0x5b8] sm:$0xff]
    %v378 = vld [vmem:[#allocation5 + $0x5c0] sm:$0xff]
    %v379 = vld [vmem:[#allocation5 + $0x5c8] sm:$0xff]
    %v380 = vld [vmem:[#allocation5 + $0x5d0] sm:$0xff]
    %v381 = vld [vmem:[#allocation5 + $0x5d8] sm:$0xff]
    %v382 = vld [vmem:[#allocation5 + $0x5e0] sm:$0xff]
    %v383 = vld [vmem:[#allocation5 + $0x5e8] sm:$0xff]
    %v384 = vld [vmem:[#allocation5 + $0x5f0] sm:$0xff]
    %v385 = vld [vmem:[#allocation5 + $0x5f8] sm:$0xff]
    %v386 = vld [vmem:[#allocation5 + $0x600] sm:$0xff]
    %v387 = vld [vmem:[#allocation5 + $0x608] sm:$0xff]
    %v388 = vld [vmem:[#allocation5 + $0x610] sm:$0xff]
    %v389 = vld [vmem:[#allocation5 + $0x618] sm:$0xff]
    %v390 = vld [vmem:[#allocation5 + $0x620] sm:$0xff]
    %v391 = vld [vmem:[#allocation5 + $0x628] sm:$0xff]
    %v392 = vld [vmem:[#allocation5 + $0x630] sm:$0xff]
    %v393 = vld [vmem:[#allocation5 + $0x638] sm:$0xff]
    %v394 = vld [vmem:[#allocation5 + $0x640] sm:$0xff]
    %v395 = vld [vmem:[#allocation5 + $0x648] sm:$0xff]
    %v396 = vld [vmem:[#allocation5 + $0x650] sm:$0xff]
    %v397 = vld [vmem:[#allocation5 + $0x658] sm:$0xff]
    %v398 = vld [vmem:[#allocation5 + $0x660] sm:$0xff]
    %v399 = vld [vmem:[#allocation5 + $0x668] sm:$0xff]
    %v400 = vld [vmem:[#allocation5 + $0x670] sm:$0xff]
    %v401 = vld [vmem:[#allocation5 + $0x678] sm:$0xff]
    %v402 = vld [vmem:[#allocation7] sm:$0x3]
    %v404 = vperm.slane %v402, 0
    %v405 = vperm.slane %v402, 1
    %v520 = vunpack.c.l.b16 %v82
    %v521 = vunpack.c.h.b16 %v82
    %v522 = vunpack.c.l.b16 %v83
    %v523 = vunpack.c.h.b16 %v83
    %v524 = vunpack.c.l.b16 %v84
    %v525 = vunpack.c.h.b16 %v84
    %v526 = vunpack.c.l.b16 %v85
    %v527 = vunpack.c.h.b16 %v85
    %v528 = vunpack.c.l.b16 %v86
    %v529 = vunpack.c.h.b16 %v86
    %v530 = vunpack.c.l.b16 %v87
    %v531 = vunpack.c.h.b16 %v87
    %v532 = vunpack.c.l.b16 %v88
    %v533 = vunpack.c.l.b16 %v89
    %v534 = vunpack.c.h.b16 %v89
    %v535 = vunpack.c.l.b16 %v90
    %v536 = vunpack.c.h.b16 %v90
    %v537 = vunpack.c.l.b16 %v91
    %v538 = vunpack.c.h.b16 %v91
    %v539 = vunpack.c.l.b16 %v92
    %v540 = vunpack.c.h.b16 %v92
    %v541 = vunpack.c.l.b16 %v93
    %v542 = vunpack.c.h.b16 %v93
    %v543 = vunpack.c.l.b16 %v94
    %v544 = vunpack.c.h.b16 %v94
    %v545 = vunpack.c.l.b16 %v95
    %v546 = vunpack.c.l.b16 %v96
    %v547 = vunpack.c.h.b16 %v96
    %v548 = vunpack.c.l.b16 %v97
    %v549 = vunpack.c.h.b16 %v97
    %v550 = vunpack.c.l.b16 %v98
    %v551 = vunpack.c.h.b16 %v98
    %v552 = vunpack.c.l.b16 %v99
    %v553 = vunpack.c.h.b16 %v99
    %v554 = vunpack.c.l.b16 %v100
    %v555 = vunpack.c.h.b16 %v100
    %v556 = vunpack.c.l.b16 %v101
    %v557 = vunpack.c.h.b16 %v101
    %v558 = vunpack.c.l.b16 %v102
    %v559 = vunpack.c.l.b16 %v103
    %v560 = vunpack.c.h.b16 %v103
    %v561 = vunpack.c.l.b16 %v104
    %v562 = vunpack.c.h.b16 %v104
    %v563 = vunpack.c.l.b16 %v105
    %v564 = vunpack.c.h.b16 %v105
    %v565 = vunpack.c.l.b16 %v106
    %v566 = vunpack.c.h.b16 %v106
    %v567 = vunpack.c.l.b16 %v107
    %v568 = vunpack.c.h.b16 %v107
    %v569 = vunpack.c.l.b16 %v108
    %v570 = vunpack.c.h.b16 %v108
    %v571 = vunpack.c.l.b16 %v109
    %v572 = vunpack.c.l.b16 %v110
    %v573 = vunpack.c.h.b16 %v110
    %v574 = vunpack.c.l.b16 %v111
    %v575 = vunpack.c.h.b16 %v111
    %v576 = vunpack.c.l.b16 %v112
    %v577 = vunpack.c.h.b16 %v112
    %v578 = vunpack.c.l.b16 %v113
    %v579 = vunpack.c.h.b16 %v113
    %v580 = vunpack.c.l.b16 %v114
    %v581 = vunpack.c.h.b16 %v114
    %v582 = vunpack.c.l.b16 %v115
    %v583 = vunpack.c.h.b16 %v115
    %v584 = vunpack.c.l.b16 %v116
    %v585 = vunpack.c.l.b16 %v117
    %v586 = vunpack.c.h.b16 %v117
    %v587 = vunpack.c.l.b16 %v118
    %v588 = vunpack.c.h.b16 %v118
    %v589 = vunpack.c.l.b16 %v119
    %v590 = vunpack.c.h.b16 %v119
    %v591 = vunpack.c.l.b16 %v120
    %v592 = vunpack.c.h.b16 %v120
    %v593 = vunpack.c.l.b16 %v121
    %v594 = vunpack.c.h.b16 %v121
    %v595 = vunpack.c.l.b16 %v122
    %v596 = vunpack.c.h.b16 %v122
    %v597 = vunpack.c.l.b16 %v123
    %v598 = vunpack.c.l.b16 %v124
    %v599 = vunpack.c.h.b16 %v124
    %v600 = vunpack.c.l.b16 %v125
    %v601 = vunpack.c.h.b16 %v125
    %v602 = vunpack.c.l.b16 %v126
    %v603 = vunpack.c.h.b16 %v126
    %v604 = vunpack.c.l.b16 %v127
    %v605 = vunpack.c.h.b16 %v127
    %v606 = vunpack.c.l.b16 %v128
    %v607 = vunpack.c.h.b16 %v128
    %v608 = vunpack.c.l.b16 %v129
    %v609 = vunpack.c.h.b16 %v129
    %v610 = vunpack.c.l.b16 %v130
    %v611 = vunpack.c.l.b16 %v131
    %v612 = vunpack.c.h.b16 %v131
    %v613 = vunpack.c.l.b16 %v132
    %v614 = vunpack.c.h.b16 %v132
    %v615 = vunpack.c.l.b16 %v133
    %v616 = vunpack.c.h.b16 %v133
    %v617 = vunpack.c.l.b16 %v134
    %v618 = vunpack.c.h.b16 %v134
    %v619 = vunpack.c.l.b16 %v135
    %v620 = vunpack.c.h.b16 %v135
    %v621 = vunpack.c.l.b16 %v136
    %v622 = vunpack.c.h.b16 %v136
    %v623 = vunpack.c.l.b16 %v137
    %v624 = vunpack.c.l.b16 %v138
    %v625 = vunpack.c.h.b16 %v138
    %v626 = vunpack.c.l.b16 %v139
    %v627 = vunpack.c.h.b16 %v139
    %v628 = vunpack.c.l.b16 %v140
    %v629 = vunpack.c.h.b16 %v140
    %v630 = vunpack.c.l.b16 %v141
    %v631 = vunpack.c.h.b16 %v141
    %v632 = vunpack.c.l.b16 %v142
    %v633 = vunpack.c.h.b16 %v142
    %v634 = vunpack.c.l.b16 %v143
    %v635 = vunpack.c.h.b16 %v143
    %v636 = vunpack.c.l.b16 %v144
    %v637 = vunpack.c.l.b16 %v145
    %v638 = vunpack.c.h.b16 %v145
    %v639 = vunpack.c.l.b16 %v146
    %v640 = vunpack.c.h.b16 %v146
    %v641 = vunpack.c.l.b16 %v147
    %v642 = vunpack.c.h.b16 %v147
    %v643 = vunpack.c.l.b16 %v148
    %v644 = vunpack.c.h.b16 %v148
    %v645 = vunpack.c.l.b16 %v149
    %v646 = vunpack.c.h.b16 %v149
    %v647 = vunpack.c.l.b16 %v150
    %v648 = vunpack.c.h.b16 %v150
    %v649 = vunpack.c.l.b16 %v151
    %v650 = vunpack.c.l.b16 %v152
    %v651 = vunpack.c.h.b16 %v152
    %v652 = vunpack.c.l.b16 %v153
    %v653 = vunpack.c.h.b16 %v153
    %v654 = vunpack.c.l.b16 %v154
    %v655 = vunpack.c.h.b16 %v154
    %v656 = vunpack.c.l.b16 %v155
    %v657 = vunpack.c.h.b16 %v155
    %v658 = vunpack.c.l.b16 %v156
    %v659 = vunpack.c.h.b16 %v156
    %v660 = vunpack.c.l.b16 %v157
    %v661 = vunpack.c.h.b16 %v157
    %v662 = vunpack.c.l.b16 %v158
    %v663 = vunpack.c.l.b16 %v159
    %v664 = vunpack.c.h.b16 %v159
    %v665 = vunpack.c.l.b16 %v160
    %v666 = vunpack.c.h.b16 %v160
    %v667 = vunpack.c.l.b16 %v161
    %v668 = vunpack.c.h.b16 %v161
    %v669 = vunpack.c.l.b16 %v162
    %v670 = vunpack.c.h.b16 %v162
    %v671 = vunpack.c.l.b16 %v163
    %v672 = vunpack.c.h.b16 %v163
    %v673 = vunpack.c.l.b16 %v164
    %v674 = vunpack.c.h.b16 %v164
    %v675 = vunpack.c.l.b16 %v165
    %v676 = vunpack.c.l.b16 %v166
    %v677 = vunpack.c.h.b16 %v166
    %v678 = vunpack.c.l.b16 %v167
    %v679 = vunpack.c.h.b16 %v167
    %v680 = vunpack.c.l.b16 %v168
    %v681 = vunpack.c.h.b16 %v168
    %v682 = vunpack.c.l.b16 %v169
    %v683 = vunpack.c.h.b16 %v169
    %v684 = vunpack.c.l.b16 %v170
    %v685 = vunpack.c.h.b16 %v170
    %v686 = vunpack.c.l.b16 %v171
    %v687 = vunpack.c.h.b16 %v171
    %v688 = vunpack.c.l.b16 %v172
    %v689 = vunpack.c.l.b16 %v173
    %v690 = vunpack.c.h.b16 %v173
    %v691 = vunpack.c.l.b16 %v174
    %v692 = vunpack.c.h.b16 %v174
    %v693 = vunpack.c.l.b16 %v175
    %v694 = vunpack.c.h.b16 %v175
    %v695 = vunpack.c.l.b16 %v176
    %v696 = vunpack.c.h.b16 %v176
    %v697 = vunpack.c.l.b16 %v177
    %v698 = vunpack.c.h.b16 %v177
    %v699 = vunpack.c.l.b16 %v178
    %v700 = vunpack.c.h.b16 %v178
    %v701 = vunpack.c.l.b16 %v179
    %v702 = vunpack.c.l.b16 %v180
    %v703 = vunpack.c.h.b16 %v180
    %v704 = vunpack.c.l.b16 %v181
    %v705 = vunpack.c.h.b16 %v181
    %v706 = vunpack.c.l.b16 %v182
    %v707 = vunpack.c.h.b16 %v182
    %v708 = vunpack.c.l.b16 %v183
    %v709 = vunpack.c.h.b16 %v183
    %v710 = vunpack.c.l.b16 %v184
    %v711 = vunpack.c.h.b16 %v184
    %v712 = vunpack.c.l.b16 %v185
    %v713 = vunpack.c.h.b16 %v185
    %v714 = vunpack.c.l.b16 %v186
    %v715 = vunpack.c.l.b16 %v187
    %v716 = vunpack.c.h.b16 %v187
    %v717 = vunpack.c.l.b16 %v188
    %v718 = vunpack.c.h.b16 %v188
    %v719 = vunpack.c.l.b16 %v189
    %v720 = vunpack.c.h.b16 %v189
    %v721 = vunpack.c.l.b16 %v190
    %v722 = vunpack.c.h.b16 %v190
    %v723 = vunpack.c.l.b16 %v191
    %v724 = vunpack.c.h.b16 %v191
    %v725 = vunpack.c.l.b16 %v192
    %v726 = vunpack.c.h.b16 %v192
    %v727 = vunpack.c.l.b16 %v193
    %v728 = vpack.c.b16 %v533, %v520
    %v729 = vpack.c.b16 %v534, %v521
    %v730 = vpack.c.b16 %v535, %v522
    %v731 = vpack.c.b16 %v536, %v523
    %v732 = vpack.c.b16 %v537, %v524
    %v733 = vpack.c.b16 %v538, %v525
    %v734 = vpack.c.b16 %v539, %v526
    %v735 = vpack.c.b16 %v540, %v527
    %v736 = vpack.c.b16 %v541, %v528
    %v737 = vpack.c.b16 %v542, %v529
    %v738 = vpack.c.b16 %v543, %v530
    %v739 = vpack.c.b16 %v544, %v531
    %v740 = vpack.c.b16 %v545, %v532
    %v741 = vpack.c.b16 %v559, %v546
    %v742 = vpack.c.b16 %v560, %v547
    %v743 = vpack.c.b16 %v561, %v548
    %v744 = vpack.c.b16 %v562, %v549
    %v745 = vpack.c.b16 %v563, %v550
    %v746 = vpack.c.b16 %v564, %v551
    %v747 = vpack.c.b16 %v565, %v552
    %v748 = vpack.c.b16 %v566, %v553
    %v749 = vpack.c.b16 %v567, %v554
    %v750 = vpack.c.b16 %v568, %v555
    %v751 = vpack.c.b16 %v569, %v556
    %v752 = vpack.c.b16 %v570, %v557
    %v753 = vpack.c.b16 %v571, %v558
    %v754 = vpack.c.b16 %v585, %v572
    %v755 = vpack.c.b16 %v586, %v573
    %v756 = vpack.c.b16 %v587, %v574
    %v757 = vpack.c.b16 %v588, %v575
    %v758 = vpack.c.b16 %v589, %v576
    %v759 = vpack.c.b16 %v590, %v577
    %v760 = vpack.c.b16 %v591, %v578
    %v761 = vpack.c.b16 %v592, %v579
    %v762 = vpack.c.b16 %v593, %v580
    %v763 = vpack.c.b16 %v594, %v581
    %v764 = vpack.c.b16 %v595, %v582
    %v765 = vpack.c.b16 %v596, %v583
    %v766 = vpack.c.b16 %v597, %v584
    %v767 = vpack.c.b16 %v611, %v598
    %v768 = vpack.c.b16 %v612, %v599
    %v769 = vpack.c.b16 %v613, %v600
    %v770 = vpack.c.b16 %v614, %v601
    %v771 = vpack.c.b16 %v615, %v602
    %v772 = vpack.c.b16 %v616, %v603
    %v773 = vpack.c.b16 %v617, %v604
    %v774 = vpack.c.b16 %v618, %v605
    %v775 = vpack.c.b16 %v619, %v606
    %v776 = vpack.c.b16 %v620, %v607
    %v777 = vpack.c.b16 %v621, %v608
    %v778 = vpack.c.b16 %v622, %v609
    %v779 = vpack.c.b16 %v623, %v610
    %v780 = vpack.c.b16 %v637, %v624
    %v781 = vpack.c.b16 %v638, %v625
    %v782 = vpack.c.b16 %v639, %v626
    %v783 = vpack.c.b16 %v640, %v627
    %v784 = vpack.c.b16 %v641, %v628
    %v785 = vpack.c.b16 %v642, %v629
    %v786 = vpack.c.b16 %v643, %v630
    %v787 = vpack.c.b16 %v644, %v631
    %v788 = vpack.c.b16 %v645, %v632
    %v789 = vpack.c.b16 %v646, %v633
    %v790 = vpack.c.b16 %v647, %v634
    %v791 = vpack.c.b16 %v648, %v635
    %v792 = vpack.c.b16 %v649, %v636
    %v793 = vpack.c.b16 %v663, %v650
    %v794 = vpack.c.b16 %v664, %v651
    %v795 = vpack.c.b16 %v665, %v652
    %v796 = vpack.c.b16 %v666, %v653
    %v797 = vpack.c.b16 %v667, %v654
    %v798 = vpack.c.b16 %v668, %v655
    %v799 = vpack.c.b16 %v669, %v656
    %v800 = vpack.c.b16 %v670, %v657
    %v801 = vpack.c.b16 %v671, %v658
    %v802 = vpack.c.b16 %v672, %v659
    %v803 = vpack.c.b16 %v673, %v660
    %v804 = vpack.c.b16 %v674, %v661
    %v805 = vpack.c.b16 %v675, %v662
    %v806 = vpack.c.b16 %v689, %v676
    %v807 = vpack.c.b16 %v690, %v677
    %v808 = vpack.c.b16 %v691, %v678
    %v809 = vpack.c.b16 %v692, %v679
    %v810 = vpack.c.b16 %v693, %v680
    %v811 = vpack.c.b16 %v694, %v681
    %v812 = vpack.c.b16 %v695, %v682
    %v813 = vpack.c.b16 %v696, %v683
    %v814 = vpack.c.b16 %v697, %v684
    %v815 = vpack.c.b16 %v698, %v685
    %v816 = vpack.c.b16 %v699, %v686
    %v817 = vpack.c.b16 %v700, %v687
    %v818 = vpack.c.b16 %v701, %v688
    %v819 = vpack.c.b16 %v715, %v702
    %v820 = vpack.c.b16 %v716, %v703
    %v821 = vpack.c.b16 %v717, %v704
    %v822 = vpack.c.b16 %v718, %v705
    %v823 = vpack.c.b16 %v719, %v706
    %v824 = vpack.c.b16 %v720, %v707
    %v825 = vpack.c.b16 %v721, %v708
    %v826 = vpack.c.b16 %v722, %v709
    %v827 = vpack.c.b16 %v723, %v710
    %v828 = vpack.c.b16 %v724, %v711
    %v829 = vpack.c.b16 %v725, %v712
    %v830 = vpack.c.b16 %v726, %v713
    %v831 = vpack.c.b16 %v727, %v714
    %v1144 = vunpack.c.l.b16 %v194
    %v1145 = vunpack.c.h.b16 %v194
    %v1146 = vunpack.c.l.b16 %v195
    %v1147 = vunpack.c.h.b16 %v195
    %v1148 = vunpack.c.l.b16 %v196
    %v1149 = vunpack.c.h.b16 %v196
    %v1150 = vunpack.c.l.b16 %v197
    %v1151 = vunpack.c.h.b16 %v197
    %v1152 = vunpack.c.l.b16 %v198
    %v1153 = vunpack.c.h.b16 %v198
    %v1154 = vunpack.c.l.b16 %v199
    %v1155 = vunpack.c.h.b16 %v199
    %v1156 = vunpack.c.l.b16 %v200
    %v1157 = vunpack.c.h.b16 %v200
    %v1158 = vunpack.c.l.b16 %v201
    %v1159 = vunpack.c.h.b16 %v201
    %v1160 = vunpack.c.l.b16 %v202
    %v1161 = vunpack.c.h.b16 %v202
    %v1162 = vunpack.c.l.b16 %v203
    %v1163 = vunpack.c.h.b16 %v203
    %v1164 = vunpack.c.l.b16 %v204
    %v1165 = vunpack.c.h.b16 %v204
    %v1166 = vunpack.c.l.b16 %v205
    %v1167 = vunpack.c.h.b16 %v205
    %v1168 = vunpack.c.l.b16 %v206
    %v1169 = vunpack.c.h.b16 %v206
    %v1170 = vunpack.c.l.b16 %v207
    %v1171 = vunpack.c.h.b16 %v207
    %v1172 = vunpack.c.l.b16 %v208
    %v1173 = vunpack.c.h.b16 %v208
    %v1174 = vunpack.c.l.b16 %v209
    %v1175 = vunpack.c.h.b16 %v209
    %v1176 = vunpack.c.l.b16 %v210
    %v1177 = vunpack.c.h.b16 %v210
    %v1178 = vunpack.c.l.b16 %v211
    %v1179 = vunpack.c.h.b16 %v211
    %v1180 = vunpack.c.l.b16 %v212
    %v1181 = vunpack.c.h.b16 %v212
    %v1182 = vunpack.c.l.b16 %v213
    %v1183 = vunpack.c.h.b16 %v213
    %v1184 = vunpack.c.l.b16 %v214
    %v1185 = vunpack.c.h.b16 %v214
    %v1186 = vunpack.c.l.b16 %v215
    %v1187 = vunpack.c.h.b16 %v215
    %v1188 = vunpack.c.l.b16 %v216
    %v1189 = vunpack.c.h.b16 %v216
    %v1190 = vunpack.c.l.b16 %v217
    %v1191 = vunpack.c.h.b16 %v217
    %v1192 = vunpack.c.l.b16 %v218
    %v1193 = vunpack.c.h.b16 %v218
    %v1194 = vunpack.c.l.b16 %v219
    %v1195 = vunpack.c.h.b16 %v219
    %v1196 = vunpack.c.l.b16 %v220
    %v1197 = vunpack.c.h.b16 %v220
    %v1198 = vunpack.c.l.b16 %v221
    %v1199 = vunpack.c.h.b16 %v221
    %v1200 = vunpack.c.l.b16 %v222
    %v1201 = vunpack.c.h.b16 %v222
    %v1202 = vunpack.c.l.b16 %v223
    %v1203 = vunpack.c.h.b16 %v223
    %v1204 = vunpack.c.l.b16 %v224
    %v1205 = vunpack.c.h.b16 %v224
    %v1206 = vunpack.c.l.b16 %v225
    %v1207 = vunpack.c.h.b16 %v225
    %v1208 = vunpack.c.l.b16 %v226
    %v1209 = vunpack.c.h.b16 %v226
    %v1210 = vunpack.c.l.b16 %v227
    %v1211 = vunpack.c.h.b16 %v227
    %v1212 = vunpack.c.l.b16 %v228
    %v1213 = vunpack.c.h.b16 %v228
    %v1214 = vunpack.c.l.b16 %v229
    %v1215 = vunpack.c.h.b16 %v229
    %v1216 = vunpack.c.l.b16 %v230
    %v1217 = vunpack.c.h.b16 %v230
    %v1218 = vunpack.c.l.b16 %v231
    %v1219 = vunpack.c.h.b16 %v231
    %v1220 = vunpack.c.l.b16 %v232
    %v1221 = vunpack.c.h.b16 %v232
    %v1222 = vunpack.c.l.b16 %v233
    %v1223 = vunpack.c.h.b16 %v233
    %v1224 = vunpack.c.l.b16 %v234
    %v1225 = vunpack.c.h.b16 %v234
    %v1226 = vunpack.c.l.b16 %v235
    %v1227 = vunpack.c.h.b16 %v235
    %v1228 = vunpack.c.l.b16 %v236
    %v1229 = vunpack.c.h.b16 %v236
    %v1230 = vunpack.c.l.b16 %v237
    %v1231 = vunpack.c.h.b16 %v237
    %v1232 = vunpack.c.l.b16 %v238
    %v1233 = vunpack.c.h.b16 %v238
    %v1234 = vunpack.c.l.b16 %v239
    %v1235 = vunpack.c.h.b16 %v239
    %v1236 = vunpack.c.l.b16 %v240
    %v1237 = vunpack.c.h.b16 %v240
    %v1238 = vunpack.c.l.b16 %v241
    %v1239 = vunpack.c.h.b16 %v241
    %v1240 = vunpack.c.l.b16 %v242
    %v1241 = vunpack.c.h.b16 %v242
    %v1242 = vunpack.c.l.b16 %v243
    %v1243 = vunpack.c.h.b16 %v243
    %v1244 = vunpack.c.l.b16 %v244
    %v1245 = vunpack.c.h.b16 %v244
    %v1246 = vunpack.c.l.b16 %v245
    %v1247 = vunpack.c.h.b16 %v245
    %v1248 = vunpack.c.l.b16 %v246
    %v1249 = vunpack.c.h.b16 %v246
    %v1250 = vunpack.c.l.b16 %v247
    %v1251 = vunpack.c.h.b16 %v247
    %v1252 = vunpack.c.l.b16 %v248
    %v1253 = vunpack.c.h.b16 %v248
    %v1254 = vunpack.c.l.b16 %v249
    %v1255 = vunpack.c.h.b16 %v249
    %v1256 = vunpack.c.l.b16 %v250
    %v1257 = vunpack.c.h.b16 %v250
    %v1258 = vunpack.c.l.b16 %v251
    %v1259 = vunpack.c.h.b16 %v251
    %v1260 = vunpack.c.l.b16 %v252
    %v1261 = vunpack.c.h.b16 %v252
    %v1262 = vunpack.c.l.b16 %v253
    %v1263 = vunpack.c.h.b16 %v253
    %v1264 = vunpack.c.l.b16 %v254
    %v1265 = vunpack.c.h.b16 %v254
    %v1266 = vunpack.c.l.b16 %v255
    %v1267 = vunpack.c.h.b16 %v255
    %v1268 = vunpack.c.l.b16 %v256
    %v1269 = vunpack.c.h.b16 %v256
    %v1270 = vunpack.c.l.b16 %v257
    %v1271 = vunpack.c.h.b16 %v257
    %v1272 = vunpack.c.l.b16 %v258
    %v1273 = vunpack.c.h.b16 %v258
    %v1274 = vunpack.c.l.b16 %v259
    %v1275 = vunpack.c.h.b16 %v259
    %v1276 = vunpack.c.l.b16 %v260
    %v1277 = vunpack.c.h.b16 %v260
    %v1278 = vunpack.c.l.b16 %v261
    %v1279 = vunpack.c.h.b16 %v261
    %v1280 = vunpack.c.l.b16 %v262
    %v1281 = vunpack.c.h.b16 %v262
    %v1282 = vunpack.c.l.b16 %v263
    %v1283 = vunpack.c.h.b16 %v263
    %v1284 = vunpack.c.l.b16 %v264
    %v1285 = vunpack.c.h.b16 %v264
    %v1286 = vunpack.c.l.b16 %v265
    %v1287 = vunpack.c.h.b16 %v265
    %v1288 = vunpack.c.l.b16 %v266
    %v1289 = vunpack.c.h.b16 %v266
    %v1290 = vunpack.c.l.b16 %v267
    %v1291 = vunpack.c.h.b16 %v267
    %v1292 = vunpack.c.l.b16 %v268
    %v1293 = vunpack.c.h.b16 %v268
    %v1294 = vunpack.c.l.b16 %v269
    %v1295 = vunpack.c.h.b16 %v269
    %v1296 = vunpack.c.l.b16 %v270
    %v1297 = vunpack.c.h.b16 %v270
    %v1298 = vunpack.c.l.b16 %v271
    %v1299 = vunpack.c.h.b16 %v271
    %v1300 = vunpack.c.l.b16 %v272
    %v1301 = vunpack.c.h.b16 %v272
    %v1302 = vunpack.c.l.b16 %v273
    %v1303 = vunpack.c.h.b16 %v273
    %v1304 = vunpack.c.l.b16 %v274
    %v1305 = vunpack.c.h.b16 %v274
    %v1306 = vunpack.c.l.b16 %v275
    %v1307 = vunpack.c.h.b16 %v275
    %v1308 = vunpack.c.l.b16 %v276
    %v1309 = vunpack.c.h.b16 %v276
    %v1310 = vunpack.c.l.b16 %v277
    %v1311 = vunpack.c.h.b16 %v277
    %v1312 = vunpack.c.l.b16 %v278
    %v1313 = vunpack.c.h.b16 %v278
    %v1314 = vunpack.c.l.b16 %v279
    %v1315 = vunpack.c.h.b16 %v279
    %v1316 = vunpack.c.l.b16 %v280
    %v1317 = vunpack.c.h.b16 %v280
    %v1318 = vunpack.c.l.b16 %v281
    %v1319 = vunpack.c.h.b16 %v281
    %v1320 = vunpack.c.l.b16 %v282
    %v1321 = vunpack.c.h.b16 %v282
    %v1322 = vunpack.c.l.b16 %v283
    %v1323 = vunpack.c.h.b16 %v283
    %v1324 = vunpack.c.l.b16 %v284
    %v1325 = vunpack.c.h.b16 %v284
    %v1326 = vunpack.c.l.b16 %v285
    %v1327 = vunpack.c.h.b16 %v285
    %v1328 = vunpack.c.l.b16 %v286
    %v1329 = vunpack.c.h.b16 %v286
    %v1330 = vunpack.c.l.b16 %v287
    %v1331 = vunpack.c.h.b16 %v287
    %v1332 = vunpack.c.l.b16 %v288
    %v1333 = vunpack.c.h.b16 %v288
    %v1334 = vunpack.c.l.b16 %v289
    %v1335 = vunpack.c.h.b16 %v289
    %v1336 = vunpack.c.l.b16 %v290
    %v1337 = vunpack.c.h.b16 %v290
    %v1338 = vunpack.c.l.b16 %v291
    %v1339 = vunpack.c.h.b16 %v291
    %v1340 = vunpack.c.l.b16 %v292
    %v1341 = vunpack.c.h.b16 %v292
    %v1342 = vunpack.c.l.b16 %v293
    %v1343 = vunpack.c.h.b16 %v293
    %v1344 = vunpack.c.l.b16 %v294
    %v1345 = vunpack.c.h.b16 %v294
    %v1346 = vunpack.c.l.b16 %v295
    %v1347 = vunpack.c.h.b16 %v295
    %v1348 = vunpack.c.l.b16 %v296
    %v1349 = vunpack.c.h.b16 %v296
    %v1350 = vunpack.c.l.b16 %v297
    %v1351 = vunpack.c.h.b16 %v297
    %v1352 = vunpack.c.l.b16 %v298
    %v1353 = vunpack.c.h.b16 %v298
    %v1354 = vunpack.c.l.b16 %v299
    %v1355 = vunpack.c.h.b16 %v299
    %v1356 = vunpack.c.l.b16 %v300
    %v1357 = vunpack.c.h.b16 %v300
    %v1358 = vunpack.c.l.b16 %v301
    %v1359 = vunpack.c.h.b16 %v301
    %v1360 = vunpack.c.l.b16 %v302
    %v1361 = vunpack.c.h.b16 %v302
    %v1362 = vunpack.c.l.b16 %v303
    %v1363 = vunpack.c.h.b16 %v303
    %v1364 = vunpack.c.l.b16 %v304
    %v1365 = vunpack.c.h.b16 %v304
    %v1366 = vunpack.c.l.b16 %v305
    %v1367 = vunpack.c.h.b16 %v305
    %v1368 = vunpack.c.l.b16 %v306
    %v1369 = vunpack.c.h.b16 %v306
    %v1370 = vunpack.c.l.b16 %v307
    %v1371 = vunpack.c.h.b16 %v307
    %v1372 = vunpack.c.l.b16 %v308
    %v1373 = vunpack.c.h.b16 %v308
    %v1374 = vunpack.c.l.b16 %v309
    %v1375 = vunpack.c.h.b16 %v309
    %v1376 = vunpack.c.l.b16 %v310
    %v1377 = vunpack.c.h.b16 %v310
    %v1378 = vunpack.c.l.b16 %v311
    %v1379 = vunpack.c.h.b16 %v311
    %v1380 = vunpack.c.l.b16 %v312
    %v1381 = vunpack.c.h.b16 %v312
    %v1382 = vunpack.c.l.b16 %v313
    %v1383 = vunpack.c.h.b16 %v313
    %v1384 = vunpack.c.l.b16 %v314
    %v1385 = vunpack.c.h.b16 %v314
    %v1386 = vunpack.c.l.b16 %v315
    %v1387 = vunpack.c.h.b16 %v315
    %v1388 = vunpack.c.l.b16 %v316
    %v1389 = vunpack.c.h.b16 %v316
    %v1390 = vunpack.c.l.b16 %v317
    %v1391 = vunpack.c.h.b16 %v317
    %v1392 = vunpack.c.l.b16 %v318
    %v1393 = vunpack.c.h.b16 %v318
    %v1394 = vunpack.c.l.b16 %v319
    %v1395 = vunpack.c.h.b16 %v319
    %v1396 = vunpack.c.l.b16 %v320
    %v1397 = vunpack.c.h.b16 %v320
    %v1398 = vunpack.c.l.b16 %v321
    %v1399 = vunpack.c.h.b16 %v321
    %v1400 = vunpack.c.l.b16 %v322
    %v1401 = vunpack.c.h.b16 %v322
    %v1402 = vunpack.c.l.b16 %v323
    %v1403 = vunpack.c.h.b16 %v323
    %v1404 = vunpack.c.l.b16 %v324
    %v1405 = vunpack.c.h.b16 %v324
    %v1406 = vunpack.c.l.b16 %v325
    %v1407 = vunpack.c.h.b16 %v325
    %v1408 = vunpack.c.l.b16 %v326
    %v1409 = vunpack.c.h.b16 %v326
    %v1410 = vunpack.c.l.b16 %v327
    %v1411 = vunpack.c.h.b16 %v327
    %v1412 = vunpack.c.l.b16 %v328
    %v1413 = vunpack.c.h.b16 %v328
    %v1414 = vunpack.c.l.b16 %v329
    %v1415 = vunpack.c.h.b16 %v329
    %v1416 = vunpack.c.l.b16 %v330
    %v1417 = vunpack.c.h.b16 %v330
    %v1418 = vunpack.c.l.b16 %v331
    %v1419 = vunpack.c.h.b16 %v331
    %v1420 = vunpack.c.l.b16 %v332
    %v1421 = vunpack.c.h.b16 %v332
    %v1422 = vunpack.c.l.b16 %v333
    %v1423 = vunpack.c.h.b16 %v333
    %v1424 = vunpack.c.l.b16 %v334
    %v1425 = vunpack.c.h.b16 %v334
    %v1426 = vunpack.c.l.b16 %v335
    %v1427 = vunpack.c.h.b16 %v335
    %v1428 = vunpack.c.l.b16 %v336
    %v1429 = vunpack.c.h.b16 %v336
    %v1430 = vunpack.c.l.b16 %v337
    %v1431 = vunpack.c.h.b16 %v337
    %v1432 = vunpack.c.l.b16 %v338
    %v1433 = vunpack.c.h.b16 %v338
    %v1434 = vunpack.c.l.b16 %v339
    %v1435 = vunpack.c.h.b16 %v339
    %v1436 = vunpack.c.l.b16 %v340
    %v1437 = vunpack.c.h.b16 %v340
    %v1438 = vunpack.c.l.b16 %v341
    %v1439 = vunpack.c.h.b16 %v341
    %v1440 = vunpack.c.l.b16 %v342
    %v1441 = vunpack.c.h.b16 %v342
    %v1442 = vunpack.c.l.b16 %v343
    %v1443 = vunpack.c.h.b16 %v343
    %v1444 = vunpack.c.l.b16 %v344
    %v1445 = vunpack.c.h.b16 %v344
    %v1446 = vunpack.c.l.b16 %v345
    %v1447 = vunpack.c.h.b16 %v345
    %v1448 = vunpack.c.l.b16 %v346
    %v1449 = vunpack.c.h.b16 %v346
    %v1450 = vunpack.c.l.b16 %v347
    %v1451 = vunpack.c.h.b16 %v347
    %v1452 = vunpack.c.l.b16 %v348
    %v1453 = vunpack.c.h.b16 %v348
    %v1454 = vunpack.c.l.b16 %v349
    %v1455 = vunpack.c.h.b16 %v349
    %v1456 = vunpack.c.l.b16 %v350
    %v1457 = vunpack.c.h.b16 %v350
    %v1458 = vunpack.c.l.b16 %v351
    %v1459 = vunpack.c.h.b16 %v351
    %v1460 = vunpack.c.l.b16 %v352
    %v1461 = vunpack.c.h.b16 %v352
    %v1462 = vunpack.c.l.b16 %v353
    %v1463 = vunpack.c.h.b16 %v353
    %v1464 = vunpack.c.l.b16 %v354
    %v1465 = vunpack.c.h.b16 %v354
    %v1466 = vunpack.c.l.b16 %v355
    %v1467 = vunpack.c.h.b16 %v355
    %v1468 = vunpack.c.l.b16 %v356
    %v1469 = vunpack.c.h.b16 %v356
    %v1470 = vunpack.c.l.b16 %v357
    %v1471 = vunpack.c.h.b16 %v357
    %v1472 = vunpack.c.l.b16 %v358
    %v1473 = vunpack.c.h.b16 %v358
    %v1474 = vunpack.c.l.b16 %v359
    %v1475 = vunpack.c.h.b16 %v359
    %v1476 = vunpack.c.l.b16 %v360
    %v1477 = vunpack.c.h.b16 %v360
    %v1478 = vunpack.c.l.b16 %v361
    %v1479 = vunpack.c.h.b16 %v361
    %v1480 = vunpack.c.l.b16 %v362
    %v1481 = vunpack.c.h.b16 %v362
    %v1482 = vunpack.c.l.b16 %v363
    %v1483 = vunpack.c.h.b16 %v363
    %v1484 = vunpack.c.l.b16 %v364
    %v1485 = vunpack.c.h.b16 %v364
    %v1486 = vunpack.c.l.b16 %v365
    %v1487 = vunpack.c.h.b16 %v365
    %v1488 = vunpack.c.l.b16 %v366
    %v1489 = vunpack.c.h.b16 %v366
    %v1490 = vunpack.c.l.b16 %v367
    %v1491 = vunpack.c.h.b16 %v367
    %v1492 = vunpack.c.l.b16 %v368
    %v1493 = vunpack.c.h.b16 %v368
    %v1494 = vunpack.c.l.b16 %v369
    %v1495 = vunpack.c.h.b16 %v369
    %v1496 = vunpack.c.l.b16 %v370
    %v1497 = vunpack.c.h.b16 %v370
    %v1498 = vunpack.c.l.b16 %v371
    %v1499 = vunpack.c.h.b16 %v371
    %v1500 = vunpack.c.l.b16 %v372
    %v1501 = vunpack.c.h.b16 %v372
    %v1502 = vunpack.c.l.b16 %v373
    %v1503 = vunpack.c.h.b16 %v373
    %v1504 = vunpack.c.l.b16 %v374
    %v1505 = vunpack.c.h.b16 %v374
    %v1506 = vunpack.c.l.b16 %v375
    %v1507 = vunpack.c.h.b16 %v375
    %v1508 = vunpack.c.l.b16 %v376
    %v1509 = vunpack.c.h.b16 %v376
    %v1510 = vunpack.c.l.b16 %v377
    %v1511 = vunpack.c.h.b16 %v377
    %v1512 = vunpack.c.l.b16 %v378
    %v1513 = vunpack.c.h.b16 %v378
    %v1514 = vunpack.c.l.b16 %v379
    %v1515 = vunpack.c.h.b16 %v379
    %v1516 = vunpack.c.l.b16 %v380
    %v1517 = vunpack.c.h.b16 %v380
    %v1518 = vunpack.c.l.b16 %v381
    %v1519 = vunpack.c.h.b16 %v381
    %v1520 = vunpack.c.l.b16 %v382
    %v1521 = vunpack.c.h.b16 %v382
    %v1522 = vunpack.c.l.b16 %v383
    %v1523 = vunpack.c.h.b16 %v383
    %v1524 = vunpack.c.l.b16 %v384
    %v1525 = vunpack.c.h.b16 %v384
    %v1526 = vunpack.c.l.b16 %v385
    %v1527 = vunpack.c.h.b16 %v385
    %v1528 = vunpack.c.l.b16 %v386
    %v1529 = vunpack.c.h.b16 %v386
    %v1530 = vunpack.c.l.b16 %v387
    %v1531 = vunpack.c.h.b16 %v387
    %v1532 = vunpack.c.l.b16 %v388
    %v1533 = vunpack.c.h.b16 %v388
    %v1534 = vunpack.c.l.b16 %v389
    %v1535 = vunpack.c.h.b16 %v389
    %v1536 = vunpack.c.l.b16 %v390
    %v1537 = vunpack.c.h.b16 %v390
    %v1538 = vunpack.c.l.b16 %v391
    %v1539 = vunpack.c.h.b16 %v391
    %v1540 = vunpack.c.l.b16 %v392
    %v1541 = vunpack.c.h.b16 %v392
    %v1542 = vunpack.c.l.b16 %v393
    %v1543 = vunpack.c.h.b16 %v393
    %v1544 = vunpack.c.l.b16 %v394
    %v1545 = vunpack.c.h.b16 %v394
    %v1546 = vunpack.c.l.b16 %v395
    %v1547 = vunpack.c.h.b16 %v395
    %v1548 = vunpack.c.l.b16 %v396
    %v1549 = vunpack.c.h.b16 %v396
    %v1550 = vunpack.c.l.b16 %v397
    %v1551 = vunpack.c.h.b16 %v397
    %v1552 = vunpack.c.l.b16 %v398
    %v1553 = vunpack.c.h.b16 %v398
    %v1554 = vunpack.c.l.b16 %v399
    %v1555 = vunpack.c.h.b16 %v399
    %v1556 = vunpack.c.l.b16 %v400
    %v1557 = vunpack.c.h.b16 %v400
    %v1558 = vunpack.c.l.b16 %v401
    %v1559 = vunpack.c.h.b16 %v401
    %v1560 = vpack.c.b16 %v1146, %v1144
    %v1561 = vpack.c.b16 %v1147, %v1145
    %v1562 = vpack.c.b16 %v1150, %v1148
    %v1563 = vpack.c.b16 %v1151, %v1149
    %v1564 = vpack.c.b16 %v1154, %v1152
    %v1565 = vpack.c.b16 %v1155, %v1153
    %v1566 = vpack.c.b16 %v1158, %v1156
    %v1567 = vpack.c.b16 %v1159, %v1157
    %v1568 = vpack.c.b16 %v1162, %v1160
    %v1569 = vpack.c.b16 %v1163, %v1161
    %v1570 = vpack.c.b16 %v1166, %v1164
    %v1571 = vpack.c.b16 %v1167, %v1165
    %v1572 = vpack.c.b16 %v1170, %v1168
    %v1573 = vpack.c.b16 %v1171, %v1169
    %v1574 = vpack.c.b16 %v1174, %v1172
    %v1575 = vpack.c.b16 %v1175, %v1173
    %v1576 = vpack.c.b16 %v1178, %v1176
    %v1577 = vpack.c.b16 %v1179, %v1177
    %v1578 = vpack.c.b16 %v1182, %v1180
    %v1579 = vpack.c.b16 %v1183, %v1181
    %v1580 = vpack.c.b16 %v1186, %v1184
    %v1581 = vpack.c.b16 %v1187, %v1185
    %v1582 = vpack.c.b16 %v1190, %v1188
    %v1583 = vpack.c.b16 %v1191, %v1189
    %v1584 = vpack.c.b16 %v1194, %v1192
    %v1585 = vpack.c.b16 %v1195, %v1193
    %v1586 = vpack.c.b16 %v1198, %v1196
    %v1587 = vpack.c.b16 %v1199, %v1197
    %v1588 = vpack.c.b16 %v1202, %v1200
    %v1589 = vpack.c.b16 %v1203, %v1201
    %v1590 = vpack.c.b16 %v1206, %v1204
    %v1591 = vpack.c.b16 %v1207, %v1205
    %v1592 = vpack.c.b16 %v1210, %v1208
    %v1593 = vpack.c.b16 %v1211, %v1209
    %v1594 = vpack.c.b16 %v1214, %v1212
    %v1595 = vpack.c.b16 %v1215, %v1213
    %v1596 = vpack.c.b16 %v1218, %v1216
    %v1597 = vpack.c.b16 %v1219, %v1217
    %v1598 = vpack.c.b16 %v1222, %v1220
    %v1599 = vpack.c.b16 %v1223, %v1221
    %v1600 = vpack.c.b16 %v1226, %v1224
    %v1601 = vpack.c.b16 %v1227, %v1225
    %v1602 = vpack.c.b16 %v1230, %v1228
    %v1603 = vpack.c.b16 %v1231, %v1229
    %v1604 = vpack.c.b16 %v1234, %v1232
    %v1605 = vpack.c.b16 %v1235, %v1233
    %v1606 = vpack.c.b16 %v1238, %v1236
    %v1607 = vpack.c.b16 %v1239, %v1237
    %v1608 = vpack.c.b16 %v1242, %v1240
    %v1609 = vpack.c.b16 %v1243, %v1241
    %v1610 = vpack.c.b16 %v1246, %v1244
    %v1611 = vpack.c.b16 %v1247, %v1245
    %v1612 = vpack.c.b16 %v1250, %v1248
    %v1613 = vpack.c.b16 %v1251, %v1249
    %v1614 = vpack.c.b16 %v1254, %v1252
    %v1615 = vpack.c.b16 %v1255, %v1253
    %v1616 = vpack.c.b16 %v1258, %v1256
    %v1617 = vpack.c.b16 %v1259, %v1257
    %v1618 = vpack.c.b16 %v1262, %v1260
    %v1619 = vpack.c.b16 %v1263, %v1261
    %v1620 = vpack.c.b16 %v1266, %v1264
    %v1621 = vpack.c.b16 %v1267, %v1265
    %v1622 = vpack.c.b16 %v1270, %v1268
    %v1623 = vpack.c.b16 %v1271, %v1269
    %v1624 = vpack.c.b16 %v1274, %v1272
    %v1625 = vpack.c.b16 %v1275, %v1273
    %v1626 = vpack.c.b16 %v1278, %v1276
    %v1627 = vpack.c.b16 %v1279, %v1277
    %v1628 = vpack.c.b16 %v1282, %v1280
    %v1629 = vpack.c.b16 %v1283, %v1281
    %v1630 = vpack.c.b16 %v1286, %v1284
    %v1631 = vpack.c.b16 %v1287, %v1285
    %v1632 = vpack.c.b16 %v1290, %v1288
    %v1633 = vpack.c.b16 %v1291, %v1289
    %v1634 = vpack.c.b16 %v1294, %v1292
    %v1635 = vpack.c.b16 %v1295, %v1293
    %v1636 = vpack.c.b16 %v1298, %v1296
    %v1637 = vpack.c.b16 %v1299, %v1297
    %v1638 = vpack.c.b16 %v1302, %v1300
    %v1639 = vpack.c.b16 %v1303, %v1301
    %v1640 = vpack.c.b16 %v1306, %v1304
    %v1641 = vpack.c.b16 %v1307, %v1305
    %v1642 = vpack.c.b16 %v1310, %v1308
    %v1643 = vpack.c.b16 %v1311, %v1309
    %v1644 = vpack.c.b16 %v1314, %v1312
    %v1645 = vpack.c.b16 %v1315, %v1313
    %v1646 = vpack.c.b16 %v1318, %v1316
    %v1647 = vpack.c.b16 %v1319, %v1317
    %v1648 = vpack.c.b16 %v1322, %v1320
    %v1649 = vpack.c.b16 %v1323, %v1321
    %v1650 = vpack.c.b16 %v1326, %v1324
    %v1651 = vpack.c.b16 %v1327, %v1325
    %v1652 = vpack.c.b16 %v1330, %v1328
    %v1653 = vpack.c.b16 %v1331, %v1329
    %v1654 = vpack.c.b16 %v1334, %v1332
    %v1655 = vpack.c.b16 %v1335, %v1333
    %v1656 = vpack.c.b16 %v1338, %v1336
    %v1657 = vpack.c.b16 %v1339, %v1337
    %v1658 = vpack.c.b16 %v1342, %v1340
    %v1659 = vpack.c.b16 %v1343, %v1341
    %v1660 = vpack.c.b16 %v1346, %v1344
    %v1661 = vpack.c.b16 %v1347, %v1345
    %v1662 = vpack.c.b16 %v1350, %v1348
    %v1663 = vpack.c.b16 %v1351, %v1349
    %v1664 = vpack.c.b16 %v1354, %v1352
    %v1665 = vpack.c.b16 %v1355, %v1353
    %v1666 = vpack.c.b16 %v1358, %v1356
    %v1667 = vpack.c.b16 %v1359, %v1357
    %v1668 = vpack.c.b16 %v1362, %v1360
    %v1669 = vpack.c.b16 %v1363, %v1361
    %v1670 = vpack.c.b16 %v1366, %v1364
    %v1671 = vpack.c.b16 %v1367, %v1365
    %v1672 = vpack.c.b16 %v1370, %v1368
    %v1673 = vpack.c.b16 %v1371, %v1369
    %v1674 = vpack.c.b16 %v1374, %v1372
    %v1675 = vpack.c.b16 %v1375, %v1373
    %v1676 = vpack.c.b16 %v1378, %v1376
    %v1677 = vpack.c.b16 %v1379, %v1377
    %v1678 = vpack.c.b16 %v1382, %v1380
    %v1679 = vpack.c.b16 %v1383, %v1381
    %v1680 = vpack.c.b16 %v1386, %v1384
    %v1681 = vpack.c.b16 %v1387, %v1385
    %v1682 = vpack.c.b16 %v1390, %v1388
    %v1683 = vpack.c.b16 %v1391, %v1389
    %v1684 = vpack.c.b16 %v1394, %v1392
    %v1685 = vpack.c.b16 %v1395, %v1393
    %v1686 = vpack.c.b16 %v1398, %v1396
    %v1687 = vpack.c.b16 %v1399, %v1397
    %v1688 = vpack.c.b16 %v1402, %v1400
    %v1689 = vpack.c.b16 %v1403, %v1401
    %v1690 = vpack.c.b16 %v1406, %v1404
    %v1691 = vpack.c.b16 %v1407, %v1405
    %v1692 = vpack.c.b16 %v1410, %v1408
    %v1693 = vpack.c.b16 %v1411, %v1409
    %v1694 = vpack.c.b16 %v1414, %v1412
    %v1695 = vpack.c.b16 %v1415, %v1413
    %v1696 = vpack.c.b16 %v1418, %v1416
    %v1697 = vpack.c.b16 %v1419, %v1417
    %v1698 = vpack.c.b16 %v1422, %v1420
    %v1699 = vpack.c.b16 %v1423, %v1421
    %v1700 = vpack.c.b16 %v1426, %v1424
    %v1701 = vpack.c.b16 %v1427, %v1425
    %v1702 = vpack.c.b16 %v1430, %v1428
    %v1703 = vpack.c.b16 %v1431, %v1429
    %v1704 = vpack.c.b16 %v1434, %v1432
    %v1705 = vpack.c.b16 %v1435, %v1433
    %v1706 = vpack.c.b16 %v1438, %v1436
    %v1707 = vpack.c.b16 %v1439, %v1437
    %v1708 = vpack.c.b16 %v1442, %v1440
    %v1709 = vpack.c.b16 %v1443, %v1441
    %v1710 = vpack.c.b16 %v1446, %v1444
    %v1711 = vpack.c.b16 %v1447, %v1445
    %v1712 = vpack.c.b16 %v1450, %v1448
    %v1713 = vpack.c.b16 %v1451, %v1449
    %v1714 = vpack.c.b16 %v1454, %v1452
    %v1715 = vpack.c.b16 %v1455, %v1453
    %v1716 = vpack.c.b16 %v1458, %v1456
    %v1717 = vpack.c.b16 %v1459, %v1457
    %v1718 = vpack.c.b16 %v1462, %v1460
    %v1719 = vpack.c.b16 %v1463, %v1461
    %v1720 = vpack.c.b16 %v1466, %v1464
    %v1721 = vpack.c.b16 %v1467, %v1465
    %v1722 = vpack.c.b16 %v1470, %v1468
    %v1723 = vpack.c.b16 %v1471, %v1469
    %v1724 = vpack.c.b16 %v1474, %v1472
    %v1725 = vpack.c.b16 %v1475, %v1473
    %v1726 = vpack.c.b16 %v1478, %v1476
    %v1727 = vpack.c.b16 %v1479, %v1477
    %v1728 = vpack.c.b16 %v1482, %v1480
    %v1729 = vpack.c.b16 %v1483, %v1481
    %v1730 = vpack.c.b16 %v1486, %v1484
    %v1731 = vpack.c.b16 %v1487, %v1485
    %v1732 = vpack.c.b16 %v1490, %v1488
    %v1733 = vpack.c.b16 %v1491, %v1489
    %v1734 = vpack.c.b16 %v1494, %v1492
    %v1735 = vpack.c.b16 %v1495, %v1493
    %v1736 = vpack.c.b16 %v1498, %v1496
    %v1737 = vpack.c.b16 %v1499, %v1497
    %v1738 = vpack.c.b16 %v1502, %v1500
    %v1739 = vpack.c.b16 %v1503, %v1501
    %v1740 = vpack.c.b16 %v1506, %v1504
    %v1741 = vpack.c.b16 %v1507, %v1505
    %v1742 = vpack.c.b16 %v1510, %v1508
    %v1743 = vpack.c.b16 %v1511, %v1509
    %v1744 = vpack.c.b16 %v1514, %v1512
    %v1745 = vpack.c.b16 %v1515, %v1513
    %v1746 = vpack.c.b16 %v1518, %v1516
    %v1747 = vpack.c.b16 %v1519, %v1517
    %v1748 = vpack.c.b16 %v1522, %v1520
    %v1749 = vpack.c.b16 %v1523, %v1521
    %v1750 = vpack.c.b16 %v1526, %v1524
    %v1751 = vpack.c.b16 %v1527, %v1525
    %v1752 = vpack.c.b16 %v1530, %v1528
    %v1753 = vpack.c.b16 %v1531, %v1529
    %v1754 = vpack.c.b16 %v1534, %v1532
    %v1755 = vpack.c.b16 %v1535, %v1533
    %v1756 = vpack.c.b16 %v1538, %v1536
    %v1757 = vpack.c.b16 %v1539, %v1537
    %v1758 = vpack.c.b16 %v1542, %v1540
    %v1759 = vpack.c.b16 %v1543, %v1541
    %v1760 = vpack.c.b16 %v1546, %v1544
    %v1761 = vpack.c.b16 %v1547, %v1545
    %v1762 = vpack.c.b16 %v1550, %v1548
    %v1763 = vpack.c.b16 %v1551, %v1549
    %v1764 = vpack.c.b16 %v1554, %v1552
    %v1765 = vpack.c.b16 %v1555, %v1553
    %v1766 = vpack.c.b16 %v1558, %v1556
    %v1767 = vpack.c.b16 %v1559, %v1557
    %1976 = vmatpush.bf16.msra.mxu0 %v1574
    %1977 = vmatpush.bf16.msra.mxu0 %v1572
    %1978 = vmatpush.bf16.msra.mxu0 %v1570
    %1979 = vmatpush.bf16.msra.mxu0 %v1568
    %1980 = vmatpush.bf16.msra.mxu0 %v1566
    %1981 = vmatpush.bf16.msra.mxu0 %v1564
    %1982 = vmatpush.bf16.msra.mxu0 %v1562
    %1983 = vmatpush.bf16.msra.mxu0 %v1560
    %1984 = vmatmul.bf16.gmra.mxu0 %v728
    %v1985 = vpop.f32.mrf.mxu0
    %v1986 = vadd.f32 %v404, %v1985
    %v1987 = vpop.f32.mrf.mxu0
    %v1988 = vadd.f32 %v404, %v1987
    %1989 = vmatmul.bf16.gmra.mxu0 %v741
    %v1990 = vpop.f32.mrf.mxu0
    %v1991 = vadd.f32 %v404, %v1990
    %v1992 = vpop.f32.mrf.mxu0
    %v1993 = vadd.f32 %v404, %v1992
    %1994 = vmatmul.bf16.gmra.mxu0 %v754
    %v1995 = vpop.f32.mrf.mxu0
    %v1996 = vadd.f32 %v404, %v1995
    %v1997 = vpop.f32.mrf.mxu0
    %v1998 = vadd.f32 %v404, %v1997
    %1999 = vmatmul.bf16.gmra.mxu0 %v767
    %v2000 = vpop.f32.mrf.mxu0
    %v2001 = vadd.f32 %v404, %v2000
    %v2002 = vpop.f32.mrf.mxu0
    %v2003 = vadd.f32 %v404, %v2002
    %2004 = vmatmul.bf16.gmra.mxu0 %v780
    %v2005 = vpop.f32.mrf.mxu0
    %v2006 = vadd.f32 %v404, %v2005
    %v2007 = vpop.f32.mrf.mxu0
    %v2008 = vadd.f32 %v404, %v2007
    %2009 = vmatmul.bf16.gmra.mxu0 %v793
    %v2010 = vpop.f32.mrf.mxu0
    %v2011 = vadd.f32 %v404, %v2010
    %v2012 = vpop.f32.mrf.mxu0
    %v2013 = vadd.f32 %v404, %v2012
    %2014 = vmatmul.bf16.gmra.mxu0 %v806
    %v2015 = vpop.f32.mrf.mxu0
    %v2016 = vadd.f32 %v404, %v2015
    %v2017 = vpop.f32.mrf.mxu0
    %v2018 = vadd.f32 %v404, %v2017
    %2019 = vmatmul.bf16.gmra.mxu0 %v819
    %v2020 = vpop.f32.mrf.mxu0
    %v2021 = vadd.f32 %v404, %v2020
    %v2022 = vpop.f32.mrf.mxu0
    %v2023 = vadd.f32 %v404, %v2022
    %2024 = vdwg.mxu0
    %2025 = vmatpush.bf16.msra.mxu0 %v1590
    %2026 = vmatpush.bf16.msra.mxu0 %v1588
    %2027 = vmatpush.bf16.msra.mxu0 %v1586
    %2028 = vmatpush.bf16.msra.mxu0 %v1584
    %2029 = vmatpush.bf16.msra.mxu0 %v1582
    %2030 = vmatpush.bf16.msra.mxu0 %v1580
    %2031 = vmatpush.bf16.msra.mxu0 %v1578
    %2032 = vmatpush.bf16.msra.mxu0 %v1576
    %2033 = vmatmul.bf16.gmra.mxu0 %v729
    %v2034 = vpop.f32.mrf.mxu0
    %v2035 = vadd.f32 %v1986, %v2034
    %v2036 = vpop.f32.mrf.mxu0
    %v2037 = vadd.f32 %v1988, %v2036
    %2038 = vmatmul.bf16.gmra.mxu0 %v742
    %v2039 = vpop.f32.mrf.mxu0
    %v2040 = vadd.f32 %v1991, %v2039
    %v2041 = vpop.f32.mrf.mxu0
    %v2042 = vadd.f32 %v1993, %v2041
    %2043 = vmatmul.bf16.gmra.mxu0 %v755
    %v2044 = vpop.f32.mrf.mxu0
    %v2045 = vadd.f32 %v1996, %v2044
    %v2046 = vpop.f32.mrf.mxu0
    %v2047 = vadd.f32 %v1998, %v2046
    %2048 = vmatmul.bf16.gmra.mxu0 %v768
    %v2049 = vpop.f32.mrf.mxu0
    %v2050 = vadd.f32 %v2001, %v2049
    %v2051 = vpop.f32.mrf.mxu0
    %v2052 = vadd.f32 %v2003, %v2051
    %2053 = vmatmul.bf16.gmra.mxu0 %v781
    %v2054 = vpop.f32.mrf.mxu0
    %v2055 = vadd.f32 %v2006, %v2054
    %v2056 = vpop.f32.mrf.mxu0
    %v2057 = vadd.f32 %v2008, %v2056
    %2058 = vmatmul.bf16.gmra.mxu0 %v794
    %v2059 = vpop.f32.mrf.mxu0
    %v2060 = vadd.f32 %v2011, %v2059
    %v2061 = vpop.f32.mrf.mxu0
    %v2062 = vadd.f32 %v2013, %v2061
    %2063 = vmatmul.bf16.gmra.mxu0 %v807
    %v2064 = vpop.f32.mrf.mxu0
    %v2065 = vadd.f32 %v2016, %v2064
    %v2066 = vpop.f32.mrf.mxu0
    %v2067 = vadd.f32 %v2018, %v2066
    %2068 = vmatmul.bf16.gmra.mxu0 %v820
    %v2069 = vpop.f32.mrf.mxu0
    %v2070 = vadd.f32 %v2021, %v2069
    %v2071 = vpop.f32.mrf.mxu0
    %v2072 = vadd.f32 %v2023, %v2071
    %2073 = vdwg.mxu0
    %2074 = vmatpush.bf16.msra.mxu0 %v1606
    %2075 = vmatpush.bf16.msra.mxu0 %v1604
    %2076 = vmatpush.bf16.msra.mxu0 %v1602
    %2077 = vmatpush.bf16.msra.mxu0 %v1600
    %2078 = vmatpush.bf16.msra.mxu0 %v1598
    %2079 = vmatpush.bf16.msra.mxu0 %v1596
    %2080 = vmatpush.bf16.msra.mxu0 %v1594
    %2081 = vmatpush.bf16.msra.mxu0 %v1592
    %2082 = vmatmul.bf16.gmra.mxu0 %v730
    %v2083 = vpop.f32.mrf.mxu0
    %v2084 = vadd.f32 %v2035, %v2083
    %v2085 = vpop.f32.mrf.mxu0
    %v2086 = vadd.f32 %v2037, %v2085
    %2087 = vmatmul.bf16.gmra.mxu0 %v743
    %v2088 = vpop.f32.mrf.mxu0
    %v2089 = vadd.f32 %v2040, %v2088
    %v2090 = vpop.f32.mrf.mxu0
    %v2091 = vadd.f32 %v2042, %v2090
    %2092 = vmatmul.bf16.gmra.mxu0 %v756
    %v2093 = vpop.f32.mrf.mxu0
    %v2094 = vadd.f32 %v2045, %v2093
    %v2095 = vpop.f32.mrf.mxu0
    %v2096 = vadd.f32 %v2047, %v2095
    %2097 = vmatmul.bf16.gmra.mxu0 %v769
    %v2098 = vpop.f32.mrf.mxu0
    %v2099 = vadd.f32 %v2050, %v2098
    %v2100 = vpop.f32.mrf.mxu0
    %v2101 = vadd.f32 %v2052, %v2100
    %2102 = vmatmul.bf16.gmra.mxu0 %v782
    %v2103 = vpop.f32.mrf.mxu0
    %v2104 = vadd.f32 %v2055, %v2103
    %v2105 = vpop.f32.mrf.mxu0
    %v2106 = vadd.f32 %v2057, %v2105
    %2107 = vmatmul.bf16.gmra.mxu0 %v795
    %v2108 = vpop.f32.mrf.mxu0
    %v2109 = vadd.f32 %v2060, %v2108
    %v2110 = vpop.f32.mrf.mxu0
    %v2111 = vadd.f32 %v2062, %v2110
    %2112 = vmatmul.bf16.gmra.mxu0 %v808
    %v2113 = vpop.f32.mrf.mxu0
    %v2114 = vadd.f32 %v2065, %v2113
    %v2115 = vpop.f32.mrf.mxu0
    %v2116 = vadd.f32 %v2067, %v2115
    %2117 = vmatmul.bf16.gmra.mxu0 %v821
    %v2118 = vpop.f32.mrf.mxu0
    %v2119 = vadd.f32 %v2070, %v2118
    %v2120 = vpop.f32.mrf.mxu0
    %v2121 = vadd.f32 %v2072, %v2120
    %2122 = vdwg.mxu0
    %2123 = vmatpush.bf16.msra.mxu0 %v1622
    %2124 = vmatpush.bf16.msra.mxu0 %v1620
    %2125 = vmatpush.bf16.msra.mxu0 %v1618
    %2126 = vmatpush.bf16.msra.mxu0 %v1616
    %2127 = vmatpush.bf16.msra.mxu0 %v1614
    %2128 = vmatpush.bf16.msra.mxu0 %v1612
    %2129 = vmatpush.bf16.msra.mxu0 %v1610
    %2130 = vmatpush.bf16.msra.mxu0 %v1608
    %2131 = vmatmul.bf16.gmra.mxu0 %v731
    %v2132 = vpop.f32.mrf.mxu0
    %v2133 = vadd.f32 %v2084, %v2132
    %v2134 = vpop.f32.mrf.mxu0
    %v2135 = vadd.f32 %v2086, %v2134
    %2136 = vmatmul.bf16.gmra.mxu0 %v744
    %v2137 = vpop.f32.mrf.mxu0
    %v2138 = vadd.f32 %v2089, %v2137
    %v2139 = vpop.f32.mrf.mxu0
    %v2140 = vadd.f32 %v2091, %v2139
    %2141 = vmatmul.bf16.gmra.mxu0 %v757
    %v2142 = vpop.f32.mrf.mxu0
    %v2143 = vadd.f32 %v2094, %v2142
    %v2144 = vpop.f32.mrf.mxu0
    %v2145 = vadd.f32 %v2096, %v2144
    %2146 = vmatmul.bf16.gmra.mxu0 %v770
    %v2147 = vpop.f32.mrf.mxu0
    %v2148 = vadd.f32 %v2099, %v2147
    %v2149 = vpop.f32.mrf.mxu0
    %v2150 = vadd.f32 %v2101, %v2149
    %2151 = vmatmul.bf16.gmra.mxu0 %v783
    %v2152 = vpop.f32.mrf.mxu0
    %v2153 = vadd.f32 %v2104, %v2152
    %v2154 = vpop.f32.mrf.mxu0
    %v2155 = vadd.f32 %v2106, %v2154
    %2156 = vmatmul.bf16.gmra.mxu0 %v796
    %v2157 = vpop.f32.mrf.mxu0
    %v2158 = vadd.f32 %v2109, %v2157
    %v2159 = vpop.f32.mrf.mxu0
    %v2160 = vadd.f32 %v2111, %v2159
    %2161 = vmatmul.bf16.gmra.mxu0 %v809
    %v2162 = vpop.f32.mrf.mxu0
    %v2163 = vadd.f32 %v2114, %v2162
    %v2164 = vpop.f32.mrf.mxu0
    %v2165 = vadd.f32 %v2116, %v2164
    %2166 = vmatmul.bf16.gmra.mxu0 %v822
    %v2167 = vpop.f32.mrf.mxu0
    %v2168 = vadd.f32 %v2119, %v2167
    %v2169 = vpop.f32.mrf.mxu0
    %v2170 = vadd.f32 %v2121, %v2169
    %2171 = vdwg.mxu0
    %2172 = vmatpush.bf16.msra.mxu0 %v1638
    %2173 = vmatpush.bf16.msra.mxu0 %v1636
    %2174 = vmatpush.bf16.msra.mxu0 %v1634
    %2175 = vmatpush.bf16.msra.mxu0 %v1632
    %2176 = vmatpush.bf16.msra.mxu0 %v1630
    %2177 = vmatpush.bf16.msra.mxu0 %v1628
    %2178 = vmatpush.bf16.msra.mxu0 %v1626
    %2179 = vmatpush.bf16.msra.mxu0 %v1624
    %2180 = vmatmul.bf16.gmra.mxu0 %v732
    %v2181 = vpop.f32.mrf.mxu0
    %v2182 = vadd.f32 %v2133, %v2181
    %v2183 = vpop.f32.mrf.mxu0
    %v2184 = vadd.f32 %v2135, %v2183
    %2185 = vmatmul.bf16.gmra.mxu0 %v745
    %v2186 = vpop.f32.mrf.mxu0
    %v2187 = vadd.f32 %v2138, %v2186
    %v2188 = vpop.f32.mrf.mxu0
    %v2189 = vadd.f32 %v2140, %v2188
    %2190 = vmatmul.bf16.gmra.mxu0 %v758
    %v2191 = vpop.f32.mrf.mxu0
    %v2192 = vadd.f32 %v2143, %v2191
    %v2193 = vpop.f32.mrf.mxu0
    %v2194 = vadd.f32 %v2145, %v2193
    %2195 = vmatmul.bf16.gmra.mxu0 %v771
    %v2196 = vpop.f32.mrf.mxu0
    %v2197 = vadd.f32 %v2148, %v2196
    %v2198 = vpop.f32.mrf.mxu0
    %v2199 = vadd.f32 %v2150, %v2198
    %2200 = vmatmul.bf16.gmra.mxu0 %v784
    %v2201 = vpop.f32.mrf.mxu0
    %v2202 = vadd.f32 %v2153, %v2201
    %v2203 = vpop.f32.mrf.mxu0
    %v2204 = vadd.f32 %v2155, %v2203
    %2205 = vmatmul.bf16.gmra.mxu0 %v797
    %v2206 = vpop.f32.mrf.mxu0
    %v2207 = vadd.f32 %v2158, %v2206
    %v2208 = vpop.f32.mrf.mxu0
    %v2209 = vadd.f32 %v2160, %v2208
    %2210 = vmatmul.bf16.gmra.mxu0 %v810
    %v2211 = vpop.f32.mrf.mxu0
    %v2212 = vadd.f32 %v2163, %v2211
    %v2213 = vpop.f32.mrf.mxu0
    %v2214 = vadd.f32 %v2165, %v2213
    %2215 = vmatmul.bf16.gmra.mxu0 %v823
    %v2216 = vpop.f32.mrf.mxu0
    %v2217 = vadd.f32 %v2168, %v2216
    %v2218 = vpop.f32.mrf.mxu0
    %v2219 = vadd.f32 %v2170, %v2218
    %2220 = vdwg.mxu0
    %2221 = vmatpush.bf16.msra.mxu0 %v1654
    %2222 = vmatpush.bf16.msra.mxu0 %v1652
    %2223 = vmatpush.bf16.msra.mxu0 %v1650
    %2224 = vmatpush.bf16.msra.mxu0 %v1648
    %2225 = vmatpush.bf16.msra.mxu0 %v1646
    %2226 = vmatpush.bf16.msra.mxu0 %v1644
    %2227 = vmatpush.bf16.msra.mxu0 %v1642
    %2228 = vmatpush.bf16.msra.mxu0 %v1640
    %2229 = vmatmul.bf16.gmra.mxu0 %v733
    %v2230 = vpop.f32.mrf.mxu0
    %v2231 = vadd.f32 %v2182, %v2230
    %v2232 = vpop.f32.mrf.mxu0
    %v2233 = vadd.f32 %v2184, %v2232
    %2234 = vmatmul.bf16.gmra.mxu0 %v746
    %v2235 = vpop.f32.mrf.mxu0
    %v2236 = vadd.f32 %v2187, %v2235
    %v2237 = vpop.f32.mrf.mxu0
    %v2238 = vadd.f32 %v2189, %v2237
    %2239 = vmatmul.bf16.gmra.mxu0 %v759
    %v2240 = vpop.f32.mrf.mxu0
    %v2241 = vadd.f32 %v2192, %v2240
    %v2242 = vpop.f32.mrf.mxu0
    %v2243 = vadd.f32 %v2194, %v2242
    %2244 = vmatmul.bf16.gmra.mxu0 %v772
    %v2245 = vpop.f32.mrf.mxu0
    %v2246 = vadd.f32 %v2197, %v2245
    %v2247 = vpop.f32.mrf.mxu0
    %v2248 = vadd.f32 %v2199, %v2247
    %2249 = vmatmul.bf16.gmra.mxu0 %v785
    %v2250 = vpop.f32.mrf.mxu0
    %v2251 = vadd.f32 %v2202, %v2250
    %v2252 = vpop.f32.mrf.mxu0
    %v2253 = vadd.f32 %v2204, %v2252
    %2254 = vmatmul.bf16.gmra.mxu0 %v798
    %v2255 = vpop.f32.mrf.mxu0
    %v2256 = vadd.f32 %v2207, %v2255
    %v2257 = vpop.f32.mrf.mxu0
    %v2258 = vadd.f32 %v2209, %v2257
    %2259 = vmatmul.bf16.gmra.mxu0 %v811
    %v2260 = vpop.f32.mrf.mxu0
    %v2261 = vadd.f32 %v2212, %v2260
    %v2262 = vpop.f32.mrf.mxu0
    %v2263 = vadd.f32 %v2214, %v2262
    %2264 = vmatmul.bf16.gmra.mxu0 %v824
    %v2265 = vpop.f32.mrf.mxu0
    %v2266 = vadd.f32 %v2217, %v2265
    %v2267 = vpop.f32.mrf.mxu0
    %v2268 = vadd.f32 %v2219, %v2267
    %2269 = vdwg.mxu0
    %2270 = vmatpush.bf16.msra.mxu0 %v1670
    %2271 = vmatpush.bf16.msra.mxu0 %v1668
    %2272 = vmatpush.bf16.msra.mxu0 %v1666
    %2273 = vmatpush.bf16.msra.mxu0 %v1664
    %2274 = vmatpush.bf16.msra.mxu0 %v1662
    %2275 = vmatpush.bf16.msra.mxu0 %v1660
    %2276 = vmatpush.bf16.msra.mxu0 %v1658
    %2277 = vmatpush.bf16.msra.mxu0 %v1656
    %2278 = vmatmul.bf16.gmra.mxu0 %v734
    %v2279 = vpop.f32.mrf.mxu0
    %v2280 = vadd.f32 %v2231, %v2279
    %v2281 = vpop.f32.mrf.mxu0
    %v2282 = vadd.f32 %v2233, %v2281
    %2283 = vmatmul.bf16.gmra.mxu0 %v747
    %v2284 = vpop.f32.mrf.mxu0
    %v2285 = vadd.f32 %v2236, %v2284
    %v2286 = vpop.f32.mrf.mxu0
    %v2287 = vadd.f32 %v2238, %v2286
    %2288 = vmatmul.bf16.gmra.mxu0 %v760
    %v2289 = vpop.f32.mrf.mxu0
    %v2290 = vadd.f32 %v2241, %v2289
    %v2291 = vpop.f32.mrf.mxu0
    %v2292 = vadd.f32 %v2243, %v2291
    %2293 = vmatmul.bf16.gmra.mxu0 %v773
    %v2294 = vpop.f32.mrf.mxu0
    %v2295 = vadd.f32 %v2246, %v2294
    %v2296 = vpop.f32.mrf.mxu0
    %v2297 = vadd.f32 %v2248, %v2296
    %2298 = vmatmul.bf16.gmra.mxu0 %v786
    %v2299 = vpop.f32.mrf.mxu0
    %v2300 = vadd.f32 %v2251, %v2299
    %v2301 = vpop.f32.mrf.mxu0
    %v2302 = vadd.f32 %v2253, %v2301
    %2303 = vmatmul.bf16.gmra.mxu0 %v799
    %v2304 = vpop.f32.mrf.mxu0
    %v2305 = vadd.f32 %v2256, %v2304
    %v2306 = vpop.f32.mrf.mxu0
    %v2307 = vadd.f32 %v2258, %v2306
    %2308 = vmatmul.bf16.gmra.mxu0 %v812
    %v2309 = vpop.f32.mrf.mxu0
    %v2310 = vadd.f32 %v2261, %v2309
    %v2311 = vpop.f32.mrf.mxu0
    %v2312 = vadd.f32 %v2263, %v2311
    %2313 = vmatmul.bf16.gmra.mxu0 %v825
    %v2314 = vpop.f32.mrf.mxu0
    %v2315 = vadd.f32 %v2266, %v2314
    %v2316 = vpop.f32.mrf.mxu0
    %v2317 = vadd.f32 %v2268, %v2316
    %2318 = vdwg.mxu0
    %2319 = vmatpush.bf16.msra.mxu0 %v1686
    %2320 = vmatpush.bf16.msra.mxu0 %v1684
    %2321 = vmatpush.bf16.msra.mxu0 %v1682
    %2322 = vmatpush.bf16.msra.mxu0 %v1680
    %2323 = vmatpush.bf16.msra.mxu0 %v1678
    %2324 = vmatpush.bf16.msra.mxu0 %v1676
    %2325 = vmatpush.bf16.msra.mxu0 %v1674
    %2326 = vmatpush.bf16.msra.mxu0 %v1672
    %2327 = vmatmul.bf16.gmra.mxu0 %v735
    %v2328 = vpop.f32.mrf.mxu0
    %v2329 = vadd.f32 %v2280, %v2328
    %v2330 = vpop.f32.mrf.mxu0
    %v2331 = vadd.f32 %v2282, %v2330
    %2332 = vmatmul.bf16.gmra.mxu0 %v748
    %v2333 = vpop.f32.mrf.mxu0
    %v2334 = vadd.f32 %v2285, %v2333
    %v2335 = vpop.f32.mrf.mxu0
    %v2336 = vadd.f32 %v2287, %v2335
    %2337 = vmatmul.bf16.gmra.mxu0 %v761
    %v2338 = vpop.f32.mrf.mxu0
    %v2339 = vadd.f32 %v2290, %v2338
    %v2340 = vpop.f32.mrf.mxu0
    %v2341 = vadd.f32 %v2292, %v2340
    %2342 = vmatmul.bf16.gmra.mxu0 %v774
    %v2343 = vpop.f32.mrf.mxu0
    %v2344 = vadd.f32 %v2295, %v2343
    %v2345 = vpop.f32.mrf.mxu0
    %v2346 = vadd.f32 %v2297, %v2345
    %2347 = vmatmul.bf16.gmra.mxu0 %v787
    %v2348 = vpop.f32.mrf.mxu0
    %v2349 = vadd.f32 %v2300, %v2348
    %v2350 = vpop.f32.mrf.mxu0
    %v2351 = vadd.f32 %v2302, %v2350
    %2352 = vmatmul.bf16.gmra.mxu0 %v800
    %v2353 = vpop.f32.mrf.mxu0
    %v2354 = vadd.f32 %v2305, %v2353
    %v2355 = vpop.f32.mrf.mxu0
    %v2356 = vadd.f32 %v2307, %v2355
    %2357 = vmatmul.bf16.gmra.mxu0 %v813
    %v2358 = vpop.f32.mrf.mxu0
    %v2359 = vadd.f32 %v2310, %v2358
    %v2360 = vpop.f32.mrf.mxu0
    %v2361 = vadd.f32 %v2312, %v2360
    %2362 = vmatmul.bf16.gmra.mxu0 %v826
    %v2363 = vpop.f32.mrf.mxu0
    %v2364 = vadd.f32 %v2315, %v2363
    %v2365 = vpop.f32.mrf.mxu0
    %v2366 = vadd.f32 %v2317, %v2365
    %2367 = vdwg.mxu0
    %2368 = vmatpush.bf16.msra.mxu0 %v1702
    %2369 = vmatpush.bf16.msra.mxu0 %v1700
    %2370 = vmatpush.bf16.msra.mxu0 %v1698
    %2371 = vmatpush.bf16.msra.mxu0 %v1696
    %2372 = vmatpush.bf16.msra.mxu0 %v1694
    %2373 = vmatpush.bf16.msra.mxu0 %v1692
    %2374 = vmatpush.bf16.msra.mxu0 %v1690
    %2375 = vmatpush.bf16.msra.mxu0 %v1688
    %2376 = vmatmul.bf16.gmra.mxu0 %v736
    %v2377 = vpop.f32.mrf.mxu0
    %v2378 = vadd.f32 %v2329, %v2377
    %v2379 = vpop.f32.mrf.mxu0
    %v2380 = vadd.f32 %v2331, %v2379
    %2381 = vmatmul.bf16.gmra.mxu0 %v749
    %v2382 = vpop.f32.mrf.mxu0
    %v2383 = vadd.f32 %v2334, %v2382
    %v2384 = vpop.f32.mrf.mxu0
    %v2385 = vadd.f32 %v2336, %v2384
    %2386 = vmatmul.bf16.gmra.mxu0 %v762
    %v2387 = vpop.f32.mrf.mxu0
    %v2388 = vadd.f32 %v2339, %v2387
    %v2389 = vpop.f32.mrf.mxu0
    %v2390 = vadd.f32 %v2341, %v2389
    %2391 = vmatmul.bf16.gmra.mxu0 %v775
    %v2392 = vpop.f32.mrf.mxu0
    %v2393 = vadd.f32 %v2344, %v2392
    %v2394 = vpop.f32.mrf.mxu0
    %v2395 = vadd.f32 %v2346, %v2394
    %2396 = vmatmul.bf16.gmra.mxu0 %v788
    %v2397 = vpop.f32.mrf.mxu0
    %v2398 = vadd.f32 %v2349, %v2397
    %v2399 = vpop.f32.mrf.mxu0
    %v2400 = vadd.f32 %v2351, %v2399
    %2401 = vmatmul.bf16.gmra.mxu0 %v801
    %v2402 = vpop.f32.mrf.mxu0
    %v2403 = vadd.f32 %v2354, %v2402
    %v2404 = vpop.f32.mrf.mxu0
    %v2405 = vadd.f32 %v2356, %v2404
    %2406 = vmatmul.bf16.gmra.mxu0 %v814
    %v2407 = vpop.f32.mrf.mxu0
    %v2408 = vadd.f32 %v2359, %v2407
    %v2409 = vpop.f32.mrf.mxu0
    %v2410 = vadd.f32 %v2361, %v2409
    %2411 = vmatmul.bf16.gmra.mxu0 %v827
    %v2412 = vpop.f32.mrf.mxu0
    %v2413 = vadd.f32 %v2364, %v2412
    %v2414 = vpop.f32.mrf.mxu0
    %v2415 = vadd.f32 %v2366, %v2414
    %2416 = vdwg.mxu0
    %2417 = vmatpush.bf16.msra.mxu0 %v1718
    %2418 = vmatpush.bf16.msra.mxu0 %v1716
    %2419 = vmatpush.bf16.msra.mxu0 %v1714
    %2420 = vmatpush.bf16.msra.mxu0 %v1712
    %2421 = vmatpush.bf16.msra.mxu0 %v1710
    %2422 = vmatpush.bf16.msra.mxu0 %v1708
    %2423 = vmatpush.bf16.msra.mxu0 %v1706
    %2424 = vmatpush.bf16.msra.mxu0 %v1704
    %2425 = vmatmul.bf16.gmra.mxu0 %v737
    %v2426 = vpop.f32.mrf.mxu0
    %v2427 = vadd.f32 %v2378, %v2426
    %v2428 = vpop.f32.mrf.mxu0
    %v2429 = vadd.f32 %v2380, %v2428
    %2430 = vmatmul.bf16.gmra.mxu0 %v750
    %v2431 = vpop.f32.mrf.mxu0
    %v2432 = vadd.f32 %v2383, %v2431
    %v2433 = vpop.f32.mrf.mxu0
    %v2434 = vadd.f32 %v2385, %v2433
    %2435 = vmatmul.bf16.gmra.mxu0 %v763
    %v2436 = vpop.f32.mrf.mxu0
    %v2437 = vadd.f32 %v2388, %v2436
    %v2438 = vpop.f32.mrf.mxu0
    %v2439 = vadd.f32 %v2390, %v2438
    %2440 = vmatmul.bf16.gmra.mxu0 %v776
    %v2441 = vpop.f32.mrf.mxu0
    %v2442 = vadd.f32 %v2393, %v2441
    %v2443 = vpop.f32.mrf.mxu0
    %v2444 = vadd.f32 %v2395, %v2443
    %2445 = vmatmul.bf16.gmra.mxu0 %v789
    %v2446 = vpop.f32.mrf.mxu0
    %v2447 = vadd.f32 %v2398, %v2446
    %v2448 = vpop.f32.mrf.mxu0
    %v2449 = vadd.f32 %v2400, %v2448
    %2450 = vmatmul.bf16.gmra.mxu0 %v802
    %v2451 = vpop.f32.mrf.mxu0
    %v2452 = vadd.f32 %v2403, %v2451
    %v2453 = vpop.f32.mrf.mxu0
    %v2454 = vadd.f32 %v2405, %v2453
    %2455 = vmatmul.bf16.gmra.mxu0 %v815
    %v2456 = vpop.f32.mrf.mxu0
    %v2457 = vadd.f32 %v2408, %v2456
    %v2458 = vpop.f32.mrf.mxu0
    %v2459 = vadd.f32 %v2410, %v2458
    %2460 = vmatmul.bf16.gmra.mxu0 %v828
    %v2461 = vpop.f32.mrf.mxu0
    %v2462 = vadd.f32 %v2413, %v2461
    %v2463 = vpop.f32.mrf.mxu0
    %v2464 = vadd.f32 %v2415, %v2463
    %2465 = vdwg.mxu0
    %2466 = vmatpush.bf16.msra.mxu0 %v1734
    %2467 = vmatpush.bf16.msra.mxu0 %v1732
    %2468 = vmatpush.bf16.msra.mxu0 %v1730
    %2469 = vmatpush.bf16.msra.mxu0 %v1728
    %2470 = vmatpush.bf16.msra.mxu0 %v1726
    %2471 = vmatpush.bf16.msra.mxu0 %v1724
    %2472 = vmatpush.bf16.msra.mxu0 %v1722
    %2473 = vmatpush.bf16.msra.mxu0 %v1720
    %2474 = vmatmul.bf16.gmra.mxu0 %v738
    %v2475 = vpop.f32.mrf.mxu0
    %v2476 = vadd.f32 %v2427, %v2475
    %v2477 = vpop.f32.mrf.mxu0
    %v2478 = vadd.f32 %v2429, %v2477
    %2479 = vmatmul.bf16.gmra.mxu0 %v751
    %v2480 = vpop.f32.mrf.mxu0
    %v2481 = vadd.f32 %v2432, %v2480
    %v2482 = vpop.f32.mrf.mxu0
    %v2483 = vadd.f32 %v2434, %v2482
    %2484 = vmatmul.bf16.gmra.mxu0 %v764
    %v2485 = vpop.f32.mrf.mxu0
    %v2486 = vadd.f32 %v2437, %v2485
    %v2487 = vpop.f32.mrf.mxu0
    %v2488 = vadd.f32 %v2439, %v2487
    %2489 = vmatmul.bf16.gmra.mxu0 %v777
    %v2490 = vpop.f32.mrf.mxu0
    %v2491 = vadd.f32 %v2442, %v2490
    %v2492 = vpop.f32.mrf.mxu0
    %v2493 = vadd.f32 %v2444, %v2492
    %2494 = vmatmul.bf16.gmra.mxu0 %v790
    %v2495 = vpop.f32.mrf.mxu0
    %v2496 = vadd.f32 %v2447, %v2495
    %v2497 = vpop.f32.mrf.mxu0
    %v2498 = vadd.f32 %v2449, %v2497
    %2499 = vmatmul.bf16.gmra.mxu0 %v803
    %v2500 = vpop.f32.mrf.mxu0
    %v2501 = vadd.f32 %v2452, %v2500
    %v2502 = vpop.f32.mrf.mxu0
    %v2503 = vadd.f32 %v2454, %v2502
    %2504 = vmatmul.bf16.gmra.mxu0 %v816
    %v2505 = vpop.f32.mrf.mxu0
    %v2506 = vadd.f32 %v2457, %v2505
    %v2507 = vpop.f32.mrf.mxu0
    %v2508 = vadd.f32 %v2459, %v2507
    %2509 = vmatmul.bf16.gmra.mxu0 %v829
    %v2510 = vpop.f32.mrf.mxu0
    %v2511 = vadd.f32 %v2462, %v2510
    %v2512 = vpop.f32.mrf.mxu0
    %v2513 = vadd.f32 %v2464, %v2512
    %2514 = vdwg.mxu0
    %2515 = vmatpush.bf16.msra.mxu0 %v1750
    %2516 = vmatpush.bf16.msra.mxu0 %v1748
    %2517 = vmatpush.bf16.msra.mxu0 %v1746
    %2518 = vmatpush.bf16.msra.mxu0 %v1744
    %2519 = vmatpush.bf16.msra.mxu0 %v1742
    %2520 = vmatpush.bf16.msra.mxu0 %v1740
    %2521 = vmatpush.bf16.msra.mxu0 %v1738
    %2522 = vmatpush.bf16.msra.mxu0 %v1736
    %2523 = vmatmul.bf16.gmra.mxu0 %v739
    %v2524 = vpop.f32.mrf.mxu0
    %v2525 = vadd.f32 %v2476, %v2524
    %v2526 = vpop.f32.mrf.mxu0
    %v2527 = vadd.f32 %v2478, %v2526
    %2528 = vmatmul.bf16.gmra.mxu0 %v752
    %v2529 = vpop.f32.mrf.mxu0
    %v2530 = vadd.f32 %v2481, %v2529
    %v2531 = vpop.f32.mrf.mxu0
    %v2532 = vadd.f32 %v2483, %v2531
    %2533 = vmatmul.bf16.gmra.mxu0 %v765
    %v2534 = vpop.f32.mrf.mxu0
    %v2535 = vadd.f32 %v2486, %v2534
    %v2536 = vpop.f32.mrf.mxu0
    %v2537 = vadd.f32 %v2488, %v2536
    %2538 = vmatmul.bf16.gmra.mxu0 %v778
    %v2539 = vpop.f32.mrf.mxu0
    %v2540 = vadd.f32 %v2491, %v2539
    %v2541 = vpop.f32.mrf.mxu0
    %v2542 = vadd.f32 %v2493, %v2541
    %2543 = vmatmul.bf16.gmra.mxu0 %v791
    %v2544 = vpop.f32.mrf.mxu0
    %v2545 = vadd.f32 %v2496, %v2544
    %v2546 = vpop.f32.mrf.mxu0
    %v2547 = vadd.f32 %v2498, %v2546
    %2548 = vmatmul.bf16.gmra.mxu0 %v804
    %v2549 = vpop.f32.mrf.mxu0
    %v2550 = vadd.f32 %v2501, %v2549
    %v2551 = vpop.f32.mrf.mxu0
    %v2552 = vadd.f32 %v2503, %v2551
    %2553 = vmatmul.bf16.gmra.mxu0 %v817
    %v2554 = vpop.f32.mrf.mxu0
    %v2555 = vadd.f32 %v2506, %v2554
    %v2556 = vpop.f32.mrf.mxu0
    %v2557 = vadd.f32 %v2508, %v2556
    %2558 = vmatmul.bf16.gmra.mxu0 %v830
    %v2559 = vpop.f32.mrf.mxu0
    %v2560 = vadd.f32 %v2511, %v2559
    %v2561 = vpop.f32.mrf.mxu0
    %v2562 = vadd.f32 %v2513, %v2561
    %2563 = vdwg.mxu0
    %2564 = vmatpush.bf16.msra.mxu0 %v1766
    %2565 = vmatpush.bf16.msra.mxu0 %v1764
    %2566 = vmatpush.bf16.msra.mxu0 %v1762
    %2567 = vmatpush.bf16.msra.mxu0 %v1760
    %2568 = vmatpush.bf16.msra.mxu0 %v1758
    %2569 = vmatpush.bf16.msra.mxu0 %v1756
    %2570 = vmatpush.bf16.msra.mxu0 %v1754
    %2571 = vmatpush.bf16.msra.mxu0 %v1752
    %2572 = vmatmul.bf16.gmra.mxu0 %v740
    %v2573 = vpop.f32.mrf.mxu0
    %v2574 = vadd.f32 %v2525, %v2573
    %v2575 = vpop.f32.mrf.mxu0
    %v2576 = vadd.f32 %v2527, %v2575
    %2577 = vmatmul.bf16.gmra.mxu0 %v753
    %v2578 = vpop.f32.mrf.mxu0
    %v2579 = vadd.f32 %v2530, %v2578
    %v2580 = vpop.f32.mrf.mxu0
    %v2581 = vadd.f32 %v2532, %v2580
    %2582 = vmatmul.bf16.gmra.mxu0 %v766
    %v2583 = vpop.f32.mrf.mxu0
    %v2584 = vadd.f32 %v2535, %v2583
    %v2585 = vpop.f32.mrf.mxu0
    %v2586 = vadd.f32 %v2537, %v2585
    %2587 = vmatmul.bf16.gmra.mxu0 %v779
    %v2588 = vpop.f32.mrf.mxu0
    %v2589 = vadd.f32 %v2540, %v2588
    %v2590 = vpop.f32.mrf.mxu0
    %v2591 = vadd.f32 %v2542, %v2590
    %2592 = vmatmul.bf16.gmra.mxu0 %v792
    %v2593 = vpop.f32.mrf.mxu0
    %v2594 = vadd.f32 %v2545, %v2593
    %v2595 = vpop.f32.mrf.mxu0
    %v2596 = vadd.f32 %v2547, %v2595
    %2597 = vmatmul.bf16.gmra.mxu0 %v805
    %v2598 = vpop.f32.mrf.mxu0
    %v2599 = vadd.f32 %v2550, %v2598
    %v2600 = vpop.f32.mrf.mxu0
    %v2601 = vadd.f32 %v2552, %v2600
    %2602 = vmatmul.bf16.gmra.mxu0 %v818
    %v2603 = vpop.f32.mrf.mxu0
    %v2604 = vadd.f32 %v2555, %v2603
    %v2605 = vpop.f32.mrf.mxu0
    %v2606 = vadd.f32 %v2557, %v2605
    %2607 = vmatmul.bf16.gmra.mxu0 %v831
    %v2608 = vpop.f32.mrf.mxu0
    %v2609 = vadd.f32 %v2560, %v2608
    %v2610 = vpop.f32.mrf.mxu0
    %v2611 = vadd.f32 %v2562, %v2610
    %2612 = vdwg.mxu0
    %2613 = vmatpush.bf16.msra.mxu0 %v1575
    %2614 = vmatpush.bf16.msra.mxu0 %v1573
    %2615 = vmatpush.bf16.msra.mxu0 %v1571
    %2616 = vmatpush.bf16.msra.mxu0 %v1569
    %2617 = vmatpush.bf16.msra.mxu0 %v1567
    %2618 = vmatpush.bf16.msra.mxu0 %v1565
    %2619 = vmatpush.bf16.msra.mxu0 %v1563
    %2620 = vmatpush.bf16.msra.mxu0 %v1561
    %2621 = vmatmul.bf16.gmra.mxu0 %v728
    %v2622 = vpop.f32.mrf.mxu0
    %v2623 = vadd.f32 %v405, %v2622
    %v2624 = vpop.f32.mrf.mxu0
    %v2625 = vadd.f32 %v405, %v2624
    %2626 = vmatmul.bf16.gmra.mxu0 %v741
    %v2627 = vpop.f32.mrf.mxu0
    %v2628 = vadd.f32 %v405, %v2627
    %v2629 = vpop.f32.mrf.mxu0
    %v2630 = vadd.f32 %v405, %v2629
    %2631 = vmatmul.bf16.gmra.mxu0 %v754
    %v2632 = vpop.f32.mrf.mxu0
    %v2633 = vadd.f32 %v405, %v2632
    %v2634 = vpop.f32.mrf.mxu0
    %v2635 = vadd.f32 %v405, %v2634
    %2636 = vmatmul.bf16.gmra.mxu0 %v767
    %v2637 = vpop.f32.mrf.mxu0
    %v2638 = vadd.f32 %v405, %v2637
    %v2639 = vpop.f32.mrf.mxu0
    %v2640 = vadd.f32 %v405, %v2639
    %2641 = vmatmul.bf16.gmra.mxu0 %v780
    %v2642 = vpop.f32.mrf.mxu0
    %v2643 = vadd.f32 %v405, %v2642
    %v2644 = vpop.f32.mrf.mxu0
    %v2645 = vadd.f32 %v405, %v2644
    %2646 = vmatmul.bf16.gmra.mxu0 %v793
    %v2647 = vpop.f32.mrf.mxu0
    %v2648 = vadd.f32 %v405, %v2647
    %v2649 = vpop.f32.mrf.mxu0
    %v2650 = vadd.f32 %v405, %v2649
    %2651 = vmatmul.bf16.gmra.mxu0 %v806
    %v2652 = vpop.f32.mrf.mxu0
    %v2653 = vadd.f32 %v405, %v2652
    %v2654 = vpop.f32.mrf.mxu0
    %v2655 = vadd.f32 %v405, %v2654
    %2656 = vmatmul.bf16.gmra.mxu0 %v819
    %v2657 = vpop.f32.mrf.mxu0
    %v2658 = vadd.f32 %v405, %v2657
    %v2659 = vpop.f32.mrf.mxu0
    %v2660 = vadd.f32 %v405, %v2659
    %2661 = vdwg.mxu0
    %2662 = vmatpush.bf16.msra.mxu0 %v1591
    %2663 = vmatpush.bf16.msra.mxu0 %v1589
    %2664 = vmatpush.bf16.msra.mxu0 %v1587
    %2665 = vmatpush.bf16.msra.mxu0 %v1585
    %2666 = vmatpush.bf16.msra.mxu0 %v1583
    %2667 = vmatpush.bf16.msra.mxu0 %v1581
    %2668 = vmatpush.bf16.msra.mxu0 %v1579
    %2669 = vmatpush.bf16.msra.mxu0 %v1577
    %2670 = vmatmul.bf16.gmra.mxu0 %v729
    %v2671 = vpop.f32.mrf.mxu0
    %v2672 = vadd.f32 %v2623, %v2671
    %v2673 = vpop.f32.mrf.mxu0
    %v2674 = vadd.f32 %v2625, %v2673
    %2675 = vmatmul.bf16.gmra.mxu0 %v742
    %v2676 = vpop.f32.mrf.mxu0
    %v2677 = vadd.f32 %v2628, %v2676
    %v2678 = vpop.f32.mrf.mxu0
    %v2679 = vadd.f32 %v2630, %v2678
    %2680 = vmatmul.bf16.gmra.mxu0 %v755
    %v2681 = vpop.f32.mrf.mxu0
    %v2682 = vadd.f32 %v2633, %v2681
    %v2683 = vpop.f32.mrf.mxu0
    %v2684 = vadd.f32 %v2635, %v2683
    %2685 = vmatmul.bf16.gmra.mxu0 %v768
    %v2686 = vpop.f32.mrf.mxu0
    %v2687 = vadd.f32 %v2638, %v2686
    %v2688 = vpop.f32.mrf.mxu0
    %v2689 = vadd.f32 %v2640, %v2688
    %2690 = vmatmul.bf16.gmra.mxu0 %v781
    %v2691 = vpop.f32.mrf.mxu0
    %v2692 = vadd.f32 %v2643, %v2691
    %v2693 = vpop.f32.mrf.mxu0
    %v2694 = vadd.f32 %v2645, %v2693
    %2695 = vmatmul.bf16.gmra.mxu0 %v794
    %v2696 = vpop.f32.mrf.mxu0
    %v2697 = vadd.f32 %v2648, %v2696
    %v2698 = vpop.f32.mrf.mxu0
    %v2699 = vadd.f32 %v2650, %v2698
    %2700 = vmatmul.bf16.gmra.mxu0 %v807
    %v2701 = vpop.f32.mrf.mxu0
    %v2702 = vadd.f32 %v2653, %v2701
    %v2703 = vpop.f32.mrf.mxu0
    %v2704 = vadd.f32 %v2655, %v2703
    %2705 = vmatmul.bf16.gmra.mxu0 %v820
    %v2706 = vpop.f32.mrf.mxu0
    %v2707 = vadd.f32 %v2658, %v2706
    %v2708 = vpop.f32.mrf.mxu0
    %v2709 = vadd.f32 %v2660, %v2708
    %2710 = vdwg.mxu0
    %2711 = vmatpush.bf16.msra.mxu0 %v1607
    %2712 = vmatpush.bf16.msra.mxu0 %v1605
    %2713 = vmatpush.bf16.msra.mxu0 %v1603
    %2714 = vmatpush.bf16.msra.mxu0 %v1601
    %2715 = vmatpush.bf16.msra.mxu0 %v1599
    %2716 = vmatpush.bf16.msra.mxu0 %v1597
    %2717 = vmatpush.bf16.msra.mxu0 %v1595
    %2718 = vmatpush.bf16.msra.mxu0 %v1593
    %2719 = vmatmul.bf16.gmra.mxu0 %v730
    %v2720 = vpop.f32.mrf.mxu0
    %v2721 = vadd.f32 %v2672, %v2720
    %v2722 = vpop.f32.mrf.mxu0
    %v2723 = vadd.f32 %v2674, %v2722
    %2724 = vmatmul.bf16.gmra.mxu0 %v743
    %v2725 = vpop.f32.mrf.mxu0
    %v2726 = vadd.f32 %v2677, %v2725
    %v2727 = vpop.f32.mrf.mxu0
    %v2728 = vadd.f32 %v2679, %v2727
    %2729 = vmatmul.bf16.gmra.mxu0 %v756
    %v2730 = vpop.f32.mrf.mxu0
    %v2731 = vadd.f32 %v2682, %v2730
    %v2732 = vpop.f32.mrf.mxu0
    %v2733 = vadd.f32 %v2684, %v2732
    %2734 = vmatmul.bf16.gmra.mxu0 %v769
    %v2735 = vpop.f32.mrf.mxu0
    %v2736 = vadd.f32 %v2687, %v2735
    %v2737 = vpop.f32.mrf.mxu0
    %v2738 = vadd.f32 %v2689, %v2737
    %2739 = vmatmul.bf16.gmra.mxu0 %v782
    %v2740 = vpop.f32.mrf.mxu0
    %v2741 = vadd.f32 %v2692, %v2740
    %v2742 = vpop.f32.mrf.mxu0
    %v2743 = vadd.f32 %v2694, %v2742
    %2744 = vmatmul.bf16.gmra.mxu0 %v795
    %v2745 = vpop.f32.mrf.mxu0
    %v2746 = vadd.f32 %v2697, %v2745
    %v2747 = vpop.f32.mrf.mxu0
    %v2748 = vadd.f32 %v2699, %v2747
    %2749 = vmatmul.bf16.gmra.mxu0 %v808
    %v2750 = vpop.f32.mrf.mxu0
    %v2751 = vadd.f32 %v2702, %v2750
    %v2752 = vpop.f32.mrf.mxu0
    %v2753 = vadd.f32 %v2704, %v2752
    %2754 = vmatmul.bf16.gmra.mxu0 %v821
    %v2755 = vpop.f32.mrf.mxu0
    %v2756 = vadd.f32 %v2707, %v2755
    %v2757 = vpop.f32.mrf.mxu0
    %v2758 = vadd.f32 %v2709, %v2757
    %2759 = vdwg.mxu0
    %2760 = vmatpush.bf16.msra.mxu0 %v1623
    %2761 = vmatpush.bf16.msra.mxu0 %v1621
    %2762 = vmatpush.bf16.msra.mxu0 %v1619
    %2763 = vmatpush.bf16.msra.mxu0 %v1617
    %2764 = vmatpush.bf16.msra.mxu0 %v1615
    %2765 = vmatpush.bf16.msra.mxu0 %v1613
    %2766 = vmatpush.bf16.msra.mxu0 %v1611
    %2767 = vmatpush.bf16.msra.mxu0 %v1609
    %2768 = vmatmul.bf16.gmra.mxu0 %v731
    %v2769 = vpop.f32.mrf.mxu0
    %v2770 = vadd.f32 %v2721, %v2769
    %v2771 = vpop.f32.mrf.mxu0
    %v2772 = vadd.f32 %v2723, %v2771
    %2773 = vmatmul.bf16.gmra.mxu0 %v744
    %v2774 = vpop.f32.mrf.mxu0
    %v2775 = vadd.f32 %v2726, %v2774
    %v2776 = vpop.f32.mrf.mxu0
    %v2777 = vadd.f32 %v2728, %v2776
    %2778 = vmatmul.bf16.gmra.mxu0 %v757
    %v2779 = vpop.f32.mrf.mxu0
    %v2780 = vadd.f32 %v2731, %v2779
    %v2781 = vpop.f32.mrf.mxu0
    %v2782 = vadd.f32 %v2733, %v2781
    %2783 = vmatmul.bf16.gmra.mxu0 %v770
    %v2784 = vpop.f32.mrf.mxu0
    %v2785 = vadd.f32 %v2736, %v2784
    %v2786 = vpop.f32.mrf.mxu0
    %v2787 = vadd.f32 %v2738, %v2786
    %2788 = vmatmul.bf16.gmra.mxu0 %v783
    %v2789 = vpop.f32.mrf.mxu0
    %v2790 = vadd.f32 %v2741, %v2789
    %v2791 = vpop.f32.mrf.mxu0
    %v2792 = vadd.f32 %v2743, %v2791
    %2793 = vmatmul.bf16.gmra.mxu0 %v796
    %v2794 = vpop.f32.mrf.mxu0
    %v2795 = vadd.f32 %v2746, %v2794
    %v2796 = vpop.f32.mrf.mxu0
    %v2797 = vadd.f32 %v2748, %v2796
    %2798 = vmatmul.bf16.gmra.mxu0 %v809
    %v2799 = vpop.f32.mrf.mxu0
    %v2800 = vadd.f32 %v2751, %v2799
    %v2801 = vpop.f32.mrf.mxu0
    %v2802 = vadd.f32 %v2753, %v2801
    %2803 = vmatmul.bf16.gmra.mxu0 %v822
    %v2804 = vpop.f32.mrf.mxu0
    %v2805 = vadd.f32 %v2756, %v2804
    %v2806 = vpop.f32.mrf.mxu0
    %v2807 = vadd.f32 %v2758, %v2806
    %2808 = vdwg.mxu0
    %2809 = vmatpush.bf16.msra.mxu0 %v1639
    %2810 = vmatpush.bf16.msra.mxu0 %v1637
    %2811 = vmatpush.bf16.msra.mxu0 %v1635
    %2812 = vmatpush.bf16.msra.mxu0 %v1633
    %2813 = vmatpush.bf16.msra.mxu0 %v1631
    %2814 = vmatpush.bf16.msra.mxu0 %v1629
    %2815 = vmatpush.bf16.msra.mxu0 %v1627
    %2816 = vmatpush.bf16.msra.mxu0 %v1625
    %2817 = vmatmul.bf16.gmra.mxu0 %v732
    %v2818 = vpop.f32.mrf.mxu0
    %v2819 = vadd.f32 %v2770, %v2818
    %v2820 = vpop.f32.mrf.mxu0
    %v2821 = vadd.f32 %v2772, %v2820
    %2822 = vmatmul.bf16.gmra.mxu0 %v745
    %v2823 = vpop.f32.mrf.mxu0
    %v2824 = vadd.f32 %v2775, %v2823
    %v2825 = vpop.f32.mrf.mxu0
    %v2826 = vadd.f32 %v2777, %v2825
    %2827 = vmatmul.bf16.gmra.mxu0 %v758
    %v2828 = vpop.f32.mrf.mxu0
    %v2829 = vadd.f32 %v2780, %v2828
    %v2830 = vpop.f32.mrf.mxu0
    %v2831 = vadd.f32 %v2782, %v2830
    %2832 = vmatmul.bf16.gmra.mxu0 %v771
    %v2833 = vpop.f32.mrf.mxu0
    %v2834 = vadd.f32 %v2785, %v2833
    %v2835 = vpop.f32.mrf.mxu0
    %v2836 = vadd.f32 %v2787, %v2835
    %2837 = vmatmul.bf16.gmra.mxu0 %v784
    %v2838 = vpop.f32.mrf.mxu0
    %v2839 = vadd.f32 %v2790, %v2838
    %v2840 = vpop.f32.mrf.mxu0
    %v2841 = vadd.f32 %v2792, %v2840
    %2842 = vmatmul.bf16.gmra.mxu0 %v797
    %v2843 = vpop.f32.mrf.mxu0
    %v2844 = vadd.f32 %v2795, %v2843
    %v2845 = vpop.f32.mrf.mxu0
    %v2846 = vadd.f32 %v2797, %v2845
    %2847 = vmatmul.bf16.gmra.mxu0 %v810
    %v2848 = vpop.f32.mrf.mxu0
    %v2849 = vadd.f32 %v2800, %v2848
    %v2850 = vpop.f32.mrf.mxu0
    %v2851 = vadd.f32 %v2802, %v2850
    %2852 = vmatmul.bf16.gmra.mxu0 %v823
    %v2853 = vpop.f32.mrf.mxu0
    %v2854 = vadd.f32 %v2805, %v2853
    %v2855 = vpop.f32.mrf.mxu0
    %v2856 = vadd.f32 %v2807, %v2855
    %2857 = vdwg.mxu0
    %2858 = vmatpush.bf16.msra.mxu0 %v1655
    %2859 = vmatpush.bf16.msra.mxu0 %v1653
    %2860 = vmatpush.bf16.msra.mxu0 %v1651
    %2861 = vmatpush.bf16.msra.mxu0 %v1649
    %2862 = vmatpush.bf16.msra.mxu0 %v1647
    %2863 = vmatpush.bf16.msra.mxu0 %v1645
    %2864 = vmatpush.bf16.msra.mxu0 %v1643
    %2865 = vmatpush.bf16.msra.mxu0 %v1641
    %2866 = vmatmul.bf16.gmra.mxu0 %v733
    %v2867 = vpop.f32.mrf.mxu0
    %v2868 = vadd.f32 %v2819, %v2867
    %v2869 = vpop.f32.mrf.mxu0
    %v2870 = vadd.f32 %v2821, %v2869
    %2871 = vmatmul.bf16.gmra.mxu0 %v746
    %v2872 = vpop.f32.mrf.mxu0
    %v2873 = vadd.f32 %v2824, %v2872
    %v2874 = vpop.f32.mrf.mxu0
    %v2875 = vadd.f32 %v2826, %v2874
    %2876 = vmatmul.bf16.gmra.mxu0 %v759
    %v2877 = vpop.f32.mrf.mxu0
    %v2878 = vadd.f32 %v2829, %v2877
    %v2879 = vpop.f32.mrf.mxu0
    %v2880 = vadd.f32 %v2831, %v2879
    %2881 = vmatmul.bf16.gmra.mxu0 %v772
    %v2882 = vpop.f32.mrf.mxu0
    %v2883 = vadd.f32 %v2834, %v2882
    %v2884 = vpop.f32.mrf.mxu0
    %v2885 = vadd.f32 %v2836, %v2884
    %2886 = vmatmul.bf16.gmra.mxu0 %v785
    %v2887 = vpop.f32.mrf.mxu0
    %v2888 = vadd.f32 %v2839, %v2887
    %v2889 = vpop.f32.mrf.mxu0
    %v2890 = vadd.f32 %v2841, %v2889
    %2891 = vmatmul.bf16.gmra.mxu0 %v798
    %v2892 = vpop.f32.mrf.mxu0
    %v2893 = vadd.f32 %v2844, %v2892
    %v2894 = vpop.f32.mrf.mxu0
    %v2895 = vadd.f32 %v2846, %v2894
    %2896 = vmatmul.bf16.gmra.mxu0 %v811
    %v2897 = vpop.f32.mrf.mxu0
    %v2898 = vadd.f32 %v2849, %v2897
    %v2899 = vpop.f32.mrf.mxu0
    %v2900 = vadd.f32 %v2851, %v2899
    %2901 = vmatmul.bf16.gmra.mxu0 %v824
    %v2902 = vpop.f32.mrf.mxu0
    %v2903 = vadd.f32 %v2854, %v2902
    %v2904 = vpop.f32.mrf.mxu0
    %v2905 = vadd.f32 %v2856, %v2904
    %2906 = vdwg.mxu0
    %2907 = vmatpush.bf16.msra.mxu0 %v1671
    %2908 = vmatpush.bf16.msra.mxu0 %v1669
    %2909 = vmatpush.bf16.msra.mxu0 %v1667
    %2910 = vmatpush.bf16.msra.mxu0 %v1665
    %2911 = vmatpush.bf16.msra.mxu0 %v1663
    %2912 = vmatpush.bf16.msra.mxu0 %v1661
    %2913 = vmatpush.bf16.msra.mxu0 %v1659
    %2914 = vmatpush.bf16.msra.mxu0 %v1657
    %2915 = vmatmul.bf16.gmra.mxu0 %v734
    %v2916 = vpop.f32.mrf.mxu0
    %v2917 = vadd.f32 %v2868, %v2916
    %v2918 = vpop.f32.mrf.mxu0
    %v2919 = vadd.f32 %v2870, %v2918
    %2920 = vmatmul.bf16.gmra.mxu0 %v747
    %v2921 = vpop.f32.mrf.mxu0
    %v2922 = vadd.f32 %v2873, %v2921
    %v2923 = vpop.f32.mrf.mxu0
    %v2924 = vadd.f32 %v2875, %v2923
    %2925 = vmatmul.bf16.gmra.mxu0 %v760
    %v2926 = vpop.f32.mrf.mxu0
    %v2927 = vadd.f32 %v2878, %v2926
    %v2928 = vpop.f32.mrf.mxu0
    %v2929 = vadd.f32 %v2880, %v2928
    %2930 = vmatmul.bf16.gmra.mxu0 %v773
    %v2931 = vpop.f32.mrf.mxu0
    %v2932 = vadd.f32 %v2883, %v2931
    %v2933 = vpop.f32.mrf.mxu0
    %v2934 = vadd.f32 %v2885, %v2933
    %2935 = vmatmul.bf16.gmra.mxu0 %v786
    %v2936 = vpop.f32.mrf.mxu0
    %v2937 = vadd.f32 %v2888, %v2936
    %v2938 = vpop.f32.mrf.mxu0
    %v2939 = vadd.f32 %v2890, %v2938
    %2940 = vmatmul.bf16.gmra.mxu0 %v799
    %v2941 = vpop.f32.mrf.mxu0
    %v2942 = vadd.f32 %v2893, %v2941
    %v2943 = vpop.f32.mrf.mxu0
    %v2944 = vadd.f32 %v2895, %v2943
    %2945 = vmatmul.bf16.gmra.mxu0 %v812
    %v2946 = vpop.f32.mrf.mxu0
    %v2947 = vadd.f32 %v2898, %v2946
    %v2948 = vpop.f32.mrf.mxu0
    %v2949 = vadd.f32 %v2900, %v2948
    %2950 = vmatmul.bf16.gmra.mxu0 %v825
    %v2951 = vpop.f32.mrf.mxu0
    %v2952 = vadd.f32 %v2903, %v2951
    %v2953 = vpop.f32.mrf.mxu0
    %v2954 = vadd.f32 %v2905, %v2953
    %2955 = vdwg.mxu0
    %2956 = vmatpush.bf16.msra.mxu0 %v1687
    %2957 = vmatpush.bf16.msra.mxu0 %v1685
    %2958 = vmatpush.bf16.msra.mxu0 %v1683
    %2959 = vmatpush.bf16.msra.mxu0 %v1681
    %2960 = vmatpush.bf16.msra.mxu0 %v1679
    %2961 = vmatpush.bf16.msra.mxu0 %v1677
    %2962 = vmatpush.bf16.msra.mxu0 %v1675
    %2963 = vmatpush.bf16.msra.mxu0 %v1673
    %2964 = vmatmul.bf16.gmra.mxu0 %v735
    %v2965 = vpop.f32.mrf.mxu0
    %v2966 = vadd.f32 %v2917, %v2965
    %v2967 = vpop.f32.mrf.mxu0
    %v2968 = vadd.f32 %v2919, %v2967
    %2969 = vmatmul.bf16.gmra.mxu0 %v748
    %v2970 = vpop.f32.mrf.mxu0
    %v2971 = vadd.f32 %v2922, %v2970
    %v2972 = vpop.f32.mrf.mxu0
    %v2973 = vadd.f32 %v2924, %v2972
    %2974 = vmatmul.bf16.gmra.mxu0 %v761
    %v2975 = vpop.f32.mrf.mxu0
    %v2976 = vadd.f32 %v2927, %v2975
    %v2977 = vpop.f32.mrf.mxu0
    %v2978 = vadd.f32 %v2929, %v2977
    %2979 = vmatmul.bf16.gmra.mxu0 %v774
    %v2980 = vpop.f32.mrf.mxu0
    %v2981 = vadd.f32 %v2932, %v2980
    %v2982 = vpop.f32.mrf.mxu0
    %v2983 = vadd.f32 %v2934, %v2982
    %2984 = vmatmul.bf16.gmra.mxu0 %v787
    %v2985 = vpop.f32.mrf.mxu0
    %v2986 = vadd.f32 %v2937, %v2985
    %v2987 = vpop.f32.mrf.mxu0
    %v2988 = vadd.f32 %v2939, %v2987
    %2989 = vmatmul.bf16.gmra.mxu0 %v800
    %v2990 = vpop.f32.mrf.mxu0
    %v2991 = vadd.f32 %v2942, %v2990
    %v2992 = vpop.f32.mrf.mxu0
    %v2993 = vadd.f32 %v2944, %v2992
    %2994 = vmatmul.bf16.gmra.mxu0 %v813
    %v2995 = vpop.f32.mrf.mxu0
    %v2996 = vadd.f32 %v2947, %v2995
    %v2997 = vpop.f32.mrf.mxu0
    %v2998 = vadd.f32 %v2949, %v2997
    %2999 = vmatmul.bf16.gmra.mxu0 %v826
    %v3000 = vpop.f32.mrf.mxu0
    %v3001 = vadd.f32 %v2952, %v3000
    %v3002 = vpop.f32.mrf.mxu0
    %v3003 = vadd.f32 %v2954, %v3002
    %3004 = vdwg.mxu0
    %3005 = vmatpush.bf16.msra.mxu0 %v1703
    %3006 = vmatpush.bf16.msra.mxu0 %v1701
    %3007 = vmatpush.bf16.msra.mxu0 %v1699
    %3008 = vmatpush.bf16.msra.mxu0 %v1697
    %3009 = vmatpush.bf16.msra.mxu0 %v1695
    %3010 = vmatpush.bf16.msra.mxu0 %v1693
    %3011 = vmatpush.bf16.msra.mxu0 %v1691
    %3012 = vmatpush.bf16.msra.mxu0 %v1689
    %3013 = vmatmul.bf16.gmra.mxu0 %v736
    %v3014 = vpop.f32.mrf.mxu0
    %v3015 = vadd.f32 %v2966, %v3014
    %v3016 = vpop.f32.mrf.mxu0
    %v3017 = vadd.f32 %v2968, %v3016
    %3018 = vmatmul.bf16.gmra.mxu0 %v749
    %v3019 = vpop.f32.mrf.mxu0
    %v3020 = vadd.f32 %v2971, %v3019
    %v3021 = vpop.f32.mrf.mxu0
    %v3022 = vadd.f32 %v2973, %v3021
    %3023 = vmatmul.bf16.gmra.mxu0 %v762
    %v3024 = vpop.f32.mrf.mxu0
    %v3025 = vadd.f32 %v2976, %v3024
    %v3026 = vpop.f32.mrf.mxu0
    %v3027 = vadd.f32 %v2978, %v3026
    %3028 = vmatmul.bf16.gmra.mxu0 %v775
    %v3029 = vpop.f32.mrf.mxu0
    %v3030 = vadd.f32 %v2981, %v3029
    %v3031 = vpop.f32.mrf.mxu0
    %v3032 = vadd.f32 %v2983, %v3031
    %3033 = vmatmul.bf16.gmra.mxu0 %v788
    %v3034 = vpop.f32.mrf.mxu0
    %v3035 = vadd.f32 %v2986, %v3034
    %v3036 = vpop.f32.mrf.mxu0
    %v3037 = vadd.f32 %v2988, %v3036
    %3038 = vmatmul.bf16.gmra.mxu0 %v801
    %v3039 = vpop.f32.mrf.mxu0
    %v3040 = vadd.f32 %v2991, %v3039
    %v3041 = vpop.f32.mrf.mxu0
    %v3042 = vadd.f32 %v2993, %v3041
    %3043 = vmatmul.bf16.gmra.mxu0 %v814
    %v3044 = vpop.f32.mrf.mxu0
    %v3045 = vadd.f32 %v2996, %v3044
    %v3046 = vpop.f32.mrf.mxu0
    %v3047 = vadd.f32 %v2998, %v3046
    %3048 = vmatmul.bf16.gmra.mxu0 %v827
    %v3049 = vpop.f32.mrf.mxu0
    %v3050 = vadd.f32 %v3001, %v3049
    %v3051 = vpop.f32.mrf.mxu0
    %v3052 = vadd.f32 %v3003, %v3051
    %3053 = vdwg.mxu0
    %3054 = vmatpush.bf16.msra.mxu0 %v1719
    %3055 = vmatpush.bf16.msra.mxu0 %v1717
    %3056 = vmatpush.bf16.msra.mxu0 %v1715
    %3057 = vmatpush.bf16.msra.mxu0 %v1713
    %3058 = vmatpush.bf16.msra.mxu0 %v1711
    %3059 = vmatpush.bf16.msra.mxu0 %v1709
    %3060 = vmatpush.bf16.msra.mxu0 %v1707
    %3061 = vmatpush.bf16.msra.mxu0 %v1705
    %3062 = vmatmul.bf16.gmra.mxu0 %v737
    %v3063 = vpop.f32.mrf.mxu0
    %v3064 = vadd.f32 %v3015, %v3063
    %v3065 = vpop.f32.mrf.mxu0
    %v3066 = vadd.f32 %v3017, %v3065
    %3067 = vmatmul.bf16.gmra.mxu0 %v750
    %v3068 = vpop.f32.mrf.mxu0
    %v3069 = vadd.f32 %v3020, %v3068
    %v3070 = vpop.f32.mrf.mxu0
    %v3071 = vadd.f32 %v3022, %v3070
    %3072 = vmatmul.bf16.gmra.mxu0 %v763
    %v3073 = vpop.f32.mrf.mxu0
    %v3074 = vadd.f32 %v3025, %v3073
    %v3075 = vpop.f32.mrf.mxu0
    %v3076 = vadd.f32 %v3027, %v3075
    %3077 = vmatmul.bf16.gmra.mxu0 %v776
    %v3078 = vpop.f32.mrf.mxu0
    %v3079 = vadd.f32 %v3030, %v3078
    %v3080 = vpop.f32.mrf.mxu0
    %v3081 = vadd.f32 %v3032, %v3080
    %3082 = vmatmul.bf16.gmra.mxu0 %v789
    %v3083 = vpop.f32.mrf.mxu0
    %v3084 = vadd.f32 %v3035, %v3083
    %v3085 = vpop.f32.mrf.mxu0
    %v3086 = vadd.f32 %v3037, %v3085
    %3087 = vmatmul.bf16.gmra.mxu0 %v802
    %v3088 = vpop.f32.mrf.mxu0
    %v3089 = vadd.f32 %v3040, %v3088
    %v3090 = vpop.f32.mrf.mxu0
    %v3091 = vadd.f32 %v3042, %v3090
    %3092 = vmatmul.bf16.gmra.mxu0 %v815
    %v3093 = vpop.f32.mrf.mxu0
    %v3094 = vadd.f32 %v3045, %v3093
    %v3095 = vpop.f32.mrf.mxu0
    %v3096 = vadd.f32 %v3047, %v3095
    %3097 = vmatmul.bf16.gmra.mxu0 %v828
    %v3098 = vpop.f32.mrf.mxu0
    %v3099 = vadd.f32 %v3050, %v3098
    %v3100 = vpop.f32.mrf.mxu0
    %v3101 = vadd.f32 %v3052, %v3100
    %3102 = vdwg.mxu0
    %3103 = vmatpush.bf16.msra.mxu0 %v1735
    %3104 = vmatpush.bf16.msra.mxu0 %v1733
    %3105 = vmatpush.bf16.msra.mxu0 %v1731
    %3106 = vmatpush.bf16.msra.mxu0 %v1729
    %3107 = vmatpush.bf16.msra.mxu0 %v1727
    %3108 = vmatpush.bf16.msra.mxu0 %v1725
    %3109 = vmatpush.bf16.msra.mxu0 %v1723
    %3110 = vmatpush.bf16.msra.mxu0 %v1721
    %3111 = vmatmul.bf16.gmra.mxu0 %v738
    %v3112 = vpop.f32.mrf.mxu0
    %v3113 = vadd.f32 %v3064, %v3112
    %v3114 = vpop.f32.mrf.mxu0
    %v3115 = vadd.f32 %v3066, %v3114
    %3116 = vmatmul.bf16.gmra.mxu0 %v751
    %v3117 = vpop.f32.mrf.mxu0
    %v3118 = vadd.f32 %v3069, %v3117
    %v3119 = vpop.f32.mrf.mxu0
    %v3120 = vadd.f32 %v3071, %v3119
    %3121 = vmatmul.bf16.gmra.mxu0 %v764
    %v3122 = vpop.f32.mrf.mxu0
    %v3123 = vadd.f32 %v3074, %v3122
    %v3124 = vpop.f32.mrf.mxu0
    %v3125 = vadd.f32 %v3076, %v3124
    %3126 = vmatmul.bf16.gmra.mxu0 %v777
    %v3127 = vpop.f32.mrf.mxu0
    %v3128 = vadd.f32 %v3079, %v3127
    %v3129 = vpop.f32.mrf.mxu0
    %v3130 = vadd.f32 %v3081, %v3129
    %3131 = vmatmul.bf16.gmra.mxu0 %v790
    %v3132 = vpop.f32.mrf.mxu0
    %v3133 = vadd.f32 %v3084, %v3132
    %v3134 = vpop.f32.mrf.mxu0
    %v3135 = vadd.f32 %v3086, %v3134
    %3136 = vmatmul.bf16.gmra.mxu0 %v803
    %v3137 = vpop.f32.mrf.mxu0
    %v3138 = vadd.f32 %v3089, %v3137
    %v3139 = vpop.f32.mrf.mxu0
    %v3140 = vadd.f32 %v3091, %v3139
    %3141 = vmatmul.bf16.gmra.mxu0 %v816
    %v3142 = vpop.f32.mrf.mxu0
    %v3143 = vadd.f32 %v3094, %v3142
    %v3144 = vpop.f32.mrf.mxu0
    %v3145 = vadd.f32 %v3096, %v3144
    %3146 = vmatmul.bf16.gmra.mxu0 %v829
    %v3147 = vpop.f32.mrf.mxu0
    %v3148 = vadd.f32 %v3099, %v3147
    %v3149 = vpop.f32.mrf.mxu0
    %v3150 = vadd.f32 %v3101, %v3149
    %3151 = vdwg.mxu0
    %3152 = vmatpush.bf16.msra.mxu0 %v1751
    %3153 = vmatpush.bf16.msra.mxu0 %v1749
    %3154 = vmatpush.bf16.msra.mxu0 %v1747
    %3155 = vmatpush.bf16.msra.mxu0 %v1745
    %3156 = vmatpush.bf16.msra.mxu0 %v1743
    %3157 = vmatpush.bf16.msra.mxu0 %v1741
    %3158 = vmatpush.bf16.msra.mxu0 %v1739
    %3159 = vmatpush.bf16.msra.mxu0 %v1737
    %3160 = vmatmul.bf16.gmra.mxu0 %v739
    %v3161 = vpop.f32.mrf.mxu0
    %v3162 = vadd.f32 %v3113, %v3161
    %v3163 = vpop.f32.mrf.mxu0
    %v3164 = vadd.f32 %v3115, %v3163
    %3165 = vmatmul.bf16.gmra.mxu0 %v752
    %v3166 = vpop.f32.mrf.mxu0
    %v3167 = vadd.f32 %v3118, %v3166
    %v3168 = vpop.f32.mrf.mxu0
    %v3169 = vadd.f32 %v3120, %v3168
    %3170 = vmatmul.bf16.gmra.mxu0 %v765
    %v3171 = vpop.f32.mrf.mxu0
    %v3172 = vadd.f32 %v3123, %v3171
    %v3173 = vpop.f32.mrf.mxu0
    %v3174 = vadd.f32 %v3125, %v3173
    %3175 = vmatmul.bf16.gmra.mxu0 %v778
    %v3176 = vpop.f32.mrf.mxu0
    %v3177 = vadd.f32 %v3128, %v3176
    %v3178 = vpop.f32.mrf.mxu0
    %v3179 = vadd.f32 %v3130, %v3178
    %3180 = vmatmul.bf16.gmra.mxu0 %v791
    %v3181 = vpop.f32.mrf.mxu0
    %v3182 = vadd.f32 %v3133, %v3181
    %v3183 = vpop.f32.mrf.mxu0
    %v3184 = vadd.f32 %v3135, %v3183
    %3185 = vmatmul.bf16.gmra.mxu0 %v804
    %v3186 = vpop.f32.mrf.mxu0
    %v3187 = vadd.f32 %v3138, %v3186
    %v3188 = vpop.f32.mrf.mxu0
    %v3189 = vadd.f32 %v3140, %v3188
    %3190 = vmatmul.bf16.gmra.mxu0 %v817
    %v3191 = vpop.f32.mrf.mxu0
    %v3192 = vadd.f32 %v3143, %v3191
    %v3193 = vpop.f32.mrf.mxu0
    %v3194 = vadd.f32 %v3145, %v3193
    %3195 = vmatmul.bf16.gmra.mxu0 %v830
    %v3196 = vpop.f32.mrf.mxu0
    %v3197 = vadd.f32 %v3148, %v3196
    %v3198 = vpop.f32.mrf.mxu0
    %v3199 = vadd.f32 %v3150, %v3198
    %3200 = vdwg.mxu0
    %3201 = vmatpush.bf16.msra.mxu0 %v1767
    %3202 = vmatpush.bf16.msra.mxu0 %v1765
    %3203 = vmatpush.bf16.msra.mxu0 %v1763
    %3204 = vmatpush.bf16.msra.mxu0 %v1761
    %3205 = vmatpush.bf16.msra.mxu0 %v1759
    %3206 = vmatpush.bf16.msra.mxu0 %v1757
    %3207 = vmatpush.bf16.msra.mxu0 %v1755
    %3208 = vmatpush.bf16.msra.mxu0 %v1753
    %3209 = vmatmul.bf16.gmra.mxu0 %v740
    %v3210 = vpop.f32.mrf.mxu0
    %v3211 = vadd.f32 %v3162, %v3210
    %v3212 = vpop.f32.mrf.mxu0
    %v3213 = vadd.f32 %v3164, %v3212
    %3214 = vmatmul.bf16.gmra.mxu0 %v753
    %v3215 = vpop.f32.mrf.mxu0
    %v3216 = vadd.f32 %v3167, %v3215
    %v3217 = vpop.f32.mrf.mxu0
    %v3218 = vadd.f32 %v3169, %v3217
    %3219 = vmatmul.bf16.gmra.mxu0 %v766
    %v3220 = vpop.f32.mrf.mxu0
    %v3221 = vadd.f32 %v3172, %v3220
    %v3222 = vpop.f32.mrf.mxu0
    %v3223 = vadd.f32 %v3174, %v3222
    %3224 = vmatmul.bf16.gmra.mxu0 %v779
    %v3225 = vpop.f32.mrf.mxu0
    %v3226 = vadd.f32 %v3177, %v3225
    %v3227 = vpop.f32.mrf.mxu0
    %v3228 = vadd.f32 %v3179, %v3227
    %3229 = vmatmul.bf16.gmra.mxu0 %v792
    %v3230 = vpop.f32.mrf.mxu0
    %v3231 = vadd.f32 %v3182, %v3230
    %v3232 = vpop.f32.mrf.mxu0
    %v3233 = vadd.f32 %v3184, %v3232
    %3234 = vmatmul.bf16.gmra.mxu0 %v805
    %v3235 = vpop.f32.mrf.mxu0
    %v3236 = vadd.f32 %v3187, %v3235
    %v3237 = vpop.f32.mrf.mxu0
    %v3238 = vadd.f32 %v3189, %v3237
    %3239 = vmatmul.bf16.gmra.mxu0 %v818
    %v3240 = vpop.f32.mrf.mxu0
    %v3241 = vadd.f32 %v3192, %v3240
    %v3242 = vpop.f32.mrf.mxu0
    %v3243 = vadd.f32 %v3194, %v3242
    %3244 = vmatmul.bf16.gmra.mxu0 %v831
    %v3245 = vpop.f32.mrf.mxu0
    %v3246 = vadd.f32 %v3197, %v3245
    %v3247 = vpop.f32.mrf.mxu0
    %v3248 = vadd.f32 %v3199, %v3247
    %3249 = vdwg.mxu0
    %v3250 = vmax.f32 %v2574, 0.0
    %v3251 = vmax.f32 %v3211, 0.0
    %v3252 = vmax.f32 %v2576, 0.0
    %v3253 = vmax.f32 %v3213, 0.0
    %v3254 = vmax.f32 %v2579, 0.0
    %v3255 = vmax.f32 %v3216, 0.0
    %v3256 = vmax.f32 %v2581, 0.0
    %v3257 = vmax.f32 %v3218, 0.0
    %v3258 = vmax.f32 %v2584, 0.0
    %v3259 = vmax.f32 %v3221, 0.0
    %v3260 = vmax.f32 %v2586, 0.0
    %v3261 = vmax.f32 %v3223, 0.0
    %v3262 = vmax.f32 %v2589, 0.0
    %v3263 = vmax.f32 %v3226, 0.0
    %v3264 = vmax.f32 %v2591, 0.0
    %v3265 = vmax.f32 %v3228, 0.0
    %v3266 = vmax.f32 %v2594, 0.0
    %v3267 = vmax.f32 %v3231, 0.0
    %v3268 = vmax.f32 %v2596, 0.0
    %v3269 = vmax.f32 %v3233, 0.0
    %v3270 = vmax.f32 %v2599, 0.0
    %v3271 = vmax.f32 %v3236, 0.0
    %v3272 = vmax.f32 %v2601, 0.0
    %v3273 = vmax.f32 %v3238, 0.0
    %v3274 = vmax.f32 %v2604, 0.0
    %v3275 = vmax.f32 %v3241, 0.0
    %v3276 = vmax.f32 %v2606, 0.0
    %v3277 = vmax.f32 %v3243, 0.0
    %v3278 = vmax.f32 %v2609, 0.0
    %v3279 = vmax.f32 %v3246, 0.0
    %v3280 = vmax.f32 %v2611, 0.0
    %v3281 = vmax.f32 %v3248, 0.0
    %v3282 = vpack.c.bf16 %v3252, %v3250
    %v3283 = vpack.c.bf16 %v3253, %v3251
    %v3284 = vpack.c.bf16 %v3256, %v3254
    %v3285 = vpack.c.bf16 %v3257, %v3255
    %v3286 = vpack.c.bf16 %v3260, %v3258
    %v3287 = vpack.c.bf16 %v3261, %v3259
    %v3288 = vpack.c.bf16 %v3264, %v3262
    %v3289 = vpack.c.bf16 %v3265, %v3263
    %v3290 = vpack.c.bf16 %v3268, %v3266
    %v3291 = vpack.c.bf16 %v3269, %v3267
    %v3292 = vpack.c.bf16 %v3272, %v3270
    %v3293 = vpack.c.bf16 %v3273, %v3271
    %v3294 = vpack.c.bf16 %v3276, %v3274
    %v3295 = vpack.c.bf16 %v3277, %v3275
    %v3296 = vpack.c.bf16 %v3280, %v3278
    %v3297 = vpack.c.bf16 %v3281, %v3279
    %v3298 = vld [vmem:[#allocation8] sm:$0xf]
    %v3299 = vld [vmem:[#allocation8 + $0x4] sm:$0xf]
    %v3300 = vld [vmem:[#allocation8 + $0x8] sm:$0xf]
    %v3301 = vld [vmem:[#allocation8 + $0xc] sm:$0xf]
    %v3302 = vld [vmem:[#allocation8 + $0x10] sm:$0xf]
    %v3303 = vld [vmem:[#allocation8 + $0x14] sm:$0xf]
    %v3304 = vld [vmem:[#allocation8 + $0x18] sm:$0xf]
    %v3305 = vld [vmem:[#allocation8 + $0x1c] sm:$0xf]
    %v3306 = vld [vmem:[#allocation8 + $0x20] sm:$0xf]
    %v3307 = vld [vmem:[#allocation8 + $0x24] sm:$0xf]
    %v3308 = vld [vmem:[#allocation8 + $0x28] sm:$0xf]
    %v3309 = vld [vmem:[#allocation8 + $0x2c] sm:$0xf]
    %v3310 = vld [vmem:[#allocation8 + $0x30] sm:$0xf]
    %v3311 = vld [vmem:[#allocation8 + $0x34] sm:$0xf]
    %v3312 = vld [vmem:[#allocation8 + $0x38] sm:$0xf]
    %v3313 = vld [vmem:[#allocation8 + $0x3c] sm:$0xf]
    %v3314 = vld [vmem:[#allocation8 + $0x40] sm:$0xf]
    %v3315 = vld [vmem:[#allocation8 + $0x44] sm:$0xf]
    %v3316 = vld [vmem:[#allocation8 + $0x48] sm:$0xf]
    %v3317 = vld [vmem:[#allocation8 + $0x4c] sm:$0xf]
    %v3318 = vld [vmem:[#allocation8 + $0x50] sm:$0xf]
    %v3319 = vld [vmem:[#allocation8 + $0x54] sm:$0xf]
    %v3320 = vld [vmem:[#allocation8 + $0x58] sm:$0xf]
    %v3321 = vld [vmem:[#allocation8 + $0x5c] sm:$0xf]
    %v3322 = vld [vmem:[#allocation8 + $0x60] sm:$0xf]
    %v3323 = vld [vmem:[#allocation8 + $0x64] sm:$0xf]
    %v3324 = vld [vmem:[#allocation8 + $0x68] sm:$0xf]
    %v3325 = vld [vmem:[#allocation8 + $0x6c] sm:$0xf]
    %v3326 = vld [vmem:[#allocation8 + $0x70] sm:$0xf]
    %v3327 = vld [vmem:[#allocation8 + $0x74] sm:$0xf]
    %v3328 = vld [vmem:[#allocation8 + $0x78] sm:$0xf]
    %v3329 = vld [vmem:[#allocation8 + $0x7c] sm:$0xf]
    %v3330 = vld [vmem:[%s4] sm:$0x1]
    %v3332 = vperm.slane %v3330, 0
    %v3366 = vunpack.c.l.b16 %v3298
    %v3367 = vunpack.c.l.b16 %v3299
    %v3368 = vunpack.c.l.b16 %v3300
    %v3369 = vunpack.c.l.b16 %v3301
    %v3370 = vunpack.c.l.b16 %v3302
    %v3371 = vunpack.c.l.b16 %v3303
    %v3372 = vunpack.c.l.b16 %v3304
    %v3373 = vunpack.c.l.b16 %v3305
    %v3374 = vunpack.c.l.b16 %v3306
    %v3375 = vunpack.c.l.b16 %v3307
    %v3376 = vunpack.c.l.b16 %v3308
    %v3377 = vunpack.c.l.b16 %v3309
    %v3378 = vunpack.c.l.b16 %v3310
    %v3379 = vunpack.c.l.b16 %v3311
    %v3380 = vunpack.c.l.b16 %v3312
    %v3381 = vunpack.c.l.b16 %v3313
    %v3382 = vunpack.c.l.b16 %v3314
    %v3383 = vunpack.c.l.b16 %v3315
    %v3384 = vunpack.c.l.b16 %v3316
    %v3385 = vunpack.c.l.b16 %v3317
    %v3386 = vunpack.c.l.b16 %v3318
    %v3387 = vunpack.c.l.b16 %v3319
    %v3388 = vunpack.c.l.b16 %v3320
    %v3389 = vunpack.c.l.b16 %v3321
    %v3390 = vunpack.c.l.b16 %v3322
    %v3391 = vunpack.c.l.b16 %v3323
    %v3392 = vunpack.c.l.b16 %v3324
    %v3393 = vunpack.c.l.b16 %v3325
    %v3394 = vunpack.c.l.b16 %v3326
    %v3395 = vunpack.c.l.b16 %v3327
    %v3396 = vunpack.c.l.b16 %v3328
    %v3397 = vunpack.c.l.b16 %v3329
    %v3398 = vpack.c.b16 %v3367, %v3366
    %v3399 = vpack.c.b16 %v3369, %v3368
    %v3400 = vpack.c.b16 %v3371, %v3370
    %v3401 = vpack.c.b16 %v3373, %v3372
    %v3402 = vpack.c.b16 %v3375, %v3374
    %v3403 = vpack.c.b16 %v3377, %v3376
    %v3404 = vpack.c.b16 %v3379, %v3378
    %v3405 = vpack.c.b16 %v3381, %v3380
    %v3406 = vpack.c.b16 %v3383, %v3382
    %v3407 = vpack.c.b16 %v3385, %v3384
    %v3408 = vpack.c.b16 %v3387, %v3386
    %v3409 = vpack.c.b16 %v3389, %v3388
    %v3410 = vpack.c.b16 %v3391, %v3390
    %v3411 = vpack.c.b16 %v3393, %v3392
    %v3412 = vpack.c.b16 %v3395, %v3394
    %v3413 = vpack.c.b16 %v3397, %v3396
    %3430 = vmatpush.bf16.msra.mxu0 %v3405
    %3431 = vmatpush.bf16.msra.mxu0 %v3404
    %3432 = vmatpush.bf16.msra.mxu0 %v3403
    %3433 = vmatpush.bf16.msra.mxu0 %v3402
    %3434 = vmatpush.bf16.msra.mxu0 %v3401
    %3435 = vmatpush.bf16.msra.mxu0 %v3400
    %3436 = vmatpush.bf16.msra.mxu0 %v3399
    %3437 = vmatpush.bf16.msra.mxu0 %v3398
    %3438 = vmatmul.bf16.gmra.mxu0 %v3282
    %v3439 = vpop.f32.mrf.mxu0
    %v3440 = vadd.f32 %v3332, %v3439
    %v3441 = vpop.f32.mrf.mxu0
    %v3442 = vadd.f32 %v3332, %v3441
    %3443 = vmatmul.bf16.gmra.mxu0 %v3284
    %v3444 = vpop.f32.mrf.mxu0
    %v3445 = vadd.f32 %v3332, %v3444
    %v3446 = vpop.f32.mrf.mxu0
    %v3447 = vadd.f32 %v3332, %v3446
    %3448 = vmatmul.bf16.gmra.mxu0 %v3286
    %v3449 = vpop.f32.mrf.mxu0
    %v3450 = vadd.f32 %v3332, %v3449
    %v3451 = vpop.f32.mrf.mxu0
    %v3452 = vadd.f32 %v3332, %v3451
    %3453 = vmatmul.bf16.gmra.mxu0 %v3288
    %v3454 = vpop.f32.mrf.mxu0
    %v3455 = vadd.f32 %v3332, %v3454
    %v3456 = vpop.f32.mrf.mxu0
    %v3457 = vadd.f32 %v3332, %v3456
    %3458 = vmatmul.bf16.gmra.mxu0 %v3290
    %v3459 = vpop.f32.mrf.mxu0
    %v3460 = vadd.f32 %v3332, %v3459
    %v3461 = vpop.f32.mrf.mxu0
    %v3462 = vadd.f32 %v3332, %v3461
    %3463 = vmatmul.bf16.gmra.mxu0 %v3292
    %v3464 = vpop.f32.mrf.mxu0
    %v3465 = vadd.f32 %v3332, %v3464
    %v3466 = vpop.f32.mrf.mxu0
    %v3467 = vadd.f32 %v3332, %v3466
    %3468 = vmatmul.bf16.gmra.mxu0 %v3294
    %v3469 = vpop.f32.mrf.mxu0
    %v3470 = vadd.f32 %v3332, %v3469
    %v3471 = vpop.f32.mrf.mxu0
    %v3472 = vadd.f32 %v3332, %v3471
    %3473 = vmatmul.bf16.gmra.mxu0 %v3296
    %v3474 = vpop.f32.mrf.mxu0
    %v3475 = vadd.f32 %v3332, %v3474
    %v3476 = vpop.f32.mrf.mxu0
    %v3477 = vadd.f32 %v3332, %v3476
    %3478 = vdwg.mxu0
    %3479 = vmatpush.bf16.msra.mxu0 %v3413
    %3480 = vmatpush.bf16.msra.mxu0 %v3412
    %3481 = vmatpush.bf16.msra.mxu0 %v3411
    %3482 = vmatpush.bf16.msra.mxu0 %v3410
    %3483 = vmatpush.bf16.msra.mxu0 %v3409
    %3484 = vmatpush.bf16.msra.mxu0 %v3408
    %3485 = vmatpush.bf16.msra.mxu0 %v3407
    %3486 = vmatpush.bf16.msra.mxu0 %v3406
    %3487 = vmatmul.bf16.gmra.mxu0 %v3283
    %v3488 = vpop.f32.mrf.mxu0
    %v3489 = vadd.f32 %v3440, %v3488
    %v3490 = vpop.f32.mrf.mxu0
    %v3491 = vadd.f32 %v3442, %v3490
    %3492 = vmatmul.bf16.gmra.mxu0 %v3285
    %v3493 = vpop.f32.mrf.mxu0
    %v3494 = vadd.f32 %v3445, %v3493
    %v3495 = vpop.f32.mrf.mxu0
    %v3496 = vadd.f32 %v3447, %v3495
    %3497 = vmatmul.bf16.gmra.mxu0 %v3287
    %v3498 = vpop.f32.mrf.mxu0
    %v3499 = vadd.f32 %v3450, %v3498
    %v3500 = vpop.f32.mrf.mxu0
    %v3501 = vadd.f32 %v3452, %v3500
    %3502 = vmatmul.bf16.gmra.mxu0 %v3289
    %v3503 = vpop.f32.mrf.mxu0
    %v3504 = vadd.f32 %v3455, %v3503
    %v3505 = vpop.f32.mrf.mxu0
    %v3506 = vadd.f32 %v3457, %v3505
    %3507 = vmatmul.bf16.gmra.mxu0 %v3291
    %v3508 = vpop.f32.mrf.mxu0
    %v3509 = vadd.f32 %v3460, %v3508
    %v3510 = vpop.f32.mrf.mxu0
    %v3511 = vadd.f32 %v3462, %v3510
    %3512 = vmatmul.bf16.gmra.mxu0 %v3293
    %v3513 = vpop.f32.mrf.mxu0
    %v3514 = vadd.f32 %v3465, %v3513
    %v3515 = vpop.f32.mrf.mxu0
    %v3516 = vadd.f32 %v3467, %v3515
    %3517 = vmatmul.bf16.gmra.mxu0 %v3295
    %v3518 = vpop.f32.mrf.mxu0
    %v3519 = vadd.f32 %v3470, %v3518
    %v3520 = vpop.f32.mrf.mxu0
    %v3521 = vadd.f32 %v3472, %v3520
    %3522 = vmatmul.bf16.gmra.mxu0 %v3297
    %v3523 = vpop.f32.mrf.mxu0
    %v3524 = vadd.f32 %v3475, %v3523
    %v3525 = vpop.f32.mrf.mxu0
    %v3526 = vadd.f32 %v3477, %v3525
    %3527 = vdwg.mxu0
    %3528 = vmax.xlane.f32.xlu0 %v3489
    %v3529 = vpop.xlane.xlu0 %3528
    %3530 = vmax.xlane.f32.xlu0 %v3491
    %v3531 = vpop.xlane.xlu0 %3530
    %3532 = vmax.xlane.f32.xlu0 %v3494
    %v3533 = vpop.xlane.xlu0 %3532
    %3534 = vmax.xlane.f32.xlu0 %v3496
    %v3535 = vpop.xlane.xlu0 %3534
    %3536 = vmax.xlane.f32.xlu0 %v3499
    %v3537 = vpop.xlane.xlu0 %3536
    %3538 = vmax.xlane.f32.xlu0 %v3501
    %v3539 = vpop.xlane.xlu0 %3538
    %3540 = vmax.xlane.f32.xlu0 %v3504
    %v3541 = vpop.xlane.xlu0 %3540
    %3542 = vmax.xlane.f32.xlu0 %v3506
    %v3543 = vpop.xlane.xlu0 %3542
    %3544 = vmax.xlane.f32.xlu0 %v3509
    %v3545 = vpop.xlane.xlu0 %3544
    %3546 = vmax.xlane.f32.xlu0 %v3511
    %v3547 = vpop.xlane.xlu0 %3546
    %3548 = vmax.xlane.f32.xlu0 %v3514
    %v3549 = vpop.xlane.xlu0 %3548
    %3550 = vmax.xlane.f32.xlu0 %v3516
    %v3551 = vpop.xlane.xlu0 %3550
    %3552 = vmax.xlane.f32.xlu0 %v3519
    %v3553 = vpop.xlane.xlu0 %3552
    %3554 = vmax.xlane.f32.xlu0 %v3521
    %v3555 = vpop.xlane.xlu0 %3554
    %3556 = vmax.xlane.f32.xlu0 %v3524
    %v3557 = vpop.xlane.xlu0 %3556
    %3558 = vmax.xlane.f32.xlu0 %v3526
    %v3559 = vpop.xlane.xlu0 %3558
    %v3560 = vsub.f32 %v3489, %v3529
    %v3561 = vsub.f32 %v3491, %v3531
    %v3562 = vsub.f32 %v3494, %v3533
    %v3563 = vsub.f32 %v3496, %v3535
    %v3564 = vsub.f32 %v3499, %v3537
    %v3565 = vsub.f32 %v3501, %v3539
    %v3566 = vsub.f32 %v3504, %v3541
    %v3567 = vsub.f32 %v3506, %v3543
    %v3568 = vsub.f32 %v3509, %v3545
    %v3569 = vsub.f32 %v3511, %v3547
    %v3570 = vsub.f32 %v3514, %v3549
    %v3571 = vsub.f32 %v3516, %v3551
    %v3572 = vsub.f32 %v3519, %v3553
    %v3573 = vsub.f32 %v3521, %v3555
    %v3574 = vsub.f32 %v3524, %v3557
    %v3575 = vsub.f32 %v3526, %v3559
    %v3576 = vmul.f32 %v3560, 1.442695
    %v3577 = vpow.pop %v3576
    %v3578 = vmul.f32 %v3561, 1.442695
    %v3579 = vpow.pop %v3578
    %v3580 = vmul.f32 %v3562, 1.442695
    %v3581 = vpow.pop %v3580
    %v3582 = vmul.f32 %v3563, 1.442695
    %v3583 = vpow.pop %v3582
    %v3584 = vmul.f32 %v3564, 1.442695
    %v3585 = vpow.pop %v3584
    %v3586 = vmul.f32 %v3565, 1.442695
    %v3587 = vpow.pop %v3586
    %v3588 = vmul.f32 %v3566, 1.442695
    %v3589 = vpow.pop %v3588
    %v3590 = vmul.f32 %v3567, 1.442695
    %v3591 = vpow.pop %v3590
    %v3592 = vmul.f32 %v3568, 1.442695
    %v3593 = vpow.pop %v3592
    %v3594 = vmul.f32 %v3569, 1.442695
    %v3595 = vpow.pop %v3594
    %v3596 = vmul.f32 %v3570, 1.442695
    %v3597 = vpow.pop %v3596
    %v3598 = vmul.f32 %v3571, 1.442695
    %v3599 = vpow.pop %v3598
    %v3600 = vmul.f32 %v3572, 1.442695
    %v3601 = vpow.pop %v3600
    %v3602 = vmul.f32 %v3573, 1.442695
    %v3603 = vpow.pop %v3602
    %v3604 = vmul.f32 %v3574, 1.442695
    %v3605 = vpow.pop %v3604
    %v3606 = vmul.f32 %v3575, 1.442695
    %v3607 = vpow.pop %v3606
    %3608 = vadd.xlane.f32.xlu0 %v3577
    %v3609 = vpop.xlane.xlu0 %3608
    %3610 = vadd.xlane.f32.xlu0 %v3579
    %v3611 = vpop.xlane.xlu0 %3610
    %3612 = vadd.xlane.f32.xlu0 %v3581
    %v3613 = vpop.xlane.xlu0 %3612
    %3614 = vadd.xlane.f32.xlu0 %v3583
    %v3615 = vpop.xlane.xlu0 %3614
    %3616 = vadd.xlane.f32.xlu0 %v3585
    %v3617 = vpop.xlane.xlu0 %3616
    %3618 = vadd.xlane.f32.xlu0 %v3587
    %v3619 = vpop.xlane.xlu0 %3618
    %3620 = vadd.xlane.f32.xlu0 %v3589
    %v3621 = vpop.xlane.xlu0 %3620
    %3622 = vadd.xlane.f32.xlu0 %v3591
    %v3623 = vpop.xlane.xlu0 %3622
    %3624 = vadd.xlane.f32.xlu0 %v3593
    %v3625 = vpop.xlane.xlu0 %3624
    %3626 = vadd.xlane.f32.xlu0 %v3595
    %v3627 = vpop.xlane.xlu0 %3626
    %3628 = vadd.xlane.f32.xlu0 %v3597
    %v3629 = vpop.xlane.xlu0 %3628
    %3630 = vadd.xlane.f32.xlu0 %v3599
    %v3631 = vpop.xlane.xlu0 %3630
    %3632 = vadd.xlane.f32.xlu0 %v3601
    %v3633 = vpop.xlane.xlu0 %3632
    %3634 = vadd.xlane.f32.xlu0 %v3603
    %v3635 = vpop.xlane.xlu0 %3634
    %3636 = vadd.xlane.f32.xlu0 %v3605
    %v3637 = vpop.xlane.xlu0 %3636
    %3638 = vadd.xlane.f32.xlu0 %v3607
    %v3639 = vpop.xlane.xlu0 %3638
    %v3640 = vrcp.pop %v3609
    %v3641 = vmul.f32 %v3609, %v3640
    %v3642 = vsub.f32 1.0, %v3641
    %v3643 = vmul.f32 %v3640, %v3642
    %v3644 = vadd.f32 %v3640, %v3643
    %vm3645 = vweird.f32 %v3609
    %vm3646 = vweird.f32 %v3640
    %vm3647 = vmor %vm3645, %vm3646
    %v3648 = vsel %vm3647, %v3640, %v3644
    %v3649 = vand.u32 2147483647, %v3609
    %vm3650 = vcmp.eq.f32.partialorder %v3649, 8.507059e+37
    %v3651 = vand.u32 %v3609, 2147483648
    %v3652 = vor.u32 1.1754944e-38, %v3651
    %v3653 = vsel %vm3650, %v3652, %v3648
    %v3654 = vrcp.pop %v3611
    %v3655 = vmul.f32 %v3611, %v3654
    %v3656 = vsub.f32 1.0, %v3655
    %v3657 = vmul.f32 %v3654, %v3656
    %v3658 = vadd.f32 %v3654, %v3657
    %vm3659 = vweird.f32 %v3611
    %vm3660 = vweird.f32 %v3654
    %vm3661 = vmor %vm3659, %vm3660
    %v3662 = vsel %vm3661, %v3654, %v3658
    %v3663 = vand.u32 2147483647, %v3611
    %vm3664 = vcmp.eq.f32.partialorder %v3663, 8.507059e+37
    %v3665 = vand.u32 %v3611, 2147483648
    %v3666 = vor.u32 1.1754944e-38, %v3665
    %v3667 = vsel %vm3664, %v3666, %v3662
    %v3668 = vrcp.pop %v3613
    %v3669 = vmul.f32 %v3613, %v3668
    %v3670 = vsub.f32 1.0, %v3669
    %v3671 = vmul.f32 %v3668, %v3670
    %v3672 = vadd.f32 %v3668, %v3671
    %vm3673 = vweird.f32 %v3613
    %vm3674 = vweird.f32 %v3668
    %vm3675 = vmor %vm3673, %vm3674
    %v3676 = vsel %vm3675, %v3668, %v3672
    %v3677 = vand.u32 2147483647, %v3613
    %vm3678 = vcmp.eq.f32.partialorder %v3677, 8.507059e+37
    %v3679 = vand.u32 %v3613, 2147483648
    %v3680 = vor.u32 1.1754944e-38, %v3679
    %v3681 = vsel %vm3678, %v3680, %v3676
    %v3682 = vrcp.pop %v3615
    %v3683 = vmul.f32 %v3615, %v3682
    %v3684 = vsub.f32 1.0, %v3683
    %v3685 = vmul.f32 %v3682, %v3684
    %v3686 = vadd.f32 %v3682, %v3685
    %vm3687 = vweird.f32 %v3615
    %vm3688 = vweird.f32 %v3682
    %vm3689 = vmor %vm3687, %vm3688
    %v3690 = vsel %vm3689, %v3682, %v3686
    %v3691 = vand.u32 2147483647, %v3615
    %vm3692 = vcmp.eq.f32.partialorder %v3691, 8.507059e+37
    %v3693 = vand.u32 %v3615, 2147483648
    %v3694 = vor.u32 1.1754944e-38, %v3693
    %v3695 = vsel %vm3692, %v3694, %v3690
    %v3696 = vrcp.pop %v3617
    %v3697 = vmul.f32 %v3617, %v3696
    %v3698 = vsub.f32 1.0, %v3697
    %v3699 = vmul.f32 %v3696, %v3698
    %v3700 = vadd.f32 %v3696, %v3699
    %vm3701 = vweird.f32 %v3617
    %vm3702 = vweird.f32 %v3696
    %vm3703 = vmor %vm3701, %vm3702
    %v3704 = vsel %vm3703, %v3696, %v3700
    %v3705 = vand.u32 2147483647, %v3617
    %vm3706 = vcmp.eq.f32.partialorder %v3705, 8.507059e+37
    %v3707 = vand.u32 %v3617, 2147483648
    %v3708 = vor.u32 1.1754944e-38, %v3707
    %v3709 = vsel %vm3706, %v3708, %v3704
    %v3710 = vrcp.pop %v3619
    %v3711 = vmul.f32 %v3619, %v3710
    %v3712 = vsub.f32 1.0, %v3711
    %v3713 = vmul.f32 %v3710, %v3712
    %v3714 = vadd.f32 %v3710, %v3713
    %vm3715 = vweird.f32 %v3619
    %vm3716 = vweird.f32 %v3710
    %vm3717 = vmor %vm3715, %vm3716
    %v3718 = vsel %vm3717, %v3710, %v3714
    %v3719 = vand.u32 2147483647, %v3619
    %vm3720 = vcmp.eq.f32.partialorder %v3719, 8.507059e+37
    %v3721 = vand.u32 %v3619, 2147483648
    %v3722 = vor.u32 1.1754944e-38, %v3721
    %v3723 = vsel %vm3720, %v3722, %v3718
    %v3724 = vrcp.pop %v3621
    %v3725 = vmul.f32 %v3621, %v3724
    %v3726 = vsub.f32 1.0, %v3725
    %v3727 = vmul.f32 %v3724, %v3726
    %v3728 = vadd.f32 %v3724, %v3727
    %vm3729 = vweird.f32 %v3621
    %vm3730 = vweird.f32 %v3724
    %vm3731 = vmor %vm3729, %vm3730
    %v3732 = vsel %vm3731, %v3724, %v3728
    %v3733 = vand.u32 2147483647, %v3621
    %vm3734 = vcmp.eq.f32.partialorder %v3733, 8.507059e+37
    %v3735 = vand.u32 %v3621, 2147483648
    %v3736 = vor.u32 1.1754944e-38, %v3735
    %v3737 = vsel %vm3734, %v3736, %v3732
    %v3738 = vrcp.pop %v3623
    %v3739 = vmul.f32 %v3623, %v3738
    %v3740 = vsub.f32 1.0, %v3739
    %v3741 = vmul.f32 %v3738, %v3740
    %v3742 = vadd.f32 %v3738, %v3741
    %vm3743 = vweird.f32 %v3623
    %vm3744 = vweird.f32 %v3738
    %vm3745 = vmor %vm3743, %vm3744
    %v3746 = vsel %vm3745, %v3738, %v3742
    %v3747 = vand.u32 2147483647, %v3623
    %vm3748 = vcmp.eq.f32.partialorder %v3747, 8.507059e+37
    %v3749 = vand.u32 %v3623, 2147483648
    %v3750 = vor.u32 1.1754944e-38, %v3749
    %v3751 = vsel %vm3748, %v3750, %v3746
    %v3752 = vrcp.pop %v3625
    %v3753 = vmul.f32 %v3625, %v3752
    %v3754 = vsub.f32 1.0, %v3753
    %v3755 = vmul.f32 %v3752, %v3754
    %v3756 = vadd.f32 %v3752, %v3755
    %vm3757 = vweird.f32 %v3625
    %vm3758 = vweird.f32 %v3752
    %vm3759 = vmor %vm3757, %vm3758
    %v3760 = vsel %vm3759, %v3752, %v3756
    %v3761 = vand.u32 2147483647, %v3625
    %vm3762 = vcmp.eq.f32.partialorder %v3761, 8.507059e+37
    %v3763 = vand.u32 %v3625, 2147483648
    %v3764 = vor.u32 1.1754944e-38, %v3763
    %v3765 = vsel %vm3762, %v3764, %v3760
    %v3766 = vrcp.pop %v3627
    %v3767 = vmul.f32 %v3627, %v3766
    %v3768 = vsub.f32 1.0, %v3767
    %v3769 = vmul.f32 %v3766, %v3768
    %v3770 = vadd.f32 %v3766, %v3769
    %vm3771 = vweird.f32 %v3627
    %vm3772 = vweird.f32 %v3766
    %vm3773 = vmor %vm3771, %vm3772
    %v3774 = vsel %vm3773, %v3766, %v3770
    %v3775 = vand.u32 2147483647, %v3627
    %vm3776 = vcmp.eq.f32.partialorder %v3775, 8.507059e+37
    %v3777 = vand.u32 %v3627, 2147483648
    %v3778 = vor.u32 1.1754944e-38, %v3777
    %v3779 = vsel %vm3776, %v3778, %v3774
    %v3780 = vrcp.pop %v3629
    %v3781 = vmul.f32 %v3629, %v3780
    %v3782 = vsub.f32 1.0, %v3781
    %v3783 = vmul.f32 %v3780, %v3782
    %v3784 = vadd.f32 %v3780, %v3783
    %vm3785 = vweird.f32 %v3629
    %vm3786 = vweird.f32 %v3780
    %vm3787 = vmor %vm3785, %vm3786
    %v3788 = vsel %vm3787, %v3780, %v3784
    %v3789 = vand.u32 2147483647, %v3629
    %vm3790 = vcmp.eq.f32.partialorder %v3789, 8.507059e+37
    %v3791 = vand.u32 %v3629, 2147483648
    %v3792 = vor.u32 1.1754944e-38, %v3791
    %v3793 = vsel %vm3790, %v3792, %v3788
    %v3794 = vrcp.pop %v3631
    %v3795 = vmul.f32 %v3631, %v3794
    %v3796 = vsub.f32 1.0, %v3795
    %v3797 = vmul.f32 %v3794, %v3796
    %v3798 = vadd.f32 %v3794, %v3797
    %vm3799 = vweird.f32 %v3631
    %vm3800 = vweird.f32 %v3794
    %vm3801 = vmor %vm3799, %vm3800
    %v3802 = vsel %vm3801, %v3794, %v3798
    %v3803 = vand.u32 2147483647, %v3631
    %vm3804 = vcmp.eq.f32.partialorder %v3803, 8.507059e+37
    %v3805 = vand.u32 %v3631, 2147483648
    %v3806 = vor.u32 1.1754944e-38, %v3805
    %v3807 = vsel %vm3804, %v3806, %v3802
    %v3808 = vrcp.pop %v3633
    %v3809 = vmul.f32 %v3633, %v3808
    %v3810 = vsub.f32 1.0, %v3809
    %v3811 = vmul.f32 %v3808, %v3810
    %v3812 = vadd.f32 %v3808, %v3811
    %vm3813 = vweird.f32 %v3633
    %vm3814 = vweird.f32 %v3808
    %vm3815 = vmor %vm3813, %vm3814
    %v3816 = vsel %vm3815, %v3808, %v3812
    %v3817 = vand.u32 2147483647, %v3633
    %vm3818 = vcmp.eq.f32.partialorder %v3817, 8.507059e+37
    %v3819 = vand.u32 %v3633, 2147483648
    %v3820 = vor.u32 1.1754944e-38, %v3819
    %v3821 = vsel %vm3818, %v3820, %v3816
    %v3822 = vrcp.pop %v3635
    %v3823 = vmul.f32 %v3635, %v3822
    %v3824 = vsub.f32 1.0, %v3823
    %v3825 = vmul.f32 %v3822, %v3824
    %v3826 = vadd.f32 %v3822, %v3825
    %vm3827 = vweird.f32 %v3635
    %vm3828 = vweird.f32 %v3822
    %vm3829 = vmor %vm3827, %vm3828
    %v3830 = vsel %vm3829, %v3822, %v3826
    %v3831 = vand.u32 2147483647, %v3635
    %vm3832 = vcmp.eq.f32.partialorder %v3831, 8.507059e+37
    %v3833 = vand.u32 %v3635, 2147483648
    %v3834 = vor.u32 1.1754944e-38, %v3833
    %v3835 = vsel %vm3832, %v3834, %v3830
    %v3836 = vrcp.pop %v3637
    %v3837 = vmul.f32 %v3637, %v3836
    %v3838 = vsub.f32 1.0, %v3837
    %v3839 = vmul.f32 %v3836, %v3838
    %v3840 = vadd.f32 %v3836, %v3839
    %vm3841 = vweird.f32 %v3637
    %vm3842 = vweird.f32 %v3836
    %vm3843 = vmor %vm3841, %vm3842
    %v3844 = vsel %vm3843, %v3836, %v3840
    %v3845 = vand.u32 2147483647, %v3637
    %vm3846 = vcmp.eq.f32.partialorder %v3845, 8.507059e+37
    %v3847 = vand.u32 %v3637, 2147483648
    %v3848 = vor.u32 1.1754944e-38, %v3847
    %v3849 = vsel %vm3846, %v3848, %v3844
    %v3850 = vrcp.pop %v3639
    %v3851 = vmul.f32 %v3639, %v3850
    %v3852 = vsub.f32 1.0, %v3851
    %v3853 = vmul.f32 %v3850, %v3852
    %v3854 = vadd.f32 %v3850, %v3853
    %vm3855 = vweird.f32 %v3639
    %vm3856 = vweird.f32 %v3850
    %vm3857 = vmor %vm3855, %vm3856
    %v3858 = vsel %vm3857, %v3850, %v3854
    %v3859 = vand.u32 2147483647, %v3639
    %vm3860 = vcmp.eq.f32.partialorder %v3859, 8.507059e+37
    %v3861 = vand.u32 %v3639, 2147483648
    %v3862 = vor.u32 1.1754944e-38, %v3861
    %v3863 = vsel %vm3860, %v3862, %v3858
    %v3864 = vmul.f32 %v3577, %v3653
    %v3865 = vmul.f32 %v3579, %v3667
    %v3866 = vmul.f32 %v3581, %v3681
    %v3867 = vmul.f32 %v3583, %v3695
    %v3868 = vmul.f32 %v3585, %v3709
    %v3869 = vmul.f32 %v3587, %v3723
    %v3870 = vmul.f32 %v3589, %v3737
    %v3871 = vmul.f32 %v3591, %v3751
    %v3872 = vmul.f32 %v3593, %v3765
    %v3873 = vmul.f32 %v3595, %v3779
    %v3874 = vmul.f32 %v3597, %v3793
    %v3875 = vmul.f32 %v3599, %v3807
    %v3876 = vmul.f32 %v3601, %v3821
    %v3877 = vmul.f32 %v3603, %v3835
    %v3878 = vmul.f32 %v3605, %v3849
    %v3879 = vmul.f32 %v3607, %v3863
    %3880 = vst [vmem:[#allocation10] sm:$0xff] %v3864
    %3881 = vst [vmem:[#allocation10 + $0x8] sm:$0xff] %v3865
    %3882 = vst [vmem:[#allocation10 + $0x10] sm:$0xff] %v3866
    %3883 = vst [vmem:[#allocation10 + $0x18] sm:$0xff] %v3867
    %3884 = vst [vmem:[#allocation10 + $0x20] sm:$0xff] %v3868
    %3885 = vst [vmem:[#allocation10 + $0x28] sm:$0xff] %v3869
    %3886 = vst [vmem:[#allocation10 + $0x30] sm:$0xff] %v3870
    %3887 = vst [vmem:[#allocation10 + $0x38] sm:$0xff] %v3871
    %3888 = vst [vmem:[#allocation10 + $0x40] sm:$0xff] %v3872
    %3889 = vst [vmem:[#allocation10 + $0x48] sm:$0xff] %v3873
    %3890 = vst [vmem:[#allocation10 + $0x50] sm:$0xff] %v3874
    %3891 = vst [vmem:[#allocation10 + $0x58] sm:$0xff] %v3875
    %3892 = vst [vmem:[#allocation10 + $0x60] sm:$0xff] %v3876
    %3893 = vst [vmem:[#allocation10 + $0x68] sm:$0xff] %v3877
    %3894 = vst [vmem:[#allocation10 + $0x70] sm:$0xff] %v3878
    %3895 = vst [vmem:[#allocation10 + $0x78] sm:$0xff] %v3879
    // Predicated region
    $region38: #{tpu_custom_call.1} parent=1 // pred_check
      _
    $region39: #{tpu_custom_call.1} parent=1 // pred_check_branch
      %3897 = sbr.rel (0) target = $region41
    $region40: #{tpu_custom_call.1} parent=1 // pred_region
      %3899 = vsyncadd [#allocation4], 0
      %s3900 = sshll.u32 [#allocation10], 4
      %s3901 = int_to_ptr.vmem [resolvable:$true] %s3900
      %s3902 = sshll.u32 %s5, 4
      %s3903 = int_to_ptr.hbm [resolvable:$true] %s3902
      %3908 = dma.vmem_to_hbm [thread:$0]  %s3901, 2048, %s3903, [#allocation4], 128, 128, 8
    $region41: #{tpu_custom_call.1} parent=1 // pred_fallthru
      _
    // Predicated region
    $region42: #{tpu_custom_call.1} parent=1 // pred_check
      _
    $region43: #{tpu_custom_call.1} parent=1 // pred_check_branch
      %3910 = sbr.rel (0) target = $region45
    $region44: #{tpu_custom_call.1} parent=1 // pred_region
      %3912 = dma.done [#allocation4], 2048
    $region45: #{tpu_custom_call.1} parent=1 // pred_fallthru
      _
    %3913 = vsyncpa [#allocation3], 1
    %3914 = vsyncpa [#allocation6], 1
    %3915 = vsyncpa [#allocation9], 1
    %3916 = vsyncpa [#allocation4], 1

</llo_original>
